<compile_context>
chip_gen: v7x
topology: tpu7x:2x2x1
jax: 0.10.0
libtpu: 0.0.40
codegen_flags: <defaults>
</compile_context>

<pallas_src>
import functools

import jax
import jax.numpy as jnp
from jax import lax
from jax.experimental import pallas as pl
from jax.experimental.pallas import tpu as pltpu


# ----------------------------------------------------------------------------
# Fused matmul kernel:  act((X @ W) * scale + bias [+ residual])
# ----------------------------------------------------------------------------
def _round_up(x, m):
    return ((x + m - 1) // m) * m


def _fused_matmul_kernel(*refs, act, has_res):
    if has_res:
        x_ref, w_ref, s_ref, b_ref, r_ref, o_ref, acc_ref = refs
    else:
        x_ref, w_ref, s_ref, b_ref, o_ref, acc_ref = refs
        r_ref = None

    @pl.when(pl.program_id(2) == 0)
    def _init():
        acc_ref[...] = jnp.zeros_like(acc_ref)

    acc_ref[...] += jnp.dot(x_ref[...], w_ref[...],
                            preferred_element_type=jnp.float32)

    @pl.when(pl.program_id(2) == pl.num_programs(2) - 1)
    def _epilogue():
        y = acc_ref[...] * s_ref[...] + b_ref[...]
        if has_res:
            y = y + r_ref[...].astype(jnp.float32)
        if act == "relu":
            y = jnp.maximum(y, 0.0)
        elif act == "tanh":
            y = jnp.tanh(y)
        o_ref[...] = y.astype(o_ref.dtype)


def fused_matmul(x, w, scale, bias, res=None, act="none"):
    """x:(M,K) w:(K,N) scale/bias:(N,) res:(M,N)|None -> (M,N) float32."""
    M, K = x.shape
    Kw, N = w.shape
    assert K == Kw

    tn = 128                                   # lane-dense output tiles
    np_ = _round_up(N, tn)
    kp = _round_up(K, 128)
    tk = kp if kp <= 512 else 128
    tm = 128 if M >= 128 else _round_up(M, 8)
    mp = _round_up(M, tm)

    f32 = jnp.float32
    xp = jnp.zeros((mp, kp), f32).at[:M, :K].set(x.astype(f32))
    wp = jnp.zeros((kp, np_), f32).at[:K, :N].set(w.astype(f32))
    sp = jnp.zeros((1, np_), f32).at[0, :N].set(scale.astype(f32))
    bp = jnp.zeros((1, np_), f32).at[0, :N].set(bias.astype(f32))

    in_specs = [
        pl.BlockSpec((tm, tk), lambda i, j, k: (i, k)),
        pl.BlockSpec((tk, tn), lambda i, j, k: (k, j)),
        pl.BlockSpec((1, tn), lambda i, j, k: (0, j)),
        pl.BlockSpec((1, tn), lambda i, j, k: (0, j)),
    ]
    operands = [xp, wp, sp, bp]
    if res is not None:
        rp = jnp.zeros((mp, np_), f32).at[:M, :N].set(res.astype(f32))
        in_specs.append(pl.BlockSpec((tm, tn), lambda i, j, k: (i, j)))
        operands.append(rp)

    kernel = functools.partial(_fused_matmul_kernel, act=act,
                               has_res=res is not None)
    out = pl.pallas_call(
        kernel,
        out_shape=jax.ShapeDtypeStruct((mp, np_), f32),
        grid_spec=pltpu.PrefetchScalarGridSpec(
            num_scalar_prefetch=0,
            grid=(mp // tm, np_ // tn, kp // tk),
            in_specs=in_specs,
            out_specs=pl.BlockSpec((tm, tn), lambda i, j, k: (i, j)),
            scratch_shapes=[pltpu.VMEM((tm, tn), jnp.float32)],
        ),
        compiler_params=pltpu.CompilerParams(
            dimension_semantics=("parallel", "parallel", "arbitrary")),
    )(*operands)
    return out[:M, :N]


# ----------------------------------------------------------------------------
# Conv wrappers (layout glue: padding / im2col / dilation happen here)
# ----------------------------------------------------------------------------
def _reflect_pad(x, p):
    return jnp.pad(x, ((0, 0), (p, p), (p, p), (0, 0)), mode="reflect")


def _im2col(x, kh, kw, stride):
    # x: (N, H, W, C) already padded -> (N, Ho, Wo, kh*kw*C)
    n, h, w, c = x.shape
    ho = (h - kh) // stride + 1
    wo = (w - kw) // stride + 1
    cols = []
    for dy in range(kh):
        for dx in range(kw):
            cols.append(x[:, dy:dy + stride * (ho - 1) + 1:stride,
                          dx:dx + stride * (wo - 1) + 1:stride, :])
    return jnp.concatenate(cols, axis=-1), ho, wo


def conv2d_pallas(x, p, *, stride=1, act="none", res=None):
    # x: (N,H,W,Cin) already spatially padded;  p["w"]: (kh,kw,Cin,Cout)
    kh, kw, cin, cout = p["w"].shape
    patches, ho, wo = _im2col(x, kh, kw, stride)
    nb = x.shape[0]
    xm = patches.reshape(nb * ho * wo, kh * kw * cin)
    wm = p["w"].reshape(kh * kw * cin, cout)
    rm = None if res is None else res.reshape(nb * ho * wo, cout)
    y = fused_matmul(xm, wm, p["scale"], p["bias"], res=rm, act=act)
    return y.reshape(nb, ho, wo, cout)


def conv_transpose2d_pallas(x, p, *, act="relu"):
    # ConvTranspose2d(k=3, s=2, pad=1, out_pad=1) == zero-dilate by 2,
    # pad (1,2)/(1,2), then a 3x3 stride-1 conv (weights stored in the
    # equivalent-conv HWIO layout).
    n, h, w, c = x.shape
    xd = jnp.zeros((n, 2 * h - 1, 2 * w - 1, c), x.dtype).at[:, ::2, ::2, :].set(x)
    xd = jnp.pad(xd, ((0, 0), (1, 2), (1, 2), (0, 0)))
    return conv2d_pallas(xd, p, stride=1, act=act)


# ----------------------------------------------------------------------------
# GlobalGenerator parameters (BN folded to per-channel scale/shift, inference)
# ----------------------------------------------------------------------------
# TODO(synk): BatchNorm2d training-mode batch statistics not implemented;
#             inference-folded (running-stat) BN is used instead.
def _make_conv(key, kh, kw, cin, cout, *, with_bn=True):
    ks = jax.random.split(key, 6)
    std = (2.0 / (kh * kw * cin)) ** 0.5
    w = jax.random.normal(ks[0], (kh, kw, cin, cout), jnp.float32) * std
    b = 0.01 * jax.random.normal(ks[1], (cout,), jnp.float32)
    if with_bn:
        gamma = 1.0 + 0.1 * jax.random.normal(ks[2], (cout,), jnp.float32)
        beta = 0.1 * jax.random.normal(ks[3], (cout,), jnp.float32)
        mean = 0.1 * jax.random.normal(ks[4], (cout,), jnp.float32)
        var = 1.0 + 0.1 * jax.random.uniform(ks[5], (cout,), jnp.float32)
        scale = gamma / jnp.sqrt(var + 1e-5)
        bias = (b - mean) * scale + beta
    else:
        scale = jnp.ones((cout,), jnp.float32)
        bias = b
    return {"w": w, "scale": scale, "bias": bias}


def init_global_generator(key, input_nc, output_nc, ngf=64,
                          n_downsampling=3, n_blocks=9):
    nkeys = 2 + 2 * n_downsampling + 2 * n_blocks
    keys = iter(jax.random.split(key, nkeys))
    params = {"head": _make_conv(next(keys), 7, 7, input_nc, ngf)}
    params["down"] = []
    for i in range(n_downsampling):
        mult = 2 ** i
        params["down"].append(
            _make_conv(next(keys), 3, 3, ngf * mult, ngf * mult * 2))
    mult = 2 ** n_downsampling
    params["res"] = []
    for _ in range(n_blocks):
        c1 = _make_conv(next(keys), 3, 3, ngf * mult, ngf * mult)
        c2 = _make_conv(next(keys), 3, 3, ngf * mult, ngf * mult)
        params["res"].append((c1, c2))
    params["up"] = []
    for i in range(n_downsampling):
        mult = 2 ** (n_downsampling - i)
        params["up"].append(
            _make_conv(next(keys), 3, 3, ngf * mult, ngf * mult // 2))
    params["final"] = _make_conv(next(keys), 7, 7, ngf, output_nc,
                                 with_bn=False)
    return params


# ----------------------------------------------------------------------------
# Forward passes
# ----------------------------------------------------------------------------
def global_generator_forward(params, x_nchw):
    """Pallas forward: returns (model(x), feat(x)) in NCHW, like the module."""
    h = jnp.transpose(x_nchw, (0, 2, 3, 1))                     # NHWC
    h = conv2d_pallas(_reflect_pad(h, 3), params["head"], act="relu")
    for p in params["down"]:
        hp = jnp.pad(h, ((0, 0), (1, 1), (1, 1), (0, 0)))
        h = conv2d_pallas(hp, p, stride=2, act="relu")
    for c1, c2 in params["res"]:
        t = conv2d_pallas(_reflect_pad(h, 1), c1, act="relu")
        h = conv2d_pallas(_reflect_pad(t, 1), c2, act="none", res=h)  # fused +x
    for p in params["up"]:
        h = conv_transpose2d_pallas(h, p, act="relu")
    feat = h
    out = conv2d_pallas(_reflect_pad(feat, 3), params["final"], act="tanh")
    return (jnp.transpose(out, (0, 3, 1, 2)),
            jnp.transpose(feat, (0, 3, 1, 2)))


def _conv_ref(x, p, *, stride=1, padding="VALID", lhs_dilation=None,
              act="none", res=None):
    y = lax.conv_general_dilated(
        x, p["w"], window_strides=(stride, stride), padding=padding,
        lhs_dilation=lhs_dilation,
        dimension_numbers=("NHWC", "HWIO", "NHWC"),
        precision=lax.Precision.HIGHEST)
    y = y * p["scale"].reshape(1, 1, 1, -1) + p["bias"].reshape(1, 1, 1, -1)
    if res is not None:
        y = y + res
    if act == "relu":
        y = jnp.maximum(y, 0.0)
    elif act == "tanh":
        y = jnp.tanh(y)
    return y


def global_generator_reference(params, x_nchw):
    """Pure-JAX (lax.conv) reference for validation."""
    h = jnp.transpose(x_nchw, (0, 2, 3, 1))
    h = _conv_ref(_reflect_pad(h, 3), params["head"], act="relu")
    for p in params["down"]:
        h = _conv_ref(h, p, stride=2, padding=((1, 1), (1, 1)), act="relu")
    for c1, c2 in params["res"]:
        t = _conv_ref(_reflect_pad(h, 1), c1, act="relu")
        h = _conv_ref(_reflect_pad(t, 1), c2, act="none", res=h)
    for p in params["up"]:
        h = _conv_ref(h, p, padding=((1, 2), (1, 2)), lhs_dilation=(2, 2),
                      act="relu")
    feat = h
    out = _conv_ref(_reflect_pad(feat, 3), params["final"], act="tanh")
    return (jnp.transpose(out, (0, 3, 1, 2)),
            jnp.transpose(feat, (0, 3, 1, 2)))


# ----------------------------------------------------------------------------
if __name__ == "__main__":
    key = jax.random.PRNGKey(0)
    kp, kx = jax.random.split(key)

    # Small config consistent with the module: input_nc=3, output_nc=3,
    # ngf=8, n_downsampling=2, n_blocks=2, input (2, 3, 16, 16).
    input_nc, output_nc, ngf, n_down, n_blocks = 3, 3, 8, 2, 2
    params = init_global_generator(kp, input_nc, output_nc, ngf=ngf,
                                   n_downsampling=n_down, n_blocks=n_blocks)
    x = jax.random.normal(kx, (2, input_nc, 16, 16), dtype=jnp.float32)

    fwd = jax.jit(global_generator_forward)
    out, feat = fwd(params, x)
    jax.block_until_ready((out, feat))

    ref_out, ref_feat = global_generator_reference(params, x)
    jax.block_until_ready((ref_out, ref_feat))

    assert out.shape == (2, output_nc, 16, 16) and feat.shape == (2, ngf, 16, 16)

    def _check(a, b, name):
        diff = float(jnp.max(jnp.abs(a - b)))
        scale = float(jnp.max(jnp.abs(b))) + 1e-6
        assert diff / scale < 1e-3, f"{name} mismatch: rel max diff {diff / scale}"

    _check(out, ref_out, "model output")
    _check(feat, ref_feat, "feat output")

    print("KERNEL_OK")
</pallas_src>

<mosaic_0001>
module attributes {stable_mosaic.version = 11 : i64} {
  func.func @_fused_matmul_kernel(%arg0: i32, %arg1: i32, %arg2: i32, %arg3: memref<128x256xf32, #tpu.memory_space<vmem>>, %arg4: memref<256x128xf32, #tpu.memory_space<vmem>>, %arg5: memref<1x128xf32, #tpu.memory_space<vmem>>, %arg6: memref<1x128xf32, #tpu.memory_space<vmem>>, %arg7: memref<128x128xf32, #tpu.memory_space<vmem>>, %arg8: memref<128x128xf32, #tpu.memory_space<vmem>>) attributes {dimension_semantics = [#tpu.dimension_semantics<parallel>, #tpu.dimension_semantics<parallel>, #tpu.dimension_semantics<arbitrary>], iteration_bounds = array<i64: 4, 1, 1>, scalar_prefetch = 0 : i64, scratch_operands = 1 : i64, tpu.core_type = #tpu.core_type<tc>, window_params = [{transform_indices = @transform_0, window_bounds = array<i64: 128, 256>}, {transform_indices = @transform_1, window_bounds = array<i64: 256, 128>}, {transform_indices = @transform_2, window_bounds = array<i64: 1, 128>}, {transform_indices = @transform_3, window_bounds = array<i64: 1, 128>}, {transform_indices = @transform_4, window_bounds = array<i64: 128, 128>}]} {
    %c0_i32 = arith.constant 0 : i32
    %0 = arith.cmpi eq, %arg2, %c0_i32 : i32
    %1 = arith.extui %0 : i1 to i32
    %c0_i32_0 = arith.constant 0 : i32
    %2 = arith.cmpi ne, %1, %c0_i32_0 : i32
    scf.if %2 {
      %cst_10 = arith.constant 0.000000e+00 : f32
      %12 = vector.broadcast %cst_10 : f32 to vector<128x128xf32>
      %c0_11 = arith.constant 0 : index
      %c0_12 = arith.constant 0 : index
      %13 = vector.load %arg8[%c0_11, %c0_12] : memref<128x128xf32, #tpu.memory_space<vmem>>, vector<128x128xf32>
      tpu.vector_store %arg8[%c0_11, %c0_12], %12 {strides = array<i32>} : memref<128x128xf32, #tpu.memory_space<vmem>>, vector<128x128xf32>,
    } else {
    }
    %c0 = arith.constant 0 : index
    %c0_1 = arith.constant 0 : index
    %3 = vector.load %arg8[%c0, %c0_1] : memref<128x128xf32, #tpu.memory_space<vmem>>, vector<128x128xf32>
    %c0_2 = arith.constant 0 : index
    %c0_3 = arith.constant 0 : index
    %4 = vector.load %arg3[%c0_2, %c0_3] : memref<128x256xf32, #tpu.memory_space<vmem>>, vector<128x256xf32>
    %c0_4 = arith.constant 0 : index
    %c0_5 = arith.constant 0 : index
    %5 = vector.load %arg4[%c0_4, %c0_5] : memref<256x128xf32, #tpu.memory_space<vmem>>, vector<256x128xf32>
    %cst = arith.constant dense<0.000000e+00> : vector<128x128xf32>
    %6 = tpu.matmul %4, %5, %cst {dimension_numbers = #tpu.dot_dimension_numbers<[1], [0], [0], [1], [0, 0, 1, 1], [], []>} : vector<128x256xf32>, vector<256x128xf32>, vector<128x128xf32> -> vector<128x128xf32>
    %7 = arith.addf %3, %6 : vector<128x128xf32>
    %c0_6 = arith.constant 0 : index
    %c0_7 = arith.constant 0 : index
    %8 = vector.load %arg8[%c0_6, %c0_7] : memref<128x128xf32, #tpu.memory_space<vmem>>, vector<128x128xf32>
    tpu.vector_store %arg8[%c0_6, %c0_7], %7 {strides = array<i32>} : memref<128x128xf32, #tpu.memory_space<vmem>>, vector<128x128xf32>,
    %c0_i32_8 = arith.constant 0 : i32
    %9 = arith.cmpi eq, %arg2, %c0_i32_8 : i32
    %10 = arith.extui %9 : i1 to i32
    %c0_i32_9 = arith.constant 0 : i32
    %11 = arith.cmpi ne, %10, %c0_i32_9 : i32
    scf.if %11 {
      %c0_10 = arith.constant 0 : index
      %c0_11 = arith.constant 0 : index
      %12 = vector.load %arg8[%c0_10, %c0_11] : memref<128x128xf32, #tpu.memory_space<vmem>>, vector<128x128xf32>
      %c0_12 = arith.constant 0 : index
      %c0_13 = arith.constant 0 : index
      %13 = vector.load %arg5[%c0_12, %c0_13] : memref<1x128xf32, #tpu.memory_space<vmem>>, vector<1x128xf32>
      %14 = vector.broadcast %13 : vector<1x128xf32> to vector<128x128xf32>
      %15 = arith.mulf %12, %14 : vector<128x128xf32>
      %c0_14 = arith.constant 0 : index
      %c0_15 = arith.constant 0 : index
      %16 = vector.load %arg6[%c0_14, %c0_15] : memref<1x128xf32, #tpu.memory_space<vmem>>, vector<1x128xf32>
      %17 = vector.broadcast %16 : vector<1x128xf32> to vector<128x128xf32>
      %18 = arith.addf %15, %17 : vector<128x128xf32>
      %cst_16 = arith.constant 0.000000e+00 : f32
      %19 = vector.broadcast %cst_16 : f32 to vector<128x128xf32>
      %20 = arith.maximumf %18, %19 : vector<128x128xf32>
      %c0_17 = arith.constant 0 : index
      %c0_18 = arith.constant 0 : index
      %21 = vector.load %arg7[%c0_17, %c0_18] : memref<128x128xf32, #tpu.memory_space<vmem>>, vector<128x128xf32>
      tpu.vector_store %arg7[%c0_17, %c0_18], %20 {strides = array<i32>} : memref<128x128xf32, #tpu.memory_space<vmem>>, vector<128x128xf32>,
    } else {
    }
    return
  }
  func.func @transform_0(%arg0: i32, %arg1: i32, %arg2: i32) -> (i32, i32) {
    %c0_i32 = arith.constant 0 : i32
    return %arg0, %arg2 : i32, i32
  }
  func.func @transform_1(%arg0: i32, %arg1: i32, %arg2: i32) -> (i32, i32) {
    %c0_i32 = arith.constant 0 : i32
    return %arg2, %arg1 : i32, i32
  }
  func.func @transform_2(%arg0: i32, %arg1: i32, %arg2: i32) -> (i32, i32) {
    %c0_i32 = arith.constant 0 : i32
    %c0_i32_0 = arith.constant 0 : i32
    return %c0_i32, %arg1 : i32, i32
  }
  func.func @transform_3(%arg0: i32, %arg1: i32, %arg2: i32) -> (i32, i32) {
    %c0_i32 = arith.constant 0 : i32
    %c0_i32_0 = arith.constant 0 : i32
    return %c0_i32, %arg1 : i32, i32
  }
  func.func @transform_4(%arg0: i32, %arg1: i32, %arg2: i32) -> (i32, i32) {
    %c0_i32 = arith.constant 0 : i32
    return %arg0, %arg1 : i32, i32
  }
}

module attributes {stable_mosaic.version = 11 : i64} {
  func.func @_fused_matmul_kernel(%arg0: i32, %arg1: i32, %arg2: i32, %arg3: memref<128x128xf32, #tpu.memory_space<vmem>>, %arg4: memref<128x128xf32, #tpu.memory_space<vmem>>, %arg5: memref<1x128xf32, #tpu.memory_space<vmem>>, %arg6: memref<1x128xf32, #tpu.memory_space<vmem>>, %arg7: memref<128x128xf32, #tpu.memory_space<vmem>>, %arg8: memref<128x128xf32, #tpu.memory_space<vmem>>) attributes {dimension_semantics = [#tpu.dimension_semantics<parallel>, #tpu.dimension_semantics<parallel>, #tpu.dimension_semantics<arbitrary>], iteration_bounds = array<i64: 1, 1, 1>, scalar_prefetch = 0 : i64, scratch_operands = 1 : i64, tpu.core_type = #tpu.core_type<tc>, window_params = [{transform_indices = @transform_0, window_bounds = array<i64: 128, 128>}, {transform_indices = @transform_1, window_bounds = array<i64: 128, 128>}, {transform_indices = @transform_2, window_bounds = array<i64: 1, 128>}, {transform_indices = @transform_3, window_bounds = array<i64: 1, 128>}, {transform_indices = @transform_4, window_bounds = array<i64: 128, 128>}]} {
    %c0_i32 = arith.constant 0 : i32
    %0 = arith.cmpi eq, %arg2, %c0_i32 : i32
    %1 = arith.extui %0 : i1 to i32
    %c0_i32_0 = arith.constant 0 : i32
    %2 = arith.cmpi ne, %1, %c0_i32_0 : i32
    scf.if %2 {
      %cst_10 = arith.constant 0.000000e+00 : f32
      %12 = vector.broadcast %cst_10 : f32 to vector<128x128xf32>
      %c0_11 = arith.constant 0 : index
      %c0_12 = arith.constant 0 : index
      %13 = vector.load %arg8[%c0_11, %c0_12] : memref<128x128xf32, #tpu.memory_space<vmem>>, vector<128x128xf32>
      tpu.vector_store %arg8[%c0_11, %c0_12], %12 {strides = array<i32>} : memref<128x128xf32, #tpu.memory_space<vmem>>, vector<128x128xf32>,
    } else {
    }
    %c0 = arith.constant 0 : index
    %c0_1 = arith.constant 0 : index
    %3 = vector.load %arg8[%c0, %c0_1] : memref<128x128xf32, #tpu.memory_space<vmem>>, vector<128x128xf32>
    %c0_2 = arith.constant 0 : index
    %c0_3 = arith.constant 0 : index
    %4 = vector.load %arg3[%c0_2, %c0_3] : memref<128x128xf32, #tpu.memory_space<vmem>>, vector<128x128xf32>
    %c0_4 = arith.constant 0 : index
    %c0_5 = arith.constant 0 : index
    %5 = vector.load %arg4[%c0_4, %c0_5] : memref<128x128xf32, #tpu.memory_space<vmem>>, vector<128x128xf32>
    %cst = arith.constant dense<0.000000e+00> : vector<128x128xf32>
    %6 = tpu.matmul %4, %5, %cst {dimension_numbers = #tpu.dot_dimension_numbers<[1], [0], [0], [1], [0, 0, 1, 1], [], []>} : vector<128x128xf32>, vector<128x128xf32>, vector<128x128xf32> -> vector<128x128xf32>
    %7 = arith.addf %3, %6 : vector<128x128xf32>
    %c0_6 = arith.constant 0 : index
    %c0_7 = arith.constant 0 : index
    %8 = vector.load %arg8[%c0_6, %c0_7] : memref<128x128xf32, #tpu.memory_space<vmem>>, vector<128x128xf32>
    tpu.vector_store %arg8[%c0_6, %c0_7], %7 {strides = array<i32>} : memref<128x128xf32, #tpu.memory_space<vmem>>, vector<128x128xf32>,
    %c0_i32_8 = arith.constant 0 : i32
    %9 = arith.cmpi eq, %arg2, %c0_i32_8 : i32
    %10 = arith.extui %9 : i1 to i32
    %c0_i32_9 = arith.constant 0 : i32
    %11 = arith.cmpi ne, %10, %c0_i32_9 : i32
    scf.if %11 {
      %c0_10 = arith.constant 0 : index
      %c0_11 = arith.constant 0 : index
      %12 = vector.load %arg8[%c0_10, %c0_11] : memref<128x128xf32, #tpu.memory_space<vmem>>, vector<128x128xf32>
      %c0_12 = arith.constant 0 : index
      %c0_13 = arith.constant 0 : index
      %13 = vector.load %arg5[%c0_12, %c0_13] : memref<1x128xf32, #tpu.memory_space<vmem>>, vector<1x128xf32>
      %14 = vector.broadcast %13 : vector<1x128xf32> to vector<128x128xf32>
      %15 = arith.mulf %12, %14 : vector<128x128xf32>
      %c0_14 = arith.constant 0 : index
      %c0_15 = arith.constant 0 : index
      %16 = vector.load %arg6[%c0_14, %c0_15] : memref<1x128xf32, #tpu.memory_space<vmem>>, vector<1x128xf32>
      %17 = vector.broadcast %16 : vector<1x128xf32> to vector<128x128xf32>
      %18 = arith.addf %15, %17 : vector<128x128xf32>
      %cst_16 = arith.constant 0.000000e+00 : f32
      %19 = vector.broadcast %cst_16 : f32 to vector<128x128xf32>
      %20 = arith.maximumf %18, %19 : vector<128x128xf32>
      %c0_17 = arith.constant 0 : index
      %c0_18 = arith.constant 0 : index
      %21 = vector.load %arg7[%c0_17, %c0_18] : memref<128x128xf32, #tpu.memory_space<vmem>>, vector<128x128xf32>
      tpu.vector_store %arg7[%c0_17, %c0_18], %20 {strides = array<i32>} : memref<128x128xf32, #tpu.memory_space<vmem>>, vector<128x128xf32>,
    } else {
    }
    return
  }
  func.func @transform_0(%arg0: i32, %arg1: i32, %arg2: i32) -> (i32, i32) {
    %c0_i32 = arith.constant 0 : i32
    return %arg0, %arg2 : i32, i32
  }
  func.func @transform_1(%arg0: i32, %arg1: i32, %arg2: i32) -> (i32, i32) {
    %c0_i32 = arith.constant 0 : i32
    return %arg2, %arg1 : i32, i32
  }
  func.func @transform_2(%arg0: i32, %arg1: i32, %arg2: i32) -> (i32, i32) {
    %c0_i32 = arith.constant 0 : i32
    %c0_i32_0 = arith.constant 0 : i32
    return %c0_i32, %arg1 : i32, i32
  }
  func.func @transform_3(%arg0: i32, %arg1: i32, %arg2: i32) -> (i32, i32) {
    %c0_i32 = arith.constant 0 : i32
    %c0_i32_0 = arith.constant 0 : i32
    return %c0_i32, %arg1 : i32, i32
  }
  func.func @transform_4(%arg0: i32, %arg1: i32, %arg2: i32) -> (i32, i32) {
    %c0_i32 = arith.constant 0 : i32
    return %arg0, %arg1 : i32, i32
  }
}

module attributes {stable_mosaic.version = 11 : i64} {
  func.func @_fused_matmul_kernel(%arg0: i32, %arg1: i32, %arg2: i32, %arg3: memref<32x256xf32, #tpu.memory_space<vmem>>, %arg4: memref<256x128xf32, #tpu.memory_space<vmem>>, %arg5: memref<1x128xf32, #tpu.memory_space<vmem>>, %arg6: memref<1x128xf32, #tpu.memory_space<vmem>>, %arg7: memref<32x128xf32, #tpu.memory_space<vmem>>, %arg8: memref<32x128xf32, #tpu.memory_space<vmem>>) attributes {dimension_semantics = [#tpu.dimension_semantics<parallel>, #tpu.dimension_semantics<parallel>, #tpu.dimension_semantics<arbitrary>], iteration_bounds = array<i64: 1, 1, 1>, scalar_prefetch = 0 : i64, scratch_operands = 1 : i64, tpu.core_type = #tpu.core_type<tc>, window_params = [{transform_indices = @transform_0, window_bounds = array<i64: 32, 256>}, {transform_indices = @transform_1, window_bounds = array<i64: 256, 128>}, {transform_indices = @transform_2, window_bounds = array<i64: 1, 128>}, {transform_indices = @transform_3, window_bounds = array<i64: 1, 128>}, {transform_indices = @transform_4, window_bounds = array<i64: 32, 128>}]} {
    %c0_i32 = arith.constant 0 : i32
    %0 = arith.cmpi eq, %arg2, %c0_i32 : i32
    %1 = arith.extui %0 : i1 to i32
    %c0_i32_0 = arith.constant 0 : i32
    %2 = arith.cmpi ne, %1, %c0_i32_0 : i32
    scf.if %2 {
      %cst_10 = arith.constant 0.000000e+00 : f32
      %12 = vector.broadcast %cst_10 : f32 to vector<32x128xf32>
      %c0_11 = arith.constant 0 : index
      %c0_12 = arith.constant 0 : index
      %13 = vector.load %arg8[%c0_11, %c0_12] : memref<32x128xf32, #tpu.memory_space<vmem>>, vector<32x128xf32>
      tpu.vector_store %arg8[%c0_11, %c0_12], %12 {strides = array<i32>} : memref<32x128xf32, #tpu.memory_space<vmem>>, vector<32x128xf32>,
    } else {
    }
    %c0 = arith.constant 0 : index
    %c0_1 = arith.constant 0 : index
    %3 = vector.load %arg8[%c0, %c0_1] : memref<32x128xf32, #tpu.memory_space<vmem>>, vector<32x128xf32>
    %c0_2 = arith.constant 0 : index
    %c0_3 = arith.constant 0 : index
    %4 = vector.load %arg3[%c0_2, %c0_3] : memref<32x256xf32, #tpu.memory_space<vmem>>, vector<32x256xf32>
    %c0_4 = arith.constant 0 : index
    %c0_5 = arith.constant 0 : index
    %5 = vector.load %arg4[%c0_4, %c0_5] : memref<256x128xf32, #tpu.memory_space<vmem>>, vector<256x128xf32>
    %cst = arith.constant dense<0.000000e+00> : vector<32x128xf32>
    %6 = tpu.matmul %4, %5, %cst {dimension_numbers = #tpu.dot_dimension_numbers<[1], [0], [0], [1], [0, 0, 1, 1], [], []>} : vector<32x256xf32>, vector<256x128xf32>, vector<32x128xf32> -> vector<32x128xf32>
    %7 = arith.addf %3, %6 : vector<32x128xf32>
    %c0_6 = arith.constant 0 : index
    %c0_7 = arith.constant 0 : index
    %8 = vector.load %arg8[%c0_6, %c0_7] : memref<32x128xf32, #tpu.memory_space<vmem>>, vector<32x128xf32>
    tpu.vector_store %arg8[%c0_6, %c0_7], %7 {strides = array<i32>} : memref<32x128xf32, #tpu.memory_space<vmem>>, vector<32x128xf32>,
    %c0_i32_8 = arith.constant 0 : i32
    %9 = arith.cmpi eq, %arg2, %c0_i32_8 : i32
    %10 = arith.extui %9 : i1 to i32
    %c0_i32_9 = arith.constant 0 : i32
    %11 = arith.cmpi ne, %10, %c0_i32_9 : i32
    scf.if %11 {
      %c0_10 = arith.constant 0 : index
      %c0_11 = arith.constant 0 : index
      %12 = vector.load %arg8[%c0_10, %c0_11] : memref<32x128xf32, #tpu.memory_space<vmem>>, vector<32x128xf32>
      %c0_12 = arith.constant 0 : index
      %c0_13 = arith.constant 0 : index
      %13 = vector.load %arg5[%c0_12, %c0_13] : memref<1x128xf32, #tpu.memory_space<vmem>>, vector<1x128xf32>
      %14 = vector.broadcast %13 : vector<1x128xf32> to vector<32x128xf32>
      %15 = arith.mulf %12, %14 : vector<32x128xf32>
      %c0_14 = arith.constant 0 : index
      %c0_15 = arith.constant 0 : index
      %16 = vector.load %arg6[%c0_14, %c0_15] : memref<1x128xf32, #tpu.memory_space<vmem>>, vector<1x128xf32>
      %17 = vector.broadcast %16 : vector<1x128xf32> to vector<32x128xf32>
      %18 = arith.addf %15, %17 : vector<32x128xf32>
      %cst_16 = arith.constant 0.000000e+00 : f32
      %19 = vector.broadcast %cst_16 : f32 to vector<32x128xf32>
      %20 = arith.maximumf %18, %19 : vector<32x128xf32>
      %c0_17 = arith.constant 0 : index
      %c0_18 = arith.constant 0 : index
      %21 = vector.load %arg7[%c0_17, %c0_18] : memref<32x128xf32, #tpu.memory_space<vmem>>, vector<32x128xf32>
      tpu.vector_store %arg7[%c0_17, %c0_18], %20 {strides = array<i32>} : memref<32x128xf32, #tpu.memory_space<vmem>>, vector<32x128xf32>,
    } else {
    }
    return
  }
  func.func @transform_0(%arg0: i32, %arg1: i32, %arg2: i32) -> (i32, i32) {
    %c0_i32 = arith.constant 0 : i32
    return %arg0, %arg2 : i32, i32
  }
  func.func @transform_1(%arg0: i32, %arg1: i32, %arg2: i32) -> (i32, i32) {
    %c0_i32 = arith.constant 0 : i32
    return %arg2, %arg1 : i32, i32
  }
  func.func @transform_2(%arg0: i32, %arg1: i32, %arg2: i32) -> (i32, i32) {
    %c0_i32 = arith.constant 0 : i32
    %c0_i32_0 = arith.constant 0 : i32
    return %c0_i32, %arg1 : i32, i32
  }
  func.func @transform_3(%arg0: i32, %arg1: i32, %arg2: i32) -> (i32, i32) {
    %c0_i32 = arith.constant 0 : i32
    %c0_i32_0 = arith.constant 0 : i32
    return %c0_i32, %arg1 : i32, i32
  }
  func.func @transform_4(%arg0: i32, %arg1: i32, %arg2: i32) -> (i32, i32) {
    %c0_i32 = arith.constant 0 : i32
    return %arg0, %arg1 : i32, i32
  }
}

module attributes {stable_mosaic.version = 11 : i64} {
  func.func @_fused_matmul_kernel(%arg0: i32, %arg1: i32, %arg2: i32, %arg3: memref<32x384xf32, #tpu.memory_space<vmem>>, %arg4: memref<384x128xf32, #tpu.memory_space<vmem>>, %arg5: memref<1x128xf32, #tpu.memory_space<vmem>>, %arg6: memref<1x128xf32, #tpu.memory_space<vmem>>, %arg7: memref<32x128xf32, #tpu.memory_space<vmem>>, %arg8: memref<32x128xf32, #tpu.memory_space<vmem>>) attributes {dimension_semantics = [#tpu.dimension_semantics<parallel>, #tpu.dimension_semantics<parallel>, #tpu.dimension_semantics<arbitrary>], iteration_bounds = array<i64: 1, 1, 1>, scalar_prefetch = 0 : i64, scratch_operands = 1 : i64, tpu.core_type = #tpu.core_type<tc>, window_params = [{transform_indices = @transform_0, window_bounds = array<i64: 32, 384>}, {transform_indices = @transform_1, window_bounds = array<i64: 384, 128>}, {transform_indices = @transform_2, window_bounds = array<i64: 1, 128>}, {transform_indices = @transform_3, window_bounds = array<i64: 1, 128>}, {transform_indices = @transform_4, window_bounds = array<i64: 32, 128>}]} {
    %c0_i32 = arith.constant 0 : i32
    %0 = arith.cmpi eq, %arg2, %c0_i32 : i32
    %1 = arith.extui %0 : i1 to i32
    %c0_i32_0 = arith.constant 0 : i32
    %2 = arith.cmpi ne, %1, %c0_i32_0 : i32
    scf.if %2 {
      %cst_10 = arith.constant 0.000000e+00 : f32
      %12 = vector.broadcast %cst_10 : f32 to vector<32x128xf32>
      %c0_11 = arith.constant 0 : index
      %c0_12 = arith.constant 0 : index
      %13 = vector.load %arg8[%c0_11, %c0_12] : memref<32x128xf32, #tpu.memory_space<vmem>>, vector<32x128xf32>
      tpu.vector_store %arg8[%c0_11, %c0_12], %12 {strides = array<i32>} : memref<32x128xf32, #tpu.memory_space<vmem>>, vector<32x128xf32>,
    } else {
    }
    %c0 = arith.constant 0 : index
    %c0_1 = arith.constant 0 : index
    %3 = vector.load %arg8[%c0, %c0_1] : memref<32x128xf32, #tpu.memory_space<vmem>>, vector<32x128xf32>
    %c0_2 = arith.constant 0 : index
    %c0_3 = arith.constant 0 : index
    %4 = vector.load %arg3[%c0_2, %c0_3] : memref<32x384xf32, #tpu.memory_space<vmem>>, vector<32x384xf32>
    %c0_4 = arith.constant 0 : index
    %c0_5 = arith.constant 0 : index
    %5 = vector.load %arg4[%c0_4, %c0_5] : memref<384x128xf32, #tpu.memory_space<vmem>>, vector<384x128xf32>
    %cst = arith.constant dense<0.000000e+00> : vector<32x128xf32>
    %6 = tpu.matmul %4, %5, %cst {dimension_numbers = #tpu.dot_dimension_numbers<[1], [0], [0], [1], [0, 0, 1, 1], [], []>} : vector<32x384xf32>, vector<384x128xf32>, vector<32x128xf32> -> vector<32x128xf32>
    %7 = arith.addf %3, %6 : vector<32x128xf32>
    %c0_6 = arith.constant 0 : index
    %c0_7 = arith.constant 0 : index
    %8 = vector.load %arg8[%c0_6, %c0_7] : memref<32x128xf32, #tpu.memory_space<vmem>>, vector<32x128xf32>
    tpu.vector_store %arg8[%c0_6, %c0_7], %7 {strides = array<i32>} : memref<32x128xf32, #tpu.memory_space<vmem>>, vector<32x128xf32>,
    %c0_i32_8 = arith.constant 0 : i32
    %9 = arith.cmpi eq, %arg2, %c0_i32_8 : i32
    %10 = arith.extui %9 : i1 to i32
    %c0_i32_9 = arith.constant 0 : i32
    %11 = arith.cmpi ne, %10, %c0_i32_9 : i32
    scf.if %11 {
      %c0_10 = arith.constant 0 : index
      %c0_11 = arith.constant 0 : index
      %12 = vector.load %arg8[%c0_10, %c0_11] : memref<32x128xf32, #tpu.memory_space<vmem>>, vector<32x128xf32>
      %c0_12 = arith.constant 0 : index
      %c0_13 = arith.constant 0 : index
      %13 = vector.load %arg5[%c0_12, %c0_13] : memref<1x128xf32, #tpu.memory_space<vmem>>, vector<1x128xf32>
      %14 = vector.broadcast %13 : vector<1x128xf32> to vector<32x128xf32>
      %15 = arith.mulf %12, %14 : vector<32x128xf32>
      %c0_14 = arith.constant 0 : index
      %c0_15 = arith.constant 0 : index
      %16 = vector.load %arg6[%c0_14, %c0_15] : memref<1x128xf32, #tpu.memory_space<vmem>>, vector<1x128xf32>
      %17 = vector.broadcast %16 : vector<1x128xf32> to vector<32x128xf32>
      %18 = arith.addf %15, %17 : vector<32x128xf32>
      %cst_16 = arith.constant 0.000000e+00 : f32
      %19 = vector.broadcast %cst_16 : f32 to vector<32x128xf32>
      %20 = arith.maximumf %18, %19 : vector<32x128xf32>
      %c0_17 = arith.constant 0 : index
      %c0_18 = arith.constant 0 : index
      %21 = vector.load %arg7[%c0_17, %c0_18] : memref<32x128xf32, #tpu.memory_space<vmem>>, vector<32x128xf32>
      tpu.vector_store %arg7[%c0_17, %c0_18], %20 {strides = array<i32>} : memref<32x128xf32, #tpu.memory_space<vmem>>, vector<32x128xf32>,
    } else {
    }
    return
  }
  func.func @transform_0(%arg0: i32, %arg1: i32, %arg2: i32) -> (i32, i32) {
    %c0_i32 = arith.constant 0 : i32
    return %arg0, %arg2 : i32, i32
  }
  func.func @transform_1(%arg0: i32, %arg1: i32, %arg2: i32) -> (i32, i32) {
    %c0_i32 = arith.constant 0 : i32
    return %arg2, %arg1 : i32, i32
  }
  func.func @transform_2(%arg0: i32, %arg1: i32, %arg2: i32) -> (i32, i32) {
    %c0_i32 = arith.constant 0 : i32
    %c0_i32_0 = arith.constant 0 : i32
    return %c0_i32, %arg1 : i32, i32
  }
  func.func @transform_3(%arg0: i32, %arg1: i32, %arg2: i32) -> (i32, i32) {
    %c0_i32 = arith.constant 0 : i32
    %c0_i32_0 = arith.constant 0 : i32
    return %c0_i32, %arg1 : i32, i32
  }
  func.func @transform_4(%arg0: i32, %arg1: i32, %arg2: i32) -> (i32, i32) {
    %c0_i32 = arith.constant 0 : i32
    return %arg0, %arg1 : i32, i32
  }
}

module attributes {stable_mosaic.version = 11 : i64} {
  func.func @_fused_matmul_kernel(%arg0: i32, %arg1: i32, %arg2: i32, %arg3: memref<32x384xf32, #tpu.memory_space<vmem>>, %arg4: memref<384x128xf32, #tpu.memory_space<vmem>>, %arg5: memref<1x128xf32, #tpu.memory_space<vmem>>, %arg6: memref<1x128xf32, #tpu.memory_space<vmem>>, %arg7: memref<32x128xf32, #tpu.memory_space<vmem>>, %arg8: memref<32x128xf32, #tpu.memory_space<vmem>>, %arg9: memref<32x128xf32, #tpu.memory_space<vmem>>) attributes {dimension_semantics = [#tpu.dimension_semantics<parallel>, #tpu.dimension_semantics<parallel>, #tpu.dimension_semantics<arbitrary>], iteration_bounds = array<i64: 1, 1, 1>, scalar_prefetch = 0 : i64, scratch_operands = 1 : i64, tpu.core_type = #tpu.core_type<tc>, window_params = [{transform_indices = @transform_0, window_bounds = array<i64: 32, 384>}, {transform_indices = @transform_1, window_bounds = array<i64: 384, 128>}, {transform_indices = @transform_2, window_bounds = array<i64: 1, 128>}, {transform_indices = @transform_3, window_bounds = array<i64: 1, 128>}, {transform_indices = @transform_4, window_bounds = array<i64: 32, 128>}, {transform_indices = @transform_5, window_bounds = array<i64: 32, 128>}]} {
    %c0_i32 = arith.constant 0 : i32
    %0 = arith.cmpi eq, %arg2, %c0_i32 : i32
    %1 = arith.extui %0 : i1 to i32
    %c0_i32_0 = arith.constant 0 : i32
    %2 = arith.cmpi ne, %1, %c0_i32_0 : i32
    scf.if %2 {
      %cst_10 = arith.constant 0.000000e+00 : f32
      %12 = vector.broadcast %cst_10 : f32 to vector<32x128xf32>
      %c0_11 = arith.constant 0 : index
      %c0_12 = arith.constant 0 : index
      %13 = vector.load %arg9[%c0_11, %c0_12] : memref<32x128xf32, #tpu.memory_space<vmem>>, vector<32x128xf32>
      tpu.vector_store %arg9[%c0_11, %c0_12], %12 {strides = array<i32>} : memref<32x128xf32, #tpu.memory_space<vmem>>, vector<32x128xf32>,
    } else {
    }
    %c0 = arith.constant 0 : index
    %c0_1 = arith.constant 0 : index
    %3 = vector.load %arg9[%c0, %c0_1] : memref<32x128xf32, #tpu.memory_space<vmem>>, vector<32x128xf32>
    %c0_2 = arith.constant 0 : index
    %c0_3 = arith.constant 0 : index
    %4 = vector.load %arg3[%c0_2, %c0_3] : memref<32x384xf32, #tpu.memory_space<vmem>>, vector<32x384xf32>
    %c0_4 = arith.constant 0 : index
    %c0_5 = arith.constant 0 : index
    %5 = vector.load %arg4[%c0_4, %c0_5] : memref<384x128xf32, #tpu.memory_space<vmem>>, vector<384x128xf32>
    %cst = arith.constant dense<0.000000e+00> : vector<32x128xf32>
    %6 = tpu.matmul %4, %5, %cst {dimension_numbers = #tpu.dot_dimension_numbers<[1], [0], [0], [1], [0, 0, 1, 1], [], []>} : vector<32x384xf32>, vector<384x128xf32>, vector<32x128xf32> -> vector<32x128xf32>
    %7 = arith.addf %3, %6 : vector<32x128xf32>
    %c0_6 = arith.constant 0 : index
    %c0_7 = arith.constant 0 : index
    %8 = vector.load %arg9[%c0_6, %c0_7] : memref<32x128xf32, #tpu.memory_space<vmem>>, vector<32x128xf32>
    tpu.vector_store %arg9[%c0_6, %c0_7], %7 {strides = array<i32>} : memref<32x128xf32, #tpu.memory_space<vmem>>, vector<32x128xf32>,
    %c0_i32_8 = arith.constant 0 : i32
    %9 = arith.cmpi eq, %arg2, %c0_i32_8 : i32
    %10 = arith.extui %9 : i1 to i32
    %c0_i32_9 = arith.constant 0 : i32
    %11 = arith.cmpi ne, %10, %c0_i32_9 : i32
    scf.if %11 {
      %c0_10 = arith.constant 0 : index
      %c0_11 = arith.constant 0 : index
      %12 = vector.load %arg9[%c0_10, %c0_11] : memref<32x128xf32, #tpu.memory_space<vmem>>, vector<32x128xf32>
      %c0_12 = arith.constant 0 : index
      %c0_13 = arith.constant 0 : index
      %13 = vector.load %arg5[%c0_12, %c0_13] : memref<1x128xf32, #tpu.memory_space<vmem>>, vector<1x128xf32>
      %14 = vector.broadcast %13 : vector<1x128xf32> to vector<32x128xf32>
      %15 = arith.mulf %12, %14 : vector<32x128xf32>
      %c0_14 = arith.constant 0 : index
      %c0_15 = arith.constant 0 : index
      %16 = vector.load %arg6[%c0_14, %c0_15] : memref<1x128xf32, #tpu.memory_space<vmem>>, vector<1x128xf32>
      %17 = vector.broadcast %16 : vector<1x128xf32> to vector<32x128xf32>
      %18 = arith.addf %15, %17 : vector<32x128xf32>
      %c0_16 = arith.constant 0 : index
      %c0_17 = arith.constant 0 : index
      %19 = vector.load %arg7[%c0_16, %c0_17] : memref<32x128xf32, #tpu.memory_space<vmem>>, vector<32x128xf32>
      %20 = arith.addf %18, %19 : vector<32x128xf32>
      %c0_18 = arith.constant 0 : index
      %c0_19 = arith.constant 0 : index
      %21 = vector.load %arg8[%c0_18, %c0_19] : memref<32x128xf32, #tpu.memory_space<vmem>>, vector<32x128xf32>
      tpu.vector_store %arg8[%c0_18, %c0_19], %20 {strides = array<i32>} : memref<32x128xf32, #tpu.memory_space<vmem>>, vector<32x128xf32>,
    } else {
    }
    return
  }
  func.func @transform_0(%arg0: i32, %arg1: i32, %arg2: i32) -> (i32, i32) {
    %c0_i32 = arith.constant 0 : i32
    return %arg0, %arg2 : i32, i32
  }
  func.func @transform_1(%arg0: i32, %arg1: i32, %arg2: i32) -> (i32, i32) {
    %c0_i32 = arith.constant 0 : i32
    return %arg2, %arg1 : i32, i32
  }
  func.func @transform_2(%arg0: i32, %arg1: i32, %arg2: i32) -> (i32, i32) {
    %c0_i32 = arith.constant 0 : i32
    %c0_i32_0 = arith.constant 0 : i32
    return %c0_i32, %arg1 : i32, i32
  }
  func.func @transform_3(%arg0: i32, %arg1: i32, %arg2: i32) -> (i32, i32) {
    %c0_i32 = arith.constant 0 : i32
    %c0_i32_0 = arith.constant 0 : i32
    return %c0_i32, %arg1 : i32, i32
  }
  func.func @transform_4(%arg0: i32, %arg1: i32, %arg2: i32) -> (i32, i32) {
    %c0_i32 = arith.constant 0 : i32
    return %arg0, %arg1 : i32, i32
  }
  func.func @transform_5(%arg0: i32, %arg1: i32, %arg2: i32) -> (i32, i32) {
    %c0_i32 = arith.constant 0 : i32
    return %arg0, %arg1 : i32, i32
  }
}

module attributes {stable_mosaic.version = 11 : i64} {
  func.func @_fused_matmul_kernel(%arg0: i32, %arg1: i32, %arg2: i32, %arg3: memref<128x384xf32, #tpu.memory_space<vmem>>, %arg4: memref<384x128xf32, #tpu.memory_space<vmem>>, %arg5: memref<1x128xf32, #tpu.memory_space<vmem>>, %arg6: memref<1x128xf32, #tpu.memory_space<vmem>>, %arg7: memref<128x128xf32, #tpu.memory_space<vmem>>, %arg8: memref<128x128xf32, #tpu.memory_space<vmem>>) attributes {dimension_semantics = [#tpu.dimension_semantics<parallel>, #tpu.dimension_semantics<parallel>, #tpu.dimension_semantics<arbitrary>], iteration_bounds = array<i64: 1, 1, 1>, scalar_prefetch = 0 : i64, scratch_operands = 1 : i64, tpu.core_type = #tpu.core_type<tc>, window_params = [{transform_indices = @transform_0, window_bounds = array<i64: 128, 384>}, {transform_indices = @transform_1, window_bounds = array<i64: 384, 128>}, {transform_indices = @transform_2, window_bounds = array<i64: 1, 128>}, {transform_indices = @transform_3, window_bounds = array<i64: 1, 128>}, {transform_indices = @transform_4, window_bounds = array<i64: 128, 128>}]} {
    %c0_i32 = arith.constant 0 : i32
    %0 = arith.cmpi eq, %arg2, %c0_i32 : i32
    %1 = arith.extui %0 : i1 to i32
    %c0_i32_0 = arith.constant 0 : i32
    %2 = arith.cmpi ne, %1, %c0_i32_0 : i32
    scf.if %2 {
      %cst_10 = arith.constant 0.000000e+00 : f32
      %12 = vector.broadcast %cst_10 : f32 to vector<128x128xf32>
      %c0_11 = arith.constant 0 : index
      %c0_12 = arith.constant 0 : index
      %13 = vector.load %arg8[%c0_11, %c0_12] : memref<128x128xf32, #tpu.memory_space<vmem>>, vector<128x128xf32>
      tpu.vector_store %arg8[%c0_11, %c0_12], %12 {strides = array<i32>} : memref<128x128xf32, #tpu.memory_space<vmem>>, vector<128x128xf32>,
    } else {
    }
    %c0 = arith.constant 0 : index
    %c0_1 = arith.constant 0 : index
    %3 = vector.load %arg8[%c0, %c0_1] : memref<128x128xf32, #tpu.memory_space<vmem>>, vector<128x128xf32>
    %c0_2 = arith.constant 0 : index
    %c0_3 = arith.constant 0 : index
    %4 = vector.load %arg3[%c0_2, %c0_3] : memref<128x384xf32, #tpu.memory_space<vmem>>, vector<128x384xf32>
    %c0_4 = arith.constant 0 : index
    %c0_5 = arith.constant 0 : index
    %5 = vector.load %arg4[%c0_4, %c0_5] : memref<384x128xf32, #tpu.memory_space<vmem>>, vector<384x128xf32>
    %cst = arith.constant dense<0.000000e+00> : vector<128x128xf32>
    %6 = tpu.matmul %4, %5, %cst {dimension_numbers = #tpu.dot_dimension_numbers<[1], [0], [0], [1], [0, 0, 1, 1], [], []>} : vector<128x384xf32>, vector<384x128xf32>, vector<128x128xf32> -> vector<128x128xf32>
    %7 = arith.addf %3, %6 : vector<128x128xf32>
    %c0_6 = arith.constant 0 : index
    %c0_7 = arith.constant 0 : index
    %8 = vector.load %arg8[%c0_6, %c0_7] : memref<128x128xf32, #tpu.memory_space<vmem>>, vector<128x128xf32>
    tpu.vector_store %arg8[%c0_6, %c0_7], %7 {strides = array<i32>} : memref<128x128xf32, #tpu.memory_space<vmem>>, vector<128x128xf32>,
    %c0_i32_8 = arith.constant 0 : i32
    %9 = arith.cmpi eq, %arg2, %c0_i32_8 : i32
    %10 = arith.extui %9 : i1 to i32
    %c0_i32_9 = arith.constant 0 : i32
    %11 = arith.cmpi ne, %10, %c0_i32_9 : i32
    scf.if %11 {
      %c0_10 = arith.constant 0 : index
      %c0_11 = arith.constant 0 : index
      %12 = vector.load %arg8[%c0_10, %c0_11] : memref<128x128xf32, #tpu.memory_space<vmem>>, vector<128x128xf32>
      %c0_12 = arith.constant 0 : index
      %c0_13 = arith.constant 0 : index
      %13 = vector.load %arg5[%c0_12, %c0_13] : memref<1x128xf32, #tpu.memory_space<vmem>>, vector<1x128xf32>
      %14 = vector.broadcast %13 : vector<1x128xf32> to vector<128x128xf32>
      %15 = arith.mulf %12, %14 : vector<128x128xf32>
      %c0_14 = arith.constant 0 : index
      %c0_15 = arith.constant 0 : index
      %16 = vector.load %arg6[%c0_14, %c0_15] : memref<1x128xf32, #tpu.memory_space<vmem>>, vector<1x128xf32>
      %17 = vector.broadcast %16 : vector<1x128xf32> to vector<128x128xf32>
      %18 = arith.addf %15, %17 : vector<128x128xf32>
      %cst_16 = arith.constant 0.000000e+00 : f32
      %19 = vector.broadcast %cst_16 : f32 to vector<128x128xf32>
      %20 = arith.maximumf %18, %19 : vector<128x128xf32>
      %c0_17 = arith.constant 0 : index
      %c0_18 = arith.constant 0 : index
      %21 = vector.load %arg7[%c0_17, %c0_18] : memref<128x128xf32, #tpu.memory_space<vmem>>, vector<128x128xf32>
      tpu.vector_store %arg7[%c0_17, %c0_18], %20 {strides = array<i32>} : memref<128x128xf32, #tpu.memory_space<vmem>>, vector<128x128xf32>,
    } else {
    }
    return
  }
  func.func @transform_0(%arg0: i32, %arg1: i32, %arg2: i32) -> (i32, i32) {
    %c0_i32 = arith.constant 0 : i32
    return %arg0, %arg2 : i32, i32
  }
  func.func @transform_1(%arg0: i32, %arg1: i32, %arg2: i32) -> (i32, i32) {
    %c0_i32 = arith.constant 0 : i32
    return %arg2, %arg1 : i32, i32
  }
  func.func @transform_2(%arg0: i32, %arg1: i32, %arg2: i32) -> (i32, i32) {
    %c0_i32 = arith.constant 0 : i32
    %c0_i32_0 = arith.constant 0 : i32
    return %c0_i32, %arg1 : i32, i32
  }
  func.func @transform_3(%arg0: i32, %arg1: i32, %arg2: i32) -> (i32, i32) {
    %c0_i32 = arith.constant 0 : i32
    %c0_i32_0 = arith.constant 0 : i32
    return %c0_i32, %arg1 : i32, i32
  }
  func.func @transform_4(%arg0: i32, %arg1: i32, %arg2: i32) -> (i32, i32) {
    %c0_i32 = arith.constant 0 : i32
    return %arg0, %arg1 : i32, i32
  }
}

module attributes {stable_mosaic.version = 11 : i64} {
  func.func @_fused_matmul_kernel(%arg0: i32, %arg1: i32, %arg2: i32, %arg3: memref<128x512xf32, #tpu.memory_space<vmem>>, %arg4: memref<512x128xf32, #tpu.memory_space<vmem>>, %arg5: memref<1x128xf32, #tpu.memory_space<vmem>>, %arg6: memref<1x128xf32, #tpu.memory_space<vmem>>, %arg7: memref<128x128xf32, #tpu.memory_space<vmem>>, %arg8: memref<128x128xf32, #tpu.memory_space<vmem>>) attributes {dimension_semantics = [#tpu.dimension_semantics<parallel>, #tpu.dimension_semantics<parallel>, #tpu.dimension_semantics<arbitrary>], iteration_bounds = array<i64: 4, 1, 1>, scalar_prefetch = 0 : i64, scratch_operands = 1 : i64, tpu.core_type = #tpu.core_type<tc>, window_params = [{transform_indices = @transform_0, window_bounds = array<i64: 128, 512>}, {transform_indices = @transform_1, window_bounds = array<i64: 512, 128>}, {transform_indices = @transform_2, window_bounds = array<i64: 1, 128>}, {transform_indices = @transform_3, window_bounds = array<i64: 1, 128>}, {transform_indices = @transform_4, window_bounds = array<i64: 128, 128>}]} {
    %c0_i32 = arith.constant 0 : i32
    %0 = arith.cmpi eq, %arg2, %c0_i32 : i32
    %1 = arith.extui %0 : i1 to i32
    %c0_i32_0 = arith.constant 0 : i32
    %2 = arith.cmpi ne, %1, %c0_i32_0 : i32
    scf.if %2 {
      %cst_10 = arith.constant 0.000000e+00 : f32
      %12 = vector.broadcast %cst_10 : f32 to vector<128x128xf32>
      %c0_11 = arith.constant 0 : index
      %c0_12 = arith.constant 0 : index
      %13 = vector.load %arg8[%c0_11, %c0_12] : memref<128x128xf32, #tpu.memory_space<vmem>>, vector<128x128xf32>
      tpu.vector_store %arg8[%c0_11, %c0_12], %12 {strides = array<i32>} : memref<128x128xf32, #tpu.memory_space<vmem>>, vector<128x128xf32>,
    } else {
    }
    %c0 = arith.constant 0 : index
    %c0_1 = arith.constant 0 : index
    %3 = vector.load %arg8[%c0, %c0_1] : memref<128x128xf32, #tpu.memory_space<vmem>>, vector<128x128xf32>
    %c0_2 = arith.constant 0 : index
    %c0_3 = arith.constant 0 : index
    %4 = vector.load %arg3[%c0_2, %c0_3] : memref<128x512xf32, #tpu.memory_space<vmem>>, vector<128x512xf32>
    %c0_4 = arith.constant 0 : index
    %c0_5 = arith.constant 0 : index
    %5 = vector.load %arg4[%c0_4, %c0_5] : memref<512x128xf32, #tpu.memory_space<vmem>>, vector<512x128xf32>
    %cst = arith.constant dense<0.000000e+00> : vector<128x128xf32>
    %6 = tpu.matmul %4, %5, %cst {dimension_numbers = #tpu.dot_dimension_numbers<[1], [0], [0], [1], [0, 0, 1, 1], [], []>} : vector<128x512xf32>, vector<512x128xf32>, vector<128x128xf32> -> vector<128x128xf32>
    %7 = arith.addf %3, %6 : vector<128x128xf32>
    %c0_6 = arith.constant 0 : index
    %c0_7 = arith.constant 0 : index
    %8 = vector.load %arg8[%c0_6, %c0_7] : memref<128x128xf32, #tpu.memory_space<vmem>>, vector<128x128xf32>
    tpu.vector_store %arg8[%c0_6, %c0_7], %7 {strides = array<i32>} : memref<128x128xf32, #tpu.memory_space<vmem>>, vector<128x128xf32>,
    %c0_i32_8 = arith.constant 0 : i32
    %9 = arith.cmpi eq, %arg2, %c0_i32_8 : i32
    %10 = arith.extui %9 : i1 to i32
    %c0_i32_9 = arith.constant 0 : i32
    %11 = arith.cmpi ne, %10, %c0_i32_9 : i32
    scf.if %11 {
      %c0_10 = arith.constant 0 : index
      %c0_11 = arith.constant 0 : index
      %12 = vector.load %arg8[%c0_10, %c0_11] : memref<128x128xf32, #tpu.memory_space<vmem>>, vector<128x128xf32>
      %c0_12 = arith.constant 0 : index
      %c0_13 = arith.constant 0 : index
      %13 = vector.load %arg5[%c0_12, %c0_13] : memref<1x128xf32, #tpu.memory_space<vmem>>, vector<1x128xf32>
      %14 = vector.broadcast %13 : vector<1x128xf32> to vector<128x128xf32>
      %15 = arith.mulf %12, %14 : vector<128x128xf32>
      %c0_14 = arith.constant 0 : index
      %c0_15 = arith.constant 0 : index
      %16 = vector.load %arg6[%c0_14, %c0_15] : memref<1x128xf32, #tpu.memory_space<vmem>>, vector<1x128xf32>
      %17 = vector.broadcast %16 : vector<1x128xf32> to vector<128x128xf32>
      %18 = arith.addf %15, %17 : vector<128x128xf32>
      %19 = math.tanh %18 : vector<128x128xf32>
      %c0_16 = arith.constant 0 : index
      %c0_17 = arith.constant 0 : index
      %20 = vector.load %arg7[%c0_16, %c0_17] : memref<128x128xf32, #tpu.memory_space<vmem>>, vector<128x128xf32>
      tpu.vector_store %arg7[%c0_16, %c0_17], %19 {strides = array<i32>} : memref<128x128xf32, #tpu.memory_space<vmem>>, vector<128x128xf32>,
    } else {
    }
    return
  }
  func.func @transform_0(%arg0: i32, %arg1: i32, %arg2: i32) -> (i32, i32) {
    %c0_i32 = arith.constant 0 : i32
    return %arg0, %arg2 : i32, i32
  }
  func.func @transform_1(%arg0: i32, %arg1: i32, %arg2: i32) -> (i32, i32) {
    %c0_i32 = arith.constant 0 : i32
    return %arg2, %arg1 : i32, i32
  }
  func.func @transform_2(%arg0: i32, %arg1: i32, %arg2: i32) -> (i32, i32) {
    %c0_i32 = arith.constant 0 : i32
    %c0_i32_0 = arith.constant 0 : i32
    return %c0_i32, %arg1 : i32, i32
  }
  func.func @transform_3(%arg0: i32, %arg1: i32, %arg2: i32) -> (i32, i32) {
    %c0_i32 = arith.constant 0 : i32
    %c0_i32_0 = arith.constant 0 : i32
    return %c0_i32, %arg1 : i32, i32
  }
  func.func @transform_4(%arg0: i32, %arg1: i32, %arg2: i32) -> (i32, i32) {
    %c0_i32 = arith.constant 0 : i32
    return %arg0, %arg1 : i32, i32
  }
}

</mosaic_0001>

<llo_original>
// kernel: global_generator_forward.10
$region0: #{global_generator_forward.10}
  #allocation0 [shape = 'u32[]', space=smem, size = 0x4, offset = 0x4, fixed_abs, tag = 'smem constant byte address 0x4 - core index']
  #allocation1 [shape = 'u32[144,128]{1,0:T(1,128)}', space=vmem, size = 0x12000, scoped, tag = 'internal scratch']
  #allocation2 [shape = 'f32[128,128]{1,0:T(8,128)}', space=vmem, size = 0x10000, scoped, tag = 'scratch operand']
  %s0 = inlined_call_operand.vmem [shape: f32[512,256], index: 0, kind: input, shape index: {}]
  %s1 = inlined_call_operand.vmem [shape: f32[256,128], index: 1, kind: input, shape index: {}]
  %s2 = inlined_call_operand.vmem [shape: f32[1,128], index: 2, kind: input, shape index: {}]
  %s3 = inlined_call_operand.vmem [shape: f32[1,128], index: 3, kind: input, shape index: {}]
  %s4 = inlined_call_operand.vmem [shape: f32[512,128], index: 4, kind: output, shape index: {}]
  %s5 = sld [smem:[#allocation0]]
  $region57: #{global_generator_forward.10} parent=0
    _
  %s7 = ssub.s32 1, %s5
  %s8 = scalar_select 0, %s7, %s5
  loop: start=0, step=1, limit=6
  $region2: #{global_generator_forward.10} parent=0 // loop_pre_header
    _
  $region3: #{global_generator_forward.10} parent=0 // loop_header
    %s10 = sphi 0, %s14
    %p11 = scmp.ge.s32.totalorder %s10, 6
    %s17 = sphi 0, %s36
    %s18 = sphi 0, %s32
    %s19 = sphi 0, %s28
    %s20 = sphi 0, %s17
    %s21 = sphi 0, %s18
    %s22 = sphi 0, %s19
    %s23 = sphi 0, %s20
    %s24 = sphi 0, %s21
    %s25 = sphi 0, %s22
    %s41 = sphi 0, %s43
    %s44 = sphi 0, %s41
    %s45 = sphi 0, %s44
    %s61 = sphi 0, %s45
    %s69 = sphi 0, %s71
    %s72 = sphi 0, %s69
    %s73 = sphi 0, %s72
    %s89 = sphi 0, %s73
    %s95 = sphi 0, %s97
    %s98 = sphi 0, %s95
    %s99 = sphi 0, %s98
    %s115 = sphi 0, %s99
    %s121 = sphi 0, %s123
    %s124 = sphi 0, %s121
    %s125 = sphi 0, %s124
    %s141 = sphi 0, %s125
    %s149 = sphi 0, %s151
    %s152 = sphi 0, %s149
    %s153 = sphi 0, %s152
    %s169 = sphi 0, %s153
  $region4: #{global_generator_forward.10} parent=0 // loop_header_branch
    %13 = sbr.rel (%p11) target = $region8
  $region5: #{global_generator_forward.10} parent=0 // loop_body
    %s15 = ssub.s32 %s10, 1
    %s16 = ssub.s32 %s10, 2
    %s26 = sadd.s32 1, %s19
    %p27 = scmp.ge.s32.totalorder %s26, 1
    %s28 = scalar_select %p27, 0, %s26
    %s29 = sadd.s32 1, %s18
    %s30 = scalar_select %p27, %s29, %s18
    %p31 = scmp.ge.s32.totalorder %s30, 1
    %s32 = scalar_select %p31, 0, %s30
    %s33 = sadd.s32 1, %s17
    %s34 = scalar_select %p31, %s33, %s17
    %p35 = scmp.ge.s32.totalorder %s34, 4
    %s36 = scalar_select %p35, 0, %s34
    %s37 = ssub.s32 %s17, %s36
    %s38 = ssub.s32 %s19, %s28
    %s39 = sor.u32 %s37, %s38
    %p40 = scmp.eq.s32.totalorder %s39, 0
    %s42 = sadd.s32 %s41, 1
    %s43 = scalar_select %p40, %s41, %s42
    %p46 = pneg %p40
    %p47 = scmp.eq.s32.totalorder %s10, 3
    %p48 = por %p46, %p47
    %p49 = scmp.ne.s32.totalorder %s41, %s44
    %p50 = scmp.eq.s32.totalorder %s10, 0
    %p51 = por %p49, %p50
    %p52 = scmp.ne.s32.totalorder %s41, %s44
    %p53 = scmp.eq.s32.totalorder %s15, 3
    %p54 = por %p52, %p53
    %p55 = scmp.ne.s32.totalorder %s44, %s45
    %p56 = scmp.eq.s32.totalorder %s15, 0
    %p57 = por %p55, %p56
    %p58 = scmp.ne.s32.totalorder %s44, %s45
    %p59 = scmp.eq.s32.totalorder %s16, 3
    %p60 = por %p58, %p59
    %p62 = scmp.ne.s32.totalorder %s45, %s61
    %p63 = scmp.eq.s32.totalorder %s16, 0
    %p64 = por %p62, %p63
    %s65 = ssub.s32 %s19, %s28
    %s66 = ssub.s32 %s18, %s32
    %s67 = sor.u32 %s65, %s66
    %p68 = scmp.eq.s32.totalorder %s67, 0
    %s70 = sadd.s32 %s69, 1
    %s71 = scalar_select %p68, %s69, %s70
    %p74 = pneg %p68
    %p75 = scmp.eq.s32.totalorder %s10, 3
    %p76 = por %p74, %p75
    %p77 = scmp.ne.s32.totalorder %s69, %s72
    %p78 = scmp.eq.s32.totalorder %s10, 0
    %p79 = por %p77, %p78
    %p80 = scmp.ne.s32.totalorder %s69, %s72
    %p81 = scmp.eq.s32.totalorder %s15, 3
    %p82 = por %p80, %p81
    %p83 = scmp.ne.s32.totalorder %s72, %s73
    %p84 = scmp.eq.s32.totalorder %s15, 0
    %p85 = por %p83, %p84
    %p86 = scmp.ne.s32.totalorder %s72, %s73
    %p87 = scmp.eq.s32.totalorder %s16, 3
    %p88 = por %p86, %p87
    %p90 = scmp.ne.s32.totalorder %s73, %s89
    %p91 = scmp.eq.s32.totalorder %s16, 0
    %p92 = por %p90, %p91
    %s93 = ssub.s32 %s18, %s32
    %p94 = scmp.eq.s32.totalorder %s93, 0
    %s96 = sadd.s32 %s95, 1
    %s97 = scalar_select %p94, %s95, %s96
    %p100 = pneg %p94
    %p101 = scmp.eq.s32.totalorder %s10, 3
    %p102 = por %p100, %p101
    %p103 = scmp.ne.s32.totalorder %s95, %s98
    %p104 = scmp.eq.s32.totalorder %s10, 0
    %p105 = por %p103, %p104
    %p106 = scmp.ne.s32.totalorder %s95, %s98
    %p107 = scmp.eq.s32.totalorder %s15, 3
    %p108 = por %p106, %p107
    %p109 = scmp.ne.s32.totalorder %s98, %s99
    %p110 = scmp.eq.s32.totalorder %s15, 0
    %p111 = por %p109, %p110
    %p112 = scmp.ne.s32.totalorder %s98, %s99
    %p113 = scmp.eq.s32.totalorder %s16, 3
    %p114 = por %p112, %p113
    %p116 = scmp.ne.s32.totalorder %s99, %s115
    %p117 = scmp.eq.s32.totalorder %s16, 0
    %p118 = por %p116, %p117
    %s119 = ssub.s32 %s18, %s32
    %p120 = scmp.eq.s32.totalorder %s119, 0
    %s122 = sadd.s32 %s121, 1
    %s123 = scalar_select %p120, %s121, %s122
    %p126 = pneg %p120
    %p127 = scmp.eq.s32.totalorder %s10, 3
    %p128 = por %p126, %p127
    %p129 = scmp.ne.s32.totalorder %s121, %s124
    %p130 = scmp.eq.s32.totalorder %s10, 0
    %p131 = por %p129, %p130
    %p132 = scmp.ne.s32.totalorder %s121, %s124
    %p133 = scmp.eq.s32.totalorder %s15, 3
    %p134 = por %p132, %p133
    %p135 = scmp.ne.s32.totalorder %s124, %s125
    %p136 = scmp.eq.s32.totalorder %s15, 0
    %p137 = por %p135, %p136
    %p138 = scmp.ne.s32.totalorder %s124, %s125
    %p139 = scmp.eq.s32.totalorder %s16, 3
    %p140 = por %p138, %p139
    %p142 = scmp.ne.s32.totalorder %s125, %s141
    %p143 = scmp.eq.s32.totalorder %s16, 0
    %p144 = por %p142, %p143
    %s145 = ssub.s32 %s17, %s36
    %s146 = ssub.s32 %s18, %s32
    %s147 = sor.u32 %s145, %s146
    %p148 = scmp.eq.s32.totalorder %s147, 0
    %s150 = sadd.s32 %s149, 1
    %s151 = scalar_select %p148, %s149, %s150
    %p154 = pneg %p148
    %p155 = scmp.eq.s32.totalorder %s10, 3
    %p156 = por %p154, %p155
    %p157 = scmp.ne.s32.totalorder %s149, %s152
    %p158 = scmp.eq.s32.totalorder %s10, 0
    %p159 = por %p157, %p158
    %p160 = scmp.ne.s32.totalorder %s149, %s152
    %p161 = scmp.eq.s32.totalorder %s15, 3
    %p162 = por %p160, %p161
    %p163 = scmp.ne.s32.totalorder %s152, %s153
    %p164 = scmp.eq.s32.totalorder %s15, 0
    %p165 = por %p163, %p164
    %p166 = scmp.ne.s32.totalorder %s152, %s153
    %p167 = scmp.eq.s32.totalorder %s16, 3
    %p168 = por %p166, %p167
    %p170 = scmp.ne.s32.totalorder %s153, %s169
    %p171 = scmp.eq.s32.totalorder %s16, 0
    %p172 = por %p170, %p171
    %p173 = scmp.le.s32.totalorder 1, %s10
    %p174 = scmp.lt.s32.totalorder %s10, 5
    %p175 = pnand %p173, %p174
    %p176 = pneg %p175
    // Predicated region
    $region9: #{global_generator_forward.10} parent=5 // pred_check
      _
    $region10: #{global_generator_forward.10} parent=5 // pred_check_branch
      %178 = sbr.rel (%p175) target = $region12
    $region11: #{global_generator_forward.10} parent=5 // pred_region
      %s179 = ssub.s32 %s10, 1
      // Predicated region
      $region13: #{global_generator_forward.10} parent=11 // pred_check
        %p180 = pneg %p85
      $region14: #{global_generator_forward.10} parent=11 // pred_check_branch
        %182 = sbr.rel (%p180) target = $region16
      $region15: #{global_generator_forward.10} parent=11 // pred_region
        %s183 = smul.u32 32, %s22
        %p184 = scmp.lt.s32.totalorder %s183, 31
        %s185 = scalar_select %p184, %s183, 31
        %p186 = scmp.lt.s32.totalorder %s21, 0
        %s187 = scalar_select %p186, %s21, 0
        %s188 = sadd.s32 %s187, %s185
        %s189 = smul.addr %s188, 8
        %s190 = scalar_lea.vmem %s1, %s189
        %s191 = smul.u32 32, %s22
      $region16: #{global_generator_forward.10} parent=11 // pred_fallthru
        _
      // Predicated region
      $region17: #{global_generator_forward.10} parent=11 // pred_check
        %p192 = pneg %p111
      $region18: #{global_generator_forward.10} parent=11 // pred_check_branch
        %194 = sbr.rel (%p192) target = $region20
      $region19: #{global_generator_forward.10} parent=11 // pred_region
        %p195 = scmp.lt.s32.totalorder %s21, 0
        %s196 = scalar_select %p195, %s21, 0
        %s197 = scalar_lea.vmem %s2, %s196
      $region20: #{global_generator_forward.10} parent=11 // pred_fallthru
        _
      // Predicated region
      $region21: #{global_generator_forward.10} parent=11 // pred_check
        %p198 = pneg %p137
      $region22: #{global_generator_forward.10} parent=11 // pred_check_branch
        %200 = sbr.rel (%p198) target = $region24
      $region23: #{global_generator_forward.10} parent=11 // pred_region
        %p201 = scmp.lt.s32.totalorder %s21, 0
        %s202 = scalar_select %p201, %s21, 0
        %s203 = scalar_lea.vmem %s3, %s202
      $region24: #{global_generator_forward.10} parent=11 // pred_fallthru
        _
    $region12: #{global_generator_forward.10} parent=5 // pred_fallthru
      _
    %p204 = scmp.lt.s32.totalorder %s10, 4
    // Predicated region
    $region25: #{global_generator_forward.10} parent=5 // pred_check
      %p205 = pneg %p204
    $region26: #{global_generator_forward.10} parent=5 // pred_check_branch
      %207 = sbr.rel (%p205) target = $region28
    $region27: #{global_generator_forward.10} parent=5 // pred_region
      // Predicated region
      $region29: #{global_generator_forward.10} parent=27 // pred_check
        %p208 = pneg %p51
      $region30: #{global_generator_forward.10} parent=27 // pred_check_branch
        %210 = sbr.rel (%p208) target = $region32
      $region31: #{global_generator_forward.10} parent=27 // pred_region
        %s211 = smul.u32 16, %s17
        %s212 = smul.u32 2, %s19
        %p213 = scmp.lt.s32.totalorder %s211, 63
        %s214 = scalar_select %p213, %s211, 63
        %p215 = scmp.lt.s32.totalorder %s212, 1
        %s216 = scalar_select %p215, %s212, 1
        %s217 = smul.addr %s214, 2
        %s218 = sadd.s32 %s216, %s217
        %s219 = smul.addr %s218, 8
        %s220 = scalar_lea.vmem %s0, %s219
        %s221 = smul.u32 16, %s17
        %s222 = smul.u32 2, %s19
      $region32: #{global_generator_forward.10} parent=27 // pred_fallthru
        _
    $region28: #{global_generator_forward.10} parent=5 // pred_fallthru
      _
    %p223 = scmp.le.s32.totalorder 1, %s10
    %p224 = scmp.lt.s32.totalorder %s10, 5
    %p225 = pnand %p223, %p224
    %p226 = pneg %p225
    // Predicated region
    $region33: #{global_generator_forward.10} parent=5 // pred_check
      _
    $region34: #{global_generator_forward.10} parent=5 // pred_check_branch
      %228 = sbr.rel (%p225) target = $region36
    $region35: #{global_generator_forward.10} parent=5 // pred_region
      %s229 = ssub.s32 %s10, 1
      %s230 = smul.u32 16, %s20
      %s231 = smul.u32 2, %s22
      %p232 = scmp.lt.s32.totalorder %s230, 63
      %s233 = scalar_select %p232, %s230, 63
      %p234 = scmp.lt.s32.totalorder %s231, 1
      %s235 = scalar_select %p234, %s231, 1
      %s236 = smul.addr %s233, 2
      %s237 = sadd.s32 %s235, %s236
      %s238 = smul.addr %s237, 8
      %s239 = scalar_lea.vmem %s0, %s238
      %p240 = pneg %p57
      %p241 = pneg %p54
      %s242 = smul.u32 32, %s22
      %p243 = scmp.lt.s32.totalorder %s242, 31
      %s244 = scalar_select %p243, %s242, 31
      %p245 = scmp.lt.s32.totalorder %s21, 0
      %s246 = scalar_select %p245, %s21, 0
      %s247 = sadd.s32 %s246, %s244
      %s248 = smul.addr %s247, 8
      %s249 = scalar_lea.vmem %s1, %s248
      %p250 = pneg %p85
      %p251 = pneg %p82
      %p252 = scmp.lt.s32.totalorder %s21, 0
      %s253 = scalar_select %p252, %s21, 0
      %s254 = scalar_lea.vmem %s2, %s253
      %p255 = pneg %p111
      %p256 = pneg %p108
      %p257 = scmp.lt.s32.totalorder %s21, 0
      %s258 = scalar_select %p257, %s21, 0
      %s259 = scalar_lea.vmem %s3, %s258
      %p260 = pneg %p137
      %p261 = pneg %p134
      %p262 = pneg %p165
      %p263 = pneg %p162
      %s264 = smul.u32 16, %s20
      %p265 = scmp.lt.s32.totalorder %s264, 63
      %s266 = scalar_select %p265, %s264, 63
      %p267 = scmp.lt.s32.totalorder %s21, 0
      %s268 = scalar_select %p267, %s21, 0
      %s269 = sadd.s32 %s268, %s266
      %s270 = smul.addr %s269, 8
      %s271 = scalar_lea.vmem %s4, %s270
      %s272 = smul.u32 16, %s20
      %s273 = smul.u32 2, %s22
      %p274 = scmp.lt.s32.totalorder %s272, 63
      %s275 = scalar_select %p274, %s272, 63
      %p276 = scmp.lt.s32.totalorder %s273, 1
      %s277 = scalar_select %p276, %s273, 1
      %s278 = smul.addr %s275, 2
      %s279 = sadd.s32 %s277, %s278
      %s280 = smul.addr %s279, 8
      %s281 = scalar_lea.vmem %s0, %s280
      %s282 = smul.u32 16, %s20
      %s283 = smul.u32 2, %s22
      %s284 = smul.u32 32, %s22
      %p285 = scmp.lt.s32.totalorder %s284, 31
      %s286 = scalar_select %p285, %s284, 31
      %p287 = scmp.lt.s32.totalorder %s21, 0
      %s288 = scalar_select %p287, %s21, 0
      %s289 = sadd.s32 %s288, %s286
      %s290 = smul.addr %s289, 8
      %s291 = scalar_lea.vmem %s1, %s290
      %s292 = smul.u32 32, %s22
      %p293 = scmp.lt.s32.totalorder %s21, 0
      %s294 = scalar_select %p293, %s21, 0
      %s295 = scalar_lea.vmem %s2, %s294
      %p296 = scmp.lt.s32.totalorder %s21, 0
      %s297 = scalar_select %p296, %s21, 0
      %s298 = scalar_lea.vmem %s3, %s297
      %s299 = smul.u32 16, %s20
      %p300 = scmp.lt.s32.totalorder %s299, 63
      %s301 = scalar_select %p300, %s299, 63
      %p302 = scmp.lt.s32.totalorder %s21, 0
      %s303 = scalar_select %p302, %s21, 0
      %s304 = sadd.s32 %s303, %s301
      %s305 = smul.addr %s304, 8
      %s306 = scalar_lea.vmem %s4, %s305
      %s307 = smul.u32 16, %s20
      %p308 = scmp.eq.s32.totalorder %s22, 0
      // Predicated region
      $region37: #{global_generator_forward.10} parent=35 // pred_check
        %p309 = pneg %p308
      $region38: #{global_generator_forward.10} parent=35 // pred_check_branch
        %311 = sbr.rel (%p309) target = $region40
      $region39: #{global_generator_forward.10} parent=35 // pred_region
        %312 = vst [vmem:[#allocation2] sm:$0xff] 0.0
        %313 = vst [vmem:[#allocation2 + $0x8] sm:$0xff] 0.0
        %314 = vst [vmem:[#allocation2 + $0x10] sm:$0xff] 0.0
        %315 = vst [vmem:[#allocation2 + $0x18] sm:$0xff] 0.0
        %316 = vst [vmem:[#allocation2 + $0x20] sm:$0xff] 0.0
        %317 = vst [vmem:[#allocation2 + $0x28] sm:$0xff] 0.0
        %318 = vst [vmem:[#allocation2 + $0x30] sm:$0xff] 0.0
        %319 = vst [vmem:[#allocation2 + $0x38] sm:$0xff] 0.0
        %320 = vst [vmem:[#allocation2 + $0x40] sm:$0xff] 0.0
        %321 = vst [vmem:[#allocation2 + $0x48] sm:$0xff] 0.0
        %322 = vst [vmem:[#allocation2 + $0x50] sm:$0xff] 0.0
        %323 = vst [vmem:[#allocation2 + $0x58] sm:$0xff] 0.0
        %324 = vst [vmem:[#allocation2 + $0x60] sm:$0xff] 0.0
        %325 = vst [vmem:[#allocation2 + $0x68] sm:$0xff] 0.0
        %326 = vst [vmem:[#allocation2 + $0x70] sm:$0xff] 0.0
        %327 = vst [vmem:[#allocation2 + $0x78] sm:$0xff] 0.0
      $region40: #{global_generator_forward.10} parent=35 // pred_fallthru
        _
      %v328 = vld [vmem:[#allocation2] sm:$0xff]
      %v329 = vld [vmem:[#allocation2 + $0x8] sm:$0xff]
      %v330 = vld [vmem:[#allocation2 + $0x10] sm:$0xff]
      %v331 = vld [vmem:[#allocation2 + $0x18] sm:$0xff]
      %v332 = vld [vmem:[#allocation2 + $0x20] sm:$0xff]
      %v333 = vld [vmem:[#allocation2 + $0x28] sm:$0xff]
      %v334 = vld [vmem:[#allocation2 + $0x30] sm:$0xff]
      %v335 = vld [vmem:[#allocation2 + $0x38] sm:$0xff]
      %v336 = vld [vmem:[#allocation2 + $0x40] sm:$0xff]
      %v337 = vld [vmem:[#allocation2 + $0x48] sm:$0xff]
      %v338 = vld [vmem:[#allocation2 + $0x50] sm:$0xff]
      %v339 = vld [vmem:[#allocation2 + $0x58] sm:$0xff]
      %v340 = vld [vmem:[#allocation2 + $0x60] sm:$0xff]
      %v341 = vld [vmem:[#allocation2 + $0x68] sm:$0xff]
      %v342 = vld [vmem:[#allocation2 + $0x70] sm:$0xff]
      %v343 = vld [vmem:[#allocation2 + $0x78] sm:$0xff]
      %v344 = vld [vmem:[%s281] sm:$0xff]
      %v345 = vld [vmem:[%s281 + $0x8] sm:$0xff]
      %v346 = vld [vmem:[%s281 + $0x10] sm:$0xff]
      %v347 = vld [vmem:[%s281 + $0x18] sm:$0xff]
      %v348 = vld [vmem:[%s281 + $0x20] sm:$0xff]
      %v349 = vld [vmem:[%s281 + $0x28] sm:$0xff]
      %v350 = vld [vmem:[%s281 + $0x30] sm:$0xff]
      %v351 = vld [vmem:[%s281 + $0x38] sm:$0xff]
      %v352 = vld [vmem:[%s281 + $0x40] sm:$0xff]
      %v353 = vld [vmem:[%s281 + $0x48] sm:$0xff]
      %v354 = vld [vmem:[%s281 + $0x50] sm:$0xff]
      %v355 = vld [vmem:[%s281 + $0x58] sm:$0xff]
      %v356 = vld [vmem:[%s281 + $0x60] sm:$0xff]
      %v357 = vld [vmem:[%s281 + $0x68] sm:$0xff]
      %v358 = vld [vmem:[%s281 + $0x70] sm:$0xff]
      %v359 = vld [vmem:[%s281 + $0x78] sm:$0xff]
      %v360 = vld [vmem:[%s281 + $0x80] sm:$0xff]
      %v361 = vld [vmem:[%s281 + $0x88] sm:$0xff]
      %v362 = vld [vmem:[%s281 + $0x90] sm:$0xff]
      %v363 = vld [vmem:[%s281 + $0x98] sm:$0xff]
      %v364 = vld [vmem:[%s281 + $0xa0] sm:$0xff]
      %v365 = vld [vmem:[%s281 + $0xa8] sm:$0xff]
      %v366 = vld [vmem:[%s281 + $0xb0] sm:$0xff]
      %v367 = vld [vmem:[%s281 + $0xb8] sm:$0xff]
      %v368 = vld [vmem:[%s281 + $0xc0] sm:$0xff]
      %v369 = vld [vmem:[%s281 + $0xc8] sm:$0xff]
      %v370 = vld [vmem:[%s281 + $0xd0] sm:$0xff]
      %v371 = vld [vmem:[%s281 + $0xd8] sm:$0xff]
      %v372 = vld [vmem:[%s281 + $0xe0] sm:$0xff]
      %v373 = vld [vmem:[%s281 + $0xe8] sm:$0xff]
      %v374 = vld [vmem:[%s281 + $0xf0] sm:$0xff]
      %v375 = vld [vmem:[%s281 + $0xf8] sm:$0xff]
      %v376 = vld [vmem:[%s291] sm:$0xff]
      %v377 = vld [vmem:[%s291 + $0x8] sm:$0xff]
      %v378 = vld [vmem:[%s291 + $0x10] sm:$0xff]
      %v379 = vld [vmem:[%s291 + $0x18] sm:$0xff]
      %v380 = vld [vmem:[%s291 + $0x20] sm:$0xff]
      %v381 = vld [vmem:[%s291 + $0x28] sm:$0xff]
      %v382 = vld [vmem:[%s291 + $0x30] sm:$0xff]
      %v383 = vld [vmem:[%s291 + $0x38] sm:$0xff]
      %v384 = vld [vmem:[%s291 + $0x40] sm:$0xff]
      %v385 = vld [vmem:[%s291 + $0x48] sm:$0xff]
      %v386 = vld [vmem:[%s291 + $0x50] sm:$0xff]
      %v387 = vld [vmem:[%s291 + $0x58] sm:$0xff]
      %v388 = vld [vmem:[%s291 + $0x60] sm:$0xff]
      %v389 = vld [vmem:[%s291 + $0x68] sm:$0xff]
      %v390 = vld [vmem:[%s291 + $0x70] sm:$0xff]
      %v391 = vld [vmem:[%s291 + $0x78] sm:$0xff]
      %v392 = vld [vmem:[%s291 + $0x80] sm:$0xff]
      %v393 = vld [vmem:[%s291 + $0x88] sm:$0xff]
      %v394 = vld [vmem:[%s291 + $0x90] sm:$0xff]
      %v395 = vld [vmem:[%s291 + $0x98] sm:$0xff]
      %v396 = vld [vmem:[%s291 + $0xa0] sm:$0xff]
      %v397 = vld [vmem:[%s291 + $0xa8] sm:$0xff]
      %v398 = vld [vmem:[%s291 + $0xb0] sm:$0xff]
      %v399 = vld [vmem:[%s291 + $0xb8] sm:$0xff]
      %v400 = vld [vmem:[%s291 + $0xc0] sm:$0xff]
      %v401 = vld [vmem:[%s291 + $0xc8] sm:$0xff]
      %v402 = vld [vmem:[%s291 + $0xd0] sm:$0xff]
      %v403 = vld [vmem:[%s291 + $0xd8] sm:$0xff]
      %v404 = vld [vmem:[%s291 + $0xe0] sm:$0xff]
      %v405 = vld [vmem:[%s291 + $0xe8] sm:$0xff]
      %v406 = vld [vmem:[%s291 + $0xf0] sm:$0xff]
      %v407 = vld [vmem:[%s291 + $0xf8] sm:$0xff]
      %408 = vmatprep.subr.mxu0 0.0
      %409 = vmatpush1.msra.mxu0 %v376
      %410 = vmatprep.subr.mxu0 0.0
      %411 = vmatpush1.msra.mxu0 %v377
      %412 = vmatprep.subr.mxu0 0.0
      %413 = vmatpush1.msra.mxu0 %v378
      %414 = vmatprep.subr.mxu0 0.0
      %415 = vmatpush1.msra.mxu0 %v379
      %416 = vmatprep.subr.mxu0 0.0
      %417 = vmatpush1.msra.mxu0 %v380
      %418 = vmatprep.subr.mxu0 0.0
      %419 = vmatpush1.msra.mxu0 %v381
      %420 = vmatprep.subr.mxu0 0.0
      %421 = vmatpush1.msra.mxu0 %v382
      %422 = vmatprep.subr.mxu0 0.0
      %423 = vmatpush1.msra.mxu0 %v383
      %424 = vmatprep.subr.mxu0 0.0
      %425 = vmatpush1.msra.mxu0 %v384
      %426 = vmatprep.subr.mxu0 0.0
      %427 = vmatpush1.msra.mxu0 %v385
      %428 = vmatprep.subr.mxu0 0.0
      %429 = vmatpush1.msra.mxu0 %v386
      %430 = vmatprep.subr.mxu0 0.0
      %431 = vmatpush1.msra.mxu0 %v387
      %432 = vmatprep.subr.mxu0 0.0
      %433 = vmatpush1.msra.mxu0 %v388
      %434 = vmatprep.subr.mxu0 0.0
      %435 = vmatpush1.msra.mxu0 %v389
      %436 = vmatprep.subr.mxu0 0.0
      %437 = vmatpush1.msra.mxu0 %v390
      %438 = vmatprep.subr.mxu0 0.0
      %439 = vmatpush1.msra.mxu0 %v391
      %440 = vmatprep.subr.mxu0 0.0
      %441 = vmatpush1.msra.mxu0 %v392
      %442 = vmatprep.subr.mxu0 0.0
      %443 = vmatpush1.msra.mxu0 %v393
      %444 = vmatprep.subr.mxu0 0.0
      %445 = vmatpush1.msra.mxu0 %v394
      %446 = vmatprep.subr.mxu0 0.0
      %447 = vmatpush1.msra.mxu0 %v395
      %448 = vmatprep.subr.mxu0 0.0
      %449 = vmatpush1.msra.mxu0 %v396
      %450 = vmatprep.subr.mxu0 0.0
      %451 = vmatpush1.msra.mxu0 %v397
      %452 = vmatprep.subr.mxu0 0.0
      %453 = vmatpush1.msra.mxu0 %v398
      %454 = vmatprep.subr.mxu0 0.0
      %455 = vmatpush1.msra.mxu0 %v399
      %456 = vmatprep.subr.mxu0 0.0
      %457 = vmatpush1.msra.mxu0 %v400
      %458 = vmatprep.subr.mxu0 0.0
      %459 = vmatpush1.msra.mxu0 %v401
      %460 = vmatprep.subr.mxu0 0.0
      %461 = vmatpush1.msra.mxu0 %v402
      %462 = vmatprep.subr.mxu0 0.0
      %463 = vmatpush1.msra.mxu0 %v403
      %464 = vmatprep.subr.mxu0 0.0
      %465 = vmatpush1.msra.mxu0 %v404
      %466 = vmatprep.subr.mxu0 0.0
      %467 = vmatpush1.msra.mxu0 %v405
      %468 = vmatprep.subr.mxu0 0.0
      %469 = vmatpush1.msra.mxu0 %v406
      %470 = vmatprep.subr.mxu0 0.0
      %471 = vmatpush1.msra.mxu0 %v407
      %472 = vmatprep.mubr.f32.mxu0 %v345
      %473 = vmatmul.mubr.f32.gmra.mrb[0].mxu0 %v344
      %v474 = vpop.f32.mrb[0].mxu0
      %v475 = vadd.f32 0.0, %v474
      %v476 = vpop.f32.mrb[0].mxu0
      %477 = vmatprep.mubr.f32.mxu0 %v347
      %478 = vmatmul.mubr.f32.gmra.mrb[0].mxu0 %v346
      %v479 = vpop.f32.mrb[0].mxu0
      %v480 = vadd.f32 0.0, %v479
      %v481 = vpop.f32.mrb[0].mxu0
      %482 = vmatprep.mubr.f32.mxu0 %v349
      %483 = vmatmul.mubr.f32.gmra.mrb[0].mxu0 %v348
      %v484 = vpop.f32.mrb[0].mxu0
      %v485 = vadd.f32 0.0, %v484
      %v486 = vpop.f32.mrb[0].mxu0
      %487 = vmatprep.mubr.f32.mxu0 %v351
      %488 = vmatmul.mubr.f32.gmra.mrb[0].mxu0 %v350
      %v489 = vpop.f32.mrb[0].mxu0
      %v490 = vadd.f32 0.0, %v489
      %v491 = vpop.f32.mrb[0].mxu0
      %492 = vmatprep.mubr.f32.mxu0 %v353
      %493 = vmatmul.mubr.f32.gmra.mrb[0].mxu0 %v352
      %v494 = vpop.f32.mrb[0].mxu0
      %v495 = vadd.f32 0.0, %v494
      %v496 = vpop.f32.mrb[0].mxu0
      %497 = vmatprep.mubr.f32.mxu0 %v355
      %498 = vmatmul.mubr.f32.gmra.mrb[0].mxu0 %v354
      %v499 = vpop.f32.mrb[0].mxu0
      %v500 = vadd.f32 0.0, %v499
      %v501 = vpop.f32.mrb[0].mxu0
      %502 = vmatprep.mubr.f32.mxu0 %v357
      %503 = vmatmul.mubr.f32.gmra.mrb[0].mxu0 %v356
      %v504 = vpop.f32.mrb[0].mxu0
      %v505 = vadd.f32 0.0, %v504
      %v506 = vpop.f32.mrb[0].mxu0
      %507 = vmatprep.mubr.f32.mxu0 %v359
      %508 = vmatmul.mubr.f32.gmra.mrb[0].mxu0 %v358
      %v509 = vpop.f32.mrb[0].mxu0
      %v510 = vadd.f32 0.0, %v509
      %v511 = vpop.f32.mrb[0].mxu0
      %512 = vmatprep.mubr.f32.mxu0 %v361
      %513 = vmatmul.mubr.f32.gmra.mrb[0].mxu0 %v360
      %v514 = vpop.f32.mrb[0].mxu0
      %v515 = vadd.f32 0.0, %v514
      %v516 = vpop.f32.mrb[0].mxu0
      %517 = vmatprep.mubr.f32.mxu0 %v363
      %518 = vmatmul.mubr.f32.gmra.mrb[0].mxu0 %v362
      %v519 = vpop.f32.mrb[0].mxu0
      %v520 = vadd.f32 0.0, %v519
      %v521 = vpop.f32.mrb[0].mxu0
      %522 = vmatprep.mubr.f32.mxu0 %v365
      %523 = vmatmul.mubr.f32.gmra.mrb[0].mxu0 %v364
      %v524 = vpop.f32.mrb[0].mxu0
      %v525 = vadd.f32 0.0, %v524
      %v526 = vpop.f32.mrb[0].mxu0
      %527 = vmatprep.mubr.f32.mxu0 %v367
      %528 = vmatmul.mubr.f32.gmra.mrb[0].mxu0 %v366
      %v529 = vpop.f32.mrb[0].mxu0
      %v530 = vadd.f32 0.0, %v529
      %v531 = vpop.f32.mrb[0].mxu0
      %532 = vmatprep.mubr.f32.mxu0 %v369
      %533 = vmatmul.mubr.f32.gmra.mrb[0].mxu0 %v368
      %v534 = vpop.f32.mrb[0].mxu0
      %v535 = vadd.f32 0.0, %v534
      %v536 = vpop.f32.mrb[0].mxu0
      %537 = vmatprep.mubr.f32.mxu0 %v371
      %538 = vmatmul.mubr.f32.gmra.mrb[0].mxu0 %v370
      %v539 = vpop.f32.mrb[0].mxu0
      %v540 = vadd.f32 0.0, %v539
      %v541 = vpop.f32.mrb[0].mxu0
      %542 = vmatprep.mubr.f32.mxu0 %v373
      %543 = vmatmul.mubr.f32.gmra.mrb[0].mxu0 %v372
      %v544 = vpop.f32.mrb[0].mxu0
      %v545 = vadd.f32 0.0, %v544
      %v546 = vpop.f32.mrb[0].mxu0
      %547 = vmatprep.mubr.f32.mxu0 %v375
      %548 = vmatmul.mubr.f32.gmra.mrb[0].mxu0 %v374
      %v549 = vpop.f32.mrb[0].mxu0
      %v550 = vadd.f32 0.0, %v549
      %v551 = vpop.f32.mrb[0].mxu0
      %552 = vdwg.mxu0
      %v553 = vadd.f32 %v328, %v475
      %v554 = vadd.f32 %v329, %v480
      %v555 = vadd.f32 %v330, %v485
      %v556 = vadd.f32 %v331, %v490
      %v557 = vadd.f32 %v332, %v495
      %v558 = vadd.f32 %v333, %v500
      %v559 = vadd.f32 %v334, %v505
      %v560 = vadd.f32 %v335, %v510
      %v561 = vadd.f32 %v336, %v515
      %v562 = vadd.f32 %v337, %v520
      %v563 = vadd.f32 %v338, %v525
      %v564 = vadd.f32 %v339, %v530
      %v565 = vadd.f32 %v340, %v535
      %v566 = vadd.f32 %v341, %v540
      %v567 = vadd.f32 %v342, %v545
      %v568 = vadd.f32 %v343, %v550
      %569 = vst [vmem:[#allocation2] sm:$0xff] %v553
      %570 = vst [vmem:[#allocation2 + $0x8] sm:$0xff] %v554
      %571 = vst [vmem:[#allocation2 + $0x10] sm:$0xff] %v555
      %572 = vst [vmem:[#allocation2 + $0x18] sm:$0xff] %v556
      %573 = vst [vmem:[#allocation2 + $0x20] sm:$0xff] %v557
      %574 = vst [vmem:[#allocation2 + $0x28] sm:$0xff] %v558
      %575 = vst [vmem:[#allocation2 + $0x30] sm:$0xff] %v559
      %576 = vst [vmem:[#allocation2 + $0x38] sm:$0xff] %v560
      %577 = vst [vmem:[#allocation2 + $0x40] sm:$0xff] %v561
      %578 = vst [vmem:[#allocation2 + $0x48] sm:$0xff] %v562
      %579 = vst [vmem:[#allocation2 + $0x50] sm:$0xff] %v563
      %580 = vst [vmem:[#allocation2 + $0x58] sm:$0xff] %v564
      %581 = vst [vmem:[#allocation2 + $0x60] sm:$0xff] %v565
      %582 = vst [vmem:[#allocation2 + $0x68] sm:$0xff] %v566
      %583 = vst [vmem:[#allocation2 + $0x70] sm:$0xff] %v567
      %584 = vst [vmem:[#allocation2 + $0x78] sm:$0xff] %v568
      // Predicated region
      $region41: #{global_generator_forward.10} parent=35 // pred_check
        %p585 = pneg %p308
      $region42: #{global_generator_forward.10} parent=35 // pred_check_branch
        %587 = sbr.rel (%p585) target = $region44
      $region43: #{global_generator_forward.10} parent=35 // pred_region
        %v588 = vld [vmem:[#allocation2] sm:$0xff]
        %v589 = vld [vmem:[#allocation2 + $0x8] sm:$0xff]
        %v590 = vld [vmem:[#allocation2 + $0x10] sm:$0xff]
        %v591 = vld [vmem:[#allocation2 + $0x18] sm:$0xff]
        %v592 = vld [vmem:[#allocation2 + $0x20] sm:$0xff]
        %v593 = vld [vmem:[#allocation2 + $0x28] sm:$0xff]
        %v594 = vld [vmem:[#allocation2 + $0x30] sm:$0xff]
        %v595 = vld [vmem:[#allocation2 + $0x38] sm:$0xff]
        %v596 = vld [vmem:[#allocation2 + $0x40] sm:$0xff]
        %v597 = vld [vmem:[#allocation2 + $0x48] sm:$0xff]
        %v598 = vld [vmem:[#allocation2 + $0x50] sm:$0xff]
        %v599 = vld [vmem:[#allocation2 + $0x58] sm:$0xff]
        %v600 = vld [vmem:[#allocation2 + $0x60] sm:$0xff]
        %v601 = vld [vmem:[#allocation2 + $0x68] sm:$0xff]
        %v602 = vld [vmem:[#allocation2 + $0x70] sm:$0xff]
        %v603 = vld [vmem:[#allocation2 + $0x78] sm:$0xff]
        %v604 = vld [vmem:[%s295] sm:$0x1]
        %v606 = vlaneseq
        %v607 = vshrl.u32 %v606, 7
        %v608 = vsub.s32 0, %v607
        %v609 = vrot.slane %v604, %v608
        %v611 = vmul.f32 %v588, %v609
        %v612 = vmul.f32 %v589, %v609
        %v613 = vmul.f32 %v590, %v609
        %v614 = vmul.f32 %v591, %v609
        %v615 = vmul.f32 %v592, %v609
        %v616 = vmul.f32 %v593, %v609
        %v617 = vmul.f32 %v594, %v609
        %v618 = vmul.f32 %v595, %v609
        %v619 = vmul.f32 %v596, %v609
        %v620 = vmul.f32 %v597, %v609
        %v621 = vmul.f32 %v598, %v609
        %v622 = vmul.f32 %v599, %v609
        %v623 = vmul.f32 %v600, %v609
        %v624 = vmul.f32 %v601, %v609
        %v625 = vmul.f32 %v602, %v609
        %v626 = vmul.f32 %v603, %v609
        %v627 = vld [vmem:[%s298] sm:$0x1]
        %v629 = vlaneseq
        %v630 = vshrl.u32 %v629, 7
        %v631 = vsub.s32 0, %v630
        %v632 = vrot.slane %v627, %v631
        %v634 = vadd.f32 %v611, %v632
        %v635 = vadd.f32 %v612, %v632
        %v636 = vadd.f32 %v613, %v632
        %v637 = vadd.f32 %v614, %v632
        %v638 = vadd.f32 %v615, %v632
        %v639 = vadd.f32 %v616, %v632
        %v640 = vadd.f32 %v617, %v632
        %v641 = vadd.f32 %v618, %v632
        %v642 = vadd.f32 %v619, %v632
        %v643 = vadd.f32 %v620, %v632
        %v644 = vadd.f32 %v621, %v632
        %v645 = vadd.f32 %v622, %v632
        %v646 = vadd.f32 %v623, %v632
        %v647 = vadd.f32 %v624, %v632
        %v648 = vadd.f32 %v625, %v632
        %v649 = vadd.f32 %v626, %v632
        %v650 = vmax.f32 %v634, 0.0
        %v651 = vmax.f32 %v635, 0.0
        %v652 = vmax.f32 %v636, 0.0
        %v653 = vmax.f32 %v637, 0.0
        %v654 = vmax.f32 %v638, 0.0
        %v655 = vmax.f32 %v639, 0.0
        %v656 = vmax.f32 %v640, 0.0
        %v657 = vmax.f32 %v641, 0.0
        %v658 = vmax.f32 %v642, 0.0
        %v659 = vmax.f32 %v643, 0.0
        %v660 = vmax.f32 %v644, 0.0
        %v661 = vmax.f32 %v645, 0.0
        %v662 = vmax.f32 %v646, 0.0
        %v663 = vmax.f32 %v647, 0.0
        %v664 = vmax.f32 %v648, 0.0
        %v665 = vmax.f32 %v649, 0.0
        %666 = vst [vmem:[%s306] sm:$0xff] %v650
        %667 = vst [vmem:[%s306 + $0x8] sm:$0xff] %v651
        %668 = vst [vmem:[%s306 + $0x10] sm:$0xff] %v652
        %669 = vst [vmem:[%s306 + $0x18] sm:$0xff] %v653
        %670 = vst [vmem:[%s306 + $0x20] sm:$0xff] %v654
        %671 = vst [vmem:[%s306 + $0x28] sm:$0xff] %v655
        %672 = vst [vmem:[%s306 + $0x30] sm:$0xff] %v656
        %673 = vst [vmem:[%s306 + $0x38] sm:$0xff] %v657
        %674 = vst [vmem:[%s306 + $0x40] sm:$0xff] %v658
        %675 = vst [vmem:[%s306 + $0x48] sm:$0xff] %v659
        %676 = vst [vmem:[%s306 + $0x50] sm:$0xff] %v660
        %677 = vst [vmem:[%s306 + $0x58] sm:$0xff] %v661
        %678 = vst [vmem:[%s306 + $0x60] sm:$0xff] %v662
        %679 = vst [vmem:[%s306 + $0x68] sm:$0xff] %v663
        %680 = vst [vmem:[%s306 + $0x70] sm:$0xff] %v664
        %681 = vst [vmem:[%s306 + $0x78] sm:$0xff] %v665
      $region44: #{global_generator_forward.10} parent=35 // pred_fallthru
        _
      %s682 = smul.u32 16, %s20
      %p683 = scmp.lt.s32.totalorder %s682, 63
      %s684 = scalar_select %p683, %s682, 63
      %p685 = scmp.lt.s32.totalorder %s21, 0
      %s686 = scalar_select %p685, %s21, 0
      %s687 = sadd.s32 %s686, %s684
      %s688 = smul.addr %s687, 8
      %s689 = scalar_lea.vmem %s4, %s688
      // Predicated region
      $region45: #{global_generator_forward.10} parent=35 // pred_check
        %p690 = pneg %p162
      $region46: #{global_generator_forward.10} parent=35 // pred_check_branch
        %692 = sbr.rel (%p690) target = $region48
      $region47: #{global_generator_forward.10} parent=35 // pred_region
        %s693 = smul.u32 16, %s20
      $region48: #{global_generator_forward.10} parent=35 // pred_fallthru
        _
    $region36: #{global_generator_forward.10} parent=5 // pred_fallthru
      _
    %p694 = scmp.le.s32.totalorder 2, %s10
    // Predicated region
    $region49: #{global_generator_forward.10} parent=5 // pred_check
      %p695 = pneg %p694
    $region50: #{global_generator_forward.10} parent=5 // pred_check_branch
      %697 = sbr.rel (%p695) target = $region52
    $region51: #{global_generator_forward.10} parent=5 // pred_region
      %s698 = ssub.s32 %s10, 2
      // Predicated region
      $region53: #{global_generator_forward.10} parent=51 // pred_check
        %p699 = pneg %p168
      $region54: #{global_generator_forward.10} parent=51 // pred_check_branch
        %701 = sbr.rel (%p699) target = $region56
      $region55: #{global_generator_forward.10} parent=51 // pred_region
        %s702 = smul.u32 16, %s23
        %p703 = scmp.lt.s32.totalorder %s702, 63
        %s704 = scalar_select %p703, %s702, 63
        %p705 = scmp.lt.s32.totalorder %s24, 0
        %s706 = scalar_select %p705, %s24, 0
        %s707 = sadd.s32 %s706, %s704
        %s708 = smul.addr %s707, 8
        %s709 = scalar_lea.vmem %s4, %s708
      $region56: #{global_generator_forward.10} parent=51 // pred_fallthru
        _
    $region52: #{global_generator_forward.10} parent=5 // pred_fallthru
      _
  $region6: #{global_generator_forward.10} parent=0 // loop_footer
    %s14 = sadd.s32 1, %s10
  $region7: #{global_generator_forward.10} parent=0 // loop_footer_branch
    %9 = sbr.rel target = $region3
  $region8: #{global_generator_forward.10} parent=0 // loop_exit
    _

// kernel: global_generator_forward.11
$region0: #{global_generator_forward.11}
  #allocation0 [shape = 'u32[]', space=smem, size = 0x4, offset = 0x4, fixed_abs, tag = 'smem constant byte address 0x4 - core index']
  #allocation1 [shape = 'u32[144,128]{1,0:T(1,128)}', space=vmem, size = 0x12000, scoped, tag = 'internal scratch']
  #allocation2 [shape = 'f32[128,128]{1,0:T(8,128)}', space=vmem, size = 0x10000, scoped, tag = 'scratch operand']
  %s0 = inlined_call_operand.vmem [shape: f32[128,128], index: 0, kind: input, shape index: {}]
  %s1 = inlined_call_operand.vmem [shape: f32[128,128], index: 1, kind: input, shape index: {}]
  %s2 = inlined_call_operand.vmem [shape: f32[1,128], index: 2, kind: input, shape index: {}]
  %s3 = inlined_call_operand.vmem [shape: f32[1,128], index: 3, kind: input, shape index: {}]
  %s4 = inlined_call_operand.vmem [shape: f32[128,128], index: 4, kind: output, shape index: {}]
  %s5 = sld [smem:[#allocation0]]
  $region34: #{global_generator_forward.11} parent=0
    _
  %s7 = ssub.s32 1, %s5
  %s8 = scalar_select 0, %s7, %s5
  // Predicated region
  $region2: #{global_generator_forward.11} parent=0 // pred_check
    _
  $region3: #{global_generator_forward.11} parent=0 // pred_check_branch
    %10 = sbr.rel (0) target = $region5
  $region4: #{global_generator_forward.11} parent=0 // pred_region
    _
  $region5: #{global_generator_forward.11} parent=0 // pred_fallthru
    _
  // Predicated region
  $region6: #{global_generator_forward.11} parent=0 // pred_check
    _
  $region7: #{global_generator_forward.11} parent=0 // pred_check_branch
    %12 = sbr.rel (0) target = $region9
  $region8: #{global_generator_forward.11} parent=0 // pred_region
    _
  $region9: #{global_generator_forward.11} parent=0 // pred_fallthru
    _
  // Predicated region
  $region10: #{global_generator_forward.11} parent=0 // pred_check
    _
  $region11: #{global_generator_forward.11} parent=0 // pred_check_branch
    %14 = sbr.rel (0) target = $region13
  $region12: #{global_generator_forward.11} parent=0 // pred_region
    _
  $region13: #{global_generator_forward.11} parent=0 // pred_fallthru
    _
  // Predicated region
  $region14: #{global_generator_forward.11} parent=0 // pred_check
    _
  $region15: #{global_generator_forward.11} parent=0 // pred_check_branch
    %16 = sbr.rel (0) target = $region17
  $region16: #{global_generator_forward.11} parent=0 // pred_region
    _
  $region17: #{global_generator_forward.11} parent=0 // pred_fallthru
    _
  %p17 = scmp.eq.s32.totalorder 0, 0
  // Predicated region
  $region18: #{global_generator_forward.11} parent=0 // pred_check
    %p18 = pneg %p17
  $region19: #{global_generator_forward.11} parent=0 // pred_check_branch
    %20 = sbr.rel (%p18) target = $region21
  $region20: #{global_generator_forward.11} parent=0 // pred_region
    %21 = vst [vmem:[#allocation2] sm:$0xff] 0.0
    %22 = vst [vmem:[#allocation2 + $0x8] sm:$0xff] 0.0
    %23 = vst [vmem:[#allocation2 + $0x10] sm:$0xff] 0.0
    %24 = vst [vmem:[#allocation2 + $0x18] sm:$0xff] 0.0
    %25 = vst [vmem:[#allocation2 + $0x20] sm:$0xff] 0.0
    %26 = vst [vmem:[#allocation2 + $0x28] sm:$0xff] 0.0
    %27 = vst [vmem:[#allocation2 + $0x30] sm:$0xff] 0.0
    %28 = vst [vmem:[#allocation2 + $0x38] sm:$0xff] 0.0
    %29 = vst [vmem:[#allocation2 + $0x40] sm:$0xff] 0.0
    %30 = vst [vmem:[#allocation2 + $0x48] sm:$0xff] 0.0
    %31 = vst [vmem:[#allocation2 + $0x50] sm:$0xff] 0.0
    %32 = vst [vmem:[#allocation2 + $0x58] sm:$0xff] 0.0
    %33 = vst [vmem:[#allocation2 + $0x60] sm:$0xff] 0.0
    %34 = vst [vmem:[#allocation2 + $0x68] sm:$0xff] 0.0
    %35 = vst [vmem:[#allocation2 + $0x70] sm:$0xff] 0.0
    %36 = vst [vmem:[#allocation2 + $0x78] sm:$0xff] 0.0
  $region21: #{global_generator_forward.11} parent=0 // pred_fallthru
    _
  %v37 = vld [vmem:[#allocation2] sm:$0xff]
  %v38 = vld [vmem:[#allocation2 + $0x8] sm:$0xff]
  %v39 = vld [vmem:[#allocation2 + $0x10] sm:$0xff]
  %v40 = vld [vmem:[#allocation2 + $0x18] sm:$0xff]
  %v41 = vld [vmem:[#allocation2 + $0x20] sm:$0xff]
  %v42 = vld [vmem:[#allocation2 + $0x28] sm:$0xff]
  %v43 = vld [vmem:[#allocation2 + $0x30] sm:$0xff]
  %v44 = vld [vmem:[#allocation2 + $0x38] sm:$0xff]
  %v45 = vld [vmem:[#allocation2 + $0x40] sm:$0xff]
  %v46 = vld [vmem:[#allocation2 + $0x48] sm:$0xff]
  %v47 = vld [vmem:[#allocation2 + $0x50] sm:$0xff]
  %v48 = vld [vmem:[#allocation2 + $0x58] sm:$0xff]
  %v49 = vld [vmem:[#allocation2 + $0x60] sm:$0xff]
  %v50 = vld [vmem:[#allocation2 + $0x68] sm:$0xff]
  %v51 = vld [vmem:[#allocation2 + $0x70] sm:$0xff]
  %v52 = vld [vmem:[#allocation2 + $0x78] sm:$0xff]
  %v53 = vld [vmem:[%s0] sm:$0xff]
  %v54 = vld [vmem:[%s0 + $0x8] sm:$0xff]
  %v55 = vld [vmem:[%s0 + $0x10] sm:$0xff]
  %v56 = vld [vmem:[%s0 + $0x18] sm:$0xff]
  %v57 = vld [vmem:[%s0 + $0x20] sm:$0xff]
  %v58 = vld [vmem:[%s0 + $0x28] sm:$0xff]
  %v59 = vld [vmem:[%s0 + $0x30] sm:$0xff]
  %v60 = vld [vmem:[%s0 + $0x38] sm:$0xff]
  %v61 = vld [vmem:[%s0 + $0x40] sm:$0xff]
  %v62 = vld [vmem:[%s0 + $0x48] sm:$0xff]
  %v63 = vld [vmem:[%s0 + $0x50] sm:$0xff]
  %v64 = vld [vmem:[%s0 + $0x58] sm:$0xff]
  %v65 = vld [vmem:[%s0 + $0x60] sm:$0xff]
  %v66 = vld [vmem:[%s0 + $0x68] sm:$0xff]
  %v67 = vld [vmem:[%s0 + $0x70] sm:$0xff]
  %v68 = vld [vmem:[%s0 + $0x78] sm:$0xff]
  %v69 = vld [vmem:[%s1] sm:$0xff]
  %v70 = vld [vmem:[%s1 + $0x8] sm:$0xff]
  %v71 = vld [vmem:[%s1 + $0x10] sm:$0xff]
  %v72 = vld [vmem:[%s1 + $0x18] sm:$0xff]
  %v73 = vld [vmem:[%s1 + $0x20] sm:$0xff]
  %v74 = vld [vmem:[%s1 + $0x28] sm:$0xff]
  %v75 = vld [vmem:[%s1 + $0x30] sm:$0xff]
  %v76 = vld [vmem:[%s1 + $0x38] sm:$0xff]
  %v77 = vld [vmem:[%s1 + $0x40] sm:$0xff]
  %v78 = vld [vmem:[%s1 + $0x48] sm:$0xff]
  %v79 = vld [vmem:[%s1 + $0x50] sm:$0xff]
  %v80 = vld [vmem:[%s1 + $0x58] sm:$0xff]
  %v81 = vld [vmem:[%s1 + $0x60] sm:$0xff]
  %v82 = vld [vmem:[%s1 + $0x68] sm:$0xff]
  %v83 = vld [vmem:[%s1 + $0x70] sm:$0xff]
  %v84 = vld [vmem:[%s1 + $0x78] sm:$0xff]
  %85 = vmatprep.subr.mxu0 0.0
  %86 = vmatpush1.msra.mxu0 %v69
  %87 = vmatprep.subr.mxu0 0.0
  %88 = vmatpush1.msra.mxu0 %v70
  %89 = vmatprep.subr.mxu0 0.0
  %90 = vmatpush1.msra.mxu0 %v71
  %91 = vmatprep.subr.mxu0 0.0
  %92 = vmatpush1.msra.mxu0 %v72
  %93 = vmatprep.subr.mxu0 0.0
  %94 = vmatpush1.msra.mxu0 %v73
  %95 = vmatprep.subr.mxu0 0.0
  %96 = vmatpush1.msra.mxu0 %v74
  %97 = vmatprep.subr.mxu0 0.0
  %98 = vmatpush1.msra.mxu0 %v75
  %99 = vmatprep.subr.mxu0 0.0
  %100 = vmatpush1.msra.mxu0 %v76
  %101 = vmatprep.subr.mxu0 0.0
  %102 = vmatpush1.msra.mxu0 %v77
  %103 = vmatprep.subr.mxu0 0.0
  %104 = vmatpush1.msra.mxu0 %v78
  %105 = vmatprep.subr.mxu0 0.0
  %106 = vmatpush1.msra.mxu0 %v79
  %107 = vmatprep.subr.mxu0 0.0
  %108 = vmatpush1.msra.mxu0 %v80
  %109 = vmatprep.subr.mxu0 0.0
  %110 = vmatpush1.msra.mxu0 %v81
  %111 = vmatprep.subr.mxu0 0.0
  %112 = vmatpush1.msra.mxu0 %v82
  %113 = vmatprep.subr.mxu0 0.0
  %114 = vmatpush1.msra.mxu0 %v83
  %115 = vmatprep.subr.mxu0 0.0
  %116 = vmatpush1.msra.mxu0 %v84
  %117 = vmatprep.subr.mxu0 0.0
  %118 = vmatpush1.msra.mxu0 0.0
  %119 = vmatprep.subr.mxu0 0.0
  %120 = vmatpush1.msra.mxu0 0.0
  %121 = vmatprep.subr.mxu0 0.0
  %122 = vmatpush1.msra.mxu0 0.0
  %123 = vmatprep.subr.mxu0 0.0
  %124 = vmatpush1.msra.mxu0 0.0
  %125 = vmatprep.subr.mxu0 0.0
  %126 = vmatpush1.msra.mxu0 0.0
  %127 = vmatprep.subr.mxu0 0.0
  %128 = vmatpush1.msra.mxu0 0.0
  %129 = vmatprep.subr.mxu0 0.0
  %130 = vmatpush1.msra.mxu0 0.0
  %131 = vmatprep.subr.mxu0 0.0
  %132 = vmatpush1.msra.mxu0 0.0
  %133 = vmatprep.subr.mxu0 0.0
  %134 = vmatpush1.msra.mxu0 0.0
  %135 = vmatprep.subr.mxu0 0.0
  %136 = vmatpush1.msra.mxu0 0.0
  %137 = vmatprep.subr.mxu0 0.0
  %138 = vmatpush1.msra.mxu0 0.0
  %139 = vmatprep.subr.mxu0 0.0
  %140 = vmatpush1.msra.mxu0 0.0
  %141 = vmatprep.subr.mxu0 0.0
  %142 = vmatpush1.msra.mxu0 0.0
  %143 = vmatprep.subr.mxu0 0.0
  %144 = vmatpush1.msra.mxu0 0.0
  %145 = vmatprep.subr.mxu0 0.0
  %146 = vmatpush1.msra.mxu0 0.0
  %147 = vmatprep.subr.mxu0 0.0
  %148 = vmatpush1.msra.mxu0 0.0
  %149 = vmatprep.mubr.f32.mxu0 0.0
  %150 = vmatmul.mubr.f32.gmra.mrb[0].mxu0 %v53
  %v151 = vpop.f32.mrb[0].mxu0
  %v152 = vadd.f32 0.0, %v151
  %v153 = vpop.f32.mrb[0].mxu0
  %154 = vmatprep.mubr.f32.mxu0 0.0
  %155 = vmatmul.mubr.f32.gmra.mrb[0].mxu0 %v54
  %v156 = vpop.f32.mrb[0].mxu0
  %v157 = vadd.f32 0.0, %v156
  %v158 = vpop.f32.mrb[0].mxu0
  %159 = vmatprep.mubr.f32.mxu0 0.0
  %160 = vmatmul.mubr.f32.gmra.mrb[0].mxu0 %v55
  %v161 = vpop.f32.mrb[0].mxu0
  %v162 = vadd.f32 0.0, %v161
  %v163 = vpop.f32.mrb[0].mxu0
  %164 = vmatprep.mubr.f32.mxu0 0.0
  %165 = vmatmul.mubr.f32.gmra.mrb[0].mxu0 %v56
  %v166 = vpop.f32.mrb[0].mxu0
  %v167 = vadd.f32 0.0, %v166
  %v168 = vpop.f32.mrb[0].mxu0
  %169 = vmatprep.mubr.f32.mxu0 0.0
  %170 = vmatmul.mubr.f32.gmra.mrb[0].mxu0 %v57
  %v171 = vpop.f32.mrb[0].mxu0
  %v172 = vadd.f32 0.0, %v171
  %v173 = vpop.f32.mrb[0].mxu0
  %174 = vmatprep.mubr.f32.mxu0 0.0
  %175 = vmatmul.mubr.f32.gmra.mrb[0].mxu0 %v58
  %v176 = vpop.f32.mrb[0].mxu0
  %v177 = vadd.f32 0.0, %v176
  %v178 = vpop.f32.mrb[0].mxu0
  %179 = vmatprep.mubr.f32.mxu0 0.0
  %180 = vmatmul.mubr.f32.gmra.mrb[0].mxu0 %v59
  %v181 = vpop.f32.mrb[0].mxu0
  %v182 = vadd.f32 0.0, %v181
  %v183 = vpop.f32.mrb[0].mxu0
  %184 = vmatprep.mubr.f32.mxu0 0.0
  %185 = vmatmul.mubr.f32.gmra.mrb[0].mxu0 %v60
  %v186 = vpop.f32.mrb[0].mxu0
  %v187 = vadd.f32 0.0, %v186
  %v188 = vpop.f32.mrb[0].mxu0
  %189 = vmatprep.mubr.f32.mxu0 0.0
  %190 = vmatmul.mubr.f32.gmra.mrb[0].mxu0 %v61
  %v191 = vpop.f32.mrb[0].mxu0
  %v192 = vadd.f32 0.0, %v191
  %v193 = vpop.f32.mrb[0].mxu0
  %194 = vmatprep.mubr.f32.mxu0 0.0
  %195 = vmatmul.mubr.f32.gmra.mrb[0].mxu0 %v62
  %v196 = vpop.f32.mrb[0].mxu0
  %v197 = vadd.f32 0.0, %v196
  %v198 = vpop.f32.mrb[0].mxu0
  %199 = vmatprep.mubr.f32.mxu0 0.0
  %200 = vmatmul.mubr.f32.gmra.mrb[0].mxu0 %v63
  %v201 = vpop.f32.mrb[0].mxu0
  %v202 = vadd.f32 0.0, %v201
  %v203 = vpop.f32.mrb[0].mxu0
  %204 = vmatprep.mubr.f32.mxu0 0.0
  %205 = vmatmul.mubr.f32.gmra.mrb[0].mxu0 %v64
  %v206 = vpop.f32.mrb[0].mxu0
  %v207 = vadd.f32 0.0, %v206
  %v208 = vpop.f32.mrb[0].mxu0
  %209 = vmatprep.mubr.f32.mxu0 0.0
  %210 = vmatmul.mubr.f32.gmra.mrb[0].mxu0 %v65
  %v211 = vpop.f32.mrb[0].mxu0
  %v212 = vadd.f32 0.0, %v211
  %v213 = vpop.f32.mrb[0].mxu0
  %214 = vmatprep.mubr.f32.mxu0 0.0
  %215 = vmatmul.mubr.f32.gmra.mrb[0].mxu0 %v66
  %v216 = vpop.f32.mrb[0].mxu0
  %v217 = vadd.f32 0.0, %v216
  %v218 = vpop.f32.mrb[0].mxu0
  %219 = vmatprep.mubr.f32.mxu0 0.0
  %220 = vmatmul.mubr.f32.gmra.mrb[0].mxu0 %v67
  %v221 = vpop.f32.mrb[0].mxu0
  %v222 = vadd.f32 0.0, %v221
  %v223 = vpop.f32.mrb[0].mxu0
  %224 = vmatprep.mubr.f32.mxu0 0.0
  %225 = vmatmul.mubr.f32.gmra.mrb[0].mxu0 %v68
  %v226 = vpop.f32.mrb[0].mxu0
  %v227 = vadd.f32 0.0, %v226
  %v228 = vpop.f32.mrb[0].mxu0
  %229 = vdwg.mxu0
  %v230 = vadd.f32 %v37, %v152
  %v231 = vadd.f32 %v38, %v157
  %v232 = vadd.f32 %v39, %v162
  %v233 = vadd.f32 %v40, %v167
  %v234 = vadd.f32 %v41, %v172
  %v235 = vadd.f32 %v42, %v177
  %v236 = vadd.f32 %v43, %v182
  %v237 = vadd.f32 %v44, %v187
  %v238 = vadd.f32 %v45, %v192
  %v239 = vadd.f32 %v46, %v197
  %v240 = vadd.f32 %v47, %v202
  %v241 = vadd.f32 %v48, %v207
  %v242 = vadd.f32 %v49, %v212
  %v243 = vadd.f32 %v50, %v217
  %v244 = vadd.f32 %v51, %v222
  %v245 = vadd.f32 %v52, %v227
  %246 = vst [vmem:[#allocation2] sm:$0xff] %v230
  %247 = vst [vmem:[#allocation2 + $0x8] sm:$0xff] %v231
  %248 = vst [vmem:[#allocation2 + $0x10] sm:$0xff] %v232
  %249 = vst [vmem:[#allocation2 + $0x18] sm:$0xff] %v233
  %250 = vst [vmem:[#allocation2 + $0x20] sm:$0xff] %v234
  %251 = vst [vmem:[#allocation2 + $0x28] sm:$0xff] %v235
  %252 = vst [vmem:[#allocation2 + $0x30] sm:$0xff] %v236
  %253 = vst [vmem:[#allocation2 + $0x38] sm:$0xff] %v237
  %254 = vst [vmem:[#allocation2 + $0x40] sm:$0xff] %v238
  %255 = vst [vmem:[#allocation2 + $0x48] sm:$0xff] %v239
  %256 = vst [vmem:[#allocation2 + $0x50] sm:$0xff] %v240
  %257 = vst [vmem:[#allocation2 + $0x58] sm:$0xff] %v241
  %258 = vst [vmem:[#allocation2 + $0x60] sm:$0xff] %v242
  %259 = vst [vmem:[#allocation2 + $0x68] sm:$0xff] %v243
  %260 = vst [vmem:[#allocation2 + $0x70] sm:$0xff] %v244
  %261 = vst [vmem:[#allocation2 + $0x78] sm:$0xff] %v245
  // Predicated region
  $region22: #{global_generator_forward.11} parent=0 // pred_check
    %p262 = pneg %p17
  $region23: #{global_generator_forward.11} parent=0 // pred_check_branch
    %264 = sbr.rel (%p262) target = $region25
  $region24: #{global_generator_forward.11} parent=0 // pred_region
    %v265 = vld [vmem:[#allocation2] sm:$0xff]
    %v266 = vld [vmem:[#allocation2 + $0x8] sm:$0xff]
    %v267 = vld [vmem:[#allocation2 + $0x10] sm:$0xff]
    %v268 = vld [vmem:[#allocation2 + $0x18] sm:$0xff]
    %v269 = vld [vmem:[#allocation2 + $0x20] sm:$0xff]
    %v270 = vld [vmem:[#allocation2 + $0x28] sm:$0xff]
    %v271 = vld [vmem:[#allocation2 + $0x30] sm:$0xff]
    %v272 = vld [vmem:[#allocation2 + $0x38] sm:$0xff]
    %v273 = vld [vmem:[#allocation2 + $0x40] sm:$0xff]
    %v274 = vld [vmem:[#allocation2 + $0x48] sm:$0xff]
    %v275 = vld [vmem:[#allocation2 + $0x50] sm:$0xff]
    %v276 = vld [vmem:[#allocation2 + $0x58] sm:$0xff]
    %v277 = vld [vmem:[#allocation2 + $0x60] sm:$0xff]
    %v278 = vld [vmem:[#allocation2 + $0x68] sm:$0xff]
    %v279 = vld [vmem:[#allocation2 + $0x70] sm:$0xff]
    %v280 = vld [vmem:[#allocation2 + $0x78] sm:$0xff]
    %v281 = vld [vmem:[%s2] sm:$0x1]
    %v283 = vlaneseq
    %v284 = vshrl.u32 %v283, 7
    %v285 = vsub.s32 0, %v284
    %v286 = vrot.slane %v281, %v285
    %v288 = vmul.f32 %v265, %v286
    %v289 = vmul.f32 %v266, %v286
    %v290 = vmul.f32 %v267, %v286
    %v291 = vmul.f32 %v268, %v286
    %v292 = vmul.f32 %v269, %v286
    %v293 = vmul.f32 %v270, %v286
    %v294 = vmul.f32 %v271, %v286
    %v295 = vmul.f32 %v272, %v286
    %v296 = vmul.f32 %v273, %v286
    %v297 = vmul.f32 %v274, %v286
    %v298 = vmul.f32 %v275, %v286
    %v299 = vmul.f32 %v276, %v286
    %v300 = vmul.f32 %v277, %v286
    %v301 = vmul.f32 %v278, %v286
    %v302 = vmul.f32 %v279, %v286
    %v303 = vmul.f32 %v280, %v286
    %v304 = vld [vmem:[%s3] sm:$0x1]
    %v306 = vlaneseq
    %v307 = vshrl.u32 %v306, 7
    %v308 = vsub.s32 0, %v307
    %v309 = vrot.slane %v304, %v308
    %v311 = vadd.f32 %v288, %v309
    %v312 = vadd.f32 %v289, %v309
    %v313 = vadd.f32 %v290, %v309
    %v314 = vadd.f32 %v291, %v309
    %v315 = vadd.f32 %v292, %v309
    %v316 = vadd.f32 %v293, %v309
    %v317 = vadd.f32 %v294, %v309
    %v318 = vadd.f32 %v295, %v309
    %v319 = vadd.f32 %v296, %v309
    %v320 = vadd.f32 %v297, %v309
    %v321 = vadd.f32 %v298, %v309
    %v322 = vadd.f32 %v299, %v309
    %v323 = vadd.f32 %v300, %v309
    %v324 = vadd.f32 %v301, %v309
    %v325 = vadd.f32 %v302, %v309
    %v326 = vadd.f32 %v303, %v309
    %v327 = vmax.f32 %v311, 0.0
    %v328 = vmax.f32 %v312, 0.0
    %v329 = vmax.f32 %v313, 0.0
    %v330 = vmax.f32 %v314, 0.0
    %v331 = vmax.f32 %v315, 0.0
    %v332 = vmax.f32 %v316, 0.0
    %v333 = vmax.f32 %v317, 0.0
    %v334 = vmax.f32 %v318, 0.0
    %v335 = vmax.f32 %v319, 0.0
    %v336 = vmax.f32 %v320, 0.0
    %v337 = vmax.f32 %v321, 0.0
    %v338 = vmax.f32 %v322, 0.0
    %v339 = vmax.f32 %v323, 0.0
    %v340 = vmax.f32 %v324, 0.0
    %v341 = vmax.f32 %v325, 0.0
    %v342 = vmax.f32 %v326, 0.0
    %343 = vst [vmem:[%s4] sm:$0xff] %v327
    %344 = vst [vmem:[%s4 + $0x8] sm:$0xff] %v328
    %345 = vst [vmem:[%s4 + $0x10] sm:$0xff] %v329
    %346 = vst [vmem:[%s4 + $0x18] sm:$0xff] %v330
    %347 = vst [vmem:[%s4 + $0x20] sm:$0xff] %v331
    %348 = vst [vmem:[%s4 + $0x28] sm:$0xff] %v332
    %349 = vst [vmem:[%s4 + $0x30] sm:$0xff] %v333
    %350 = vst [vmem:[%s4 + $0x38] sm:$0xff] %v334
    %351 = vst [vmem:[%s4 + $0x40] sm:$0xff] %v335
    %352 = vst [vmem:[%s4 + $0x48] sm:$0xff] %v336
    %353 = vst [vmem:[%s4 + $0x50] sm:$0xff] %v337
    %354 = vst [vmem:[%s4 + $0x58] sm:$0xff] %v338
    %355 = vst [vmem:[%s4 + $0x60] sm:$0xff] %v339
    %356 = vst [vmem:[%s4 + $0x68] sm:$0xff] %v340
    %357 = vst [vmem:[%s4 + $0x70] sm:$0xff] %v341
    %358 = vst [vmem:[%s4 + $0x78] sm:$0xff] %v342
  $region25: #{global_generator_forward.11} parent=0 // pred_fallthru
    _
  // Predicated region
  $region26: #{global_generator_forward.11} parent=0 // pred_check
    _
  $region27: #{global_generator_forward.11} parent=0 // pred_check_branch
    %360 = sbr.rel (0) target = $region29
  $region28: #{global_generator_forward.11} parent=0 // pred_region
    _
  $region29: #{global_generator_forward.11} parent=0 // pred_fallthru
    _
  // Predicated region
  $region30: #{global_generator_forward.11} parent=0 // pred_check
    _
  $region31: #{global_generator_forward.11} parent=0 // pred_check_branch
    %362 = sbr.rel (0) target = $region33
  $region32: #{global_generator_forward.11} parent=0 // pred_region
    _
  $region33: #{global_generator_forward.11} parent=0 // pred_fallthru
    _

// kernel: global_generator_forward.12
$region0: #{global_generator_forward.12}
  #allocation0 [shape = 'u32[]', space=smem, size = 0x4, offset = 0x4, fixed_abs, tag = 'smem constant byte address 0x4 - core index']
  #allocation1 [shape = 'u32[144,128]{1,0:T(1,128)}', space=vmem, size = 0x12000, scoped, tag = 'internal scratch']
  #allocation2 [shape = 'f32[32,128]{1,0:T(8,128)}', space=vmem, size = 0x4000, scoped, tag = 'scratch operand']
  %s0 = inlined_call_operand.vmem [shape: f32[32,256], index: 0, kind: input, shape index: {}]
  %s1 = inlined_call_operand.vmem [shape: f32[256,128], index: 1, kind: input, shape index: {}]
  %s2 = inlined_call_operand.vmem [shape: f32[1,128], index: 2, kind: input, shape index: {}]
  %s3 = inlined_call_operand.vmem [shape: f32[1,128], index: 3, kind: input, shape index: {}]
  %s4 = inlined_call_operand.vmem [shape: f32[32,128], index: 4, kind: output, shape index: {}]
  %s5 = sld [smem:[#allocation0]]
  $region34: #{global_generator_forward.12} parent=0
    _
  %s7 = ssub.s32 1, %s5
  %s8 = scalar_select 0, %s7, %s5
  // Predicated region
  $region2: #{global_generator_forward.12} parent=0 // pred_check
    _
  $region3: #{global_generator_forward.12} parent=0 // pred_check_branch
    %10 = sbr.rel (0) target = $region5
  $region4: #{global_generator_forward.12} parent=0 // pred_region
    _
  $region5: #{global_generator_forward.12} parent=0 // pred_fallthru
    _
  // Predicated region
  $region6: #{global_generator_forward.12} parent=0 // pred_check
    _
  $region7: #{global_generator_forward.12} parent=0 // pred_check_branch
    %12 = sbr.rel (0) target = $region9
  $region8: #{global_generator_forward.12} parent=0 // pred_region
    _
  $region9: #{global_generator_forward.12} parent=0 // pred_fallthru
    _
  // Predicated region
  $region10: #{global_generator_forward.12} parent=0 // pred_check
    _
  $region11: #{global_generator_forward.12} parent=0 // pred_check_branch
    %14 = sbr.rel (0) target = $region13
  $region12: #{global_generator_forward.12} parent=0 // pred_region
    _
  $region13: #{global_generator_forward.12} parent=0 // pred_fallthru
    _
  // Predicated region
  $region14: #{global_generator_forward.12} parent=0 // pred_check
    _
  $region15: #{global_generator_forward.12} parent=0 // pred_check_branch
    %16 = sbr.rel (0) target = $region17
  $region16: #{global_generator_forward.12} parent=0 // pred_region
    _
  $region17: #{global_generator_forward.12} parent=0 // pred_fallthru
    _
  %p17 = scmp.eq.s32.totalorder 0, 0
  // Predicated region
  $region18: #{global_generator_forward.12} parent=0 // pred_check
    %p18 = pneg %p17
  $region19: #{global_generator_forward.12} parent=0 // pred_check_branch
    %20 = sbr.rel (%p18) target = $region21
  $region20: #{global_generator_forward.12} parent=0 // pred_region
    %21 = vst [vmem:[#allocation2] sm:$0xff] 0.0
    %22 = vst [vmem:[#allocation2 + $0x8] sm:$0xff] 0.0
    %23 = vst [vmem:[#allocation2 + $0x10] sm:$0xff] 0.0
    %24 = vst [vmem:[#allocation2 + $0x18] sm:$0xff] 0.0
  $region21: #{global_generator_forward.12} parent=0 // pred_fallthru
    _
  %v25 = vld [vmem:[#allocation2] sm:$0xff]
  %v26 = vld [vmem:[#allocation2 + $0x8] sm:$0xff]
  %v27 = vld [vmem:[#allocation2 + $0x10] sm:$0xff]
  %v28 = vld [vmem:[#allocation2 + $0x18] sm:$0xff]
  %v29 = vld [vmem:[%s0] sm:$0xff]
  %v30 = vld [vmem:[%s0 + $0x8] sm:$0xff]
  %v31 = vld [vmem:[%s0 + $0x10] sm:$0xff]
  %v32 = vld [vmem:[%s0 + $0x18] sm:$0xff]
  %v33 = vld [vmem:[%s0 + $0x20] sm:$0xff]
  %v34 = vld [vmem:[%s0 + $0x28] sm:$0xff]
  %v35 = vld [vmem:[%s0 + $0x30] sm:$0xff]
  %v36 = vld [vmem:[%s0 + $0x38] sm:$0xff]
  %v37 = vld [vmem:[%s1] sm:$0xff]
  %v38 = vld [vmem:[%s1 + $0x8] sm:$0xff]
  %v39 = vld [vmem:[%s1 + $0x10] sm:$0xff]
  %v40 = vld [vmem:[%s1 + $0x18] sm:$0xff]
  %v41 = vld [vmem:[%s1 + $0x20] sm:$0xff]
  %v42 = vld [vmem:[%s1 + $0x28] sm:$0xff]
  %v43 = vld [vmem:[%s1 + $0x30] sm:$0xff]
  %v44 = vld [vmem:[%s1 + $0x38] sm:$0xff]
  %v45 = vld [vmem:[%s1 + $0x40] sm:$0xff]
  %v46 = vld [vmem:[%s1 + $0x48] sm:$0xff]
  %v47 = vld [vmem:[%s1 + $0x50] sm:$0xff]
  %v48 = vld [vmem:[%s1 + $0x58] sm:$0xff]
  %v49 = vld [vmem:[%s1 + $0x60] sm:$0xff]
  %v50 = vld [vmem:[%s1 + $0x68] sm:$0xff]
  %v51 = vld [vmem:[%s1 + $0x70] sm:$0xff]
  %v52 = vld [vmem:[%s1 + $0x78] sm:$0xff]
  %v53 = vld [vmem:[%s1 + $0x80] sm:$0xff]
  %v54 = vld [vmem:[%s1 + $0x88] sm:$0xff]
  %v55 = vld [vmem:[%s1 + $0x90] sm:$0xff]
  %v56 = vld [vmem:[%s1 + $0x98] sm:$0xff]
  %v57 = vld [vmem:[%s1 + $0xa0] sm:$0xff]
  %v58 = vld [vmem:[%s1 + $0xa8] sm:$0xff]
  %v59 = vld [vmem:[%s1 + $0xb0] sm:$0xff]
  %v60 = vld [vmem:[%s1 + $0xb8] sm:$0xff]
  %v61 = vld [vmem:[%s1 + $0xc0] sm:$0xff]
  %v62 = vld [vmem:[%s1 + $0xc8] sm:$0xff]
  %v63 = vld [vmem:[%s1 + $0xd0] sm:$0xff]
  %v64 = vld [vmem:[%s1 + $0xd8] sm:$0xff]
  %v65 = vld [vmem:[%s1 + $0xe0] sm:$0xff]
  %v66 = vld [vmem:[%s1 + $0xe8] sm:$0xff]
  %v67 = vld [vmem:[%s1 + $0xf0] sm:$0xff]
  %v68 = vld [vmem:[%s1 + $0xf8] sm:$0xff]
  %69 = vmatprep.subr.mxu0 0.0
  %70 = vmatpush1.msra.mxu0 %v37
  %71 = vmatprep.subr.mxu0 0.0
  %72 = vmatpush1.msra.mxu0 %v38
  %73 = vmatprep.subr.mxu0 0.0
  %74 = vmatpush1.msra.mxu0 %v39
  %75 = vmatprep.subr.mxu0 0.0
  %76 = vmatpush1.msra.mxu0 %v40
  %77 = vmatprep.subr.mxu0 0.0
  %78 = vmatpush1.msra.mxu0 %v41
  %79 = vmatprep.subr.mxu0 0.0
  %80 = vmatpush1.msra.mxu0 %v42
  %81 = vmatprep.subr.mxu0 0.0
  %82 = vmatpush1.msra.mxu0 %v43
  %83 = vmatprep.subr.mxu0 0.0
  %84 = vmatpush1.msra.mxu0 %v44
  %85 = vmatprep.subr.mxu0 0.0
  %86 = vmatpush1.msra.mxu0 %v45
  %87 = vmatprep.subr.mxu0 0.0
  %88 = vmatpush1.msra.mxu0 %v46
  %89 = vmatprep.subr.mxu0 0.0
  %90 = vmatpush1.msra.mxu0 %v47
  %91 = vmatprep.subr.mxu0 0.0
  %92 = vmatpush1.msra.mxu0 %v48
  %93 = vmatprep.subr.mxu0 0.0
  %94 = vmatpush1.msra.mxu0 %v49
  %95 = vmatprep.subr.mxu0 0.0
  %96 = vmatpush1.msra.mxu0 %v50
  %97 = vmatprep.subr.mxu0 0.0
  %98 = vmatpush1.msra.mxu0 %v51
  %99 = vmatprep.subr.mxu0 0.0
  %100 = vmatpush1.msra.mxu0 %v52
  %101 = vmatprep.subr.mxu0 0.0
  %102 = vmatpush1.msra.mxu0 %v53
  %103 = vmatprep.subr.mxu0 0.0
  %104 = vmatpush1.msra.mxu0 %v54
  %105 = vmatprep.subr.mxu0 0.0
  %106 = vmatpush1.msra.mxu0 %v55
  %107 = vmatprep.subr.mxu0 0.0
  %108 = vmatpush1.msra.mxu0 %v56
  %109 = vmatprep.subr.mxu0 0.0
  %110 = vmatpush1.msra.mxu0 %v57
  %111 = vmatprep.subr.mxu0 0.0
  %112 = vmatpush1.msra.mxu0 %v58
  %113 = vmatprep.subr.mxu0 0.0
  %114 = vmatpush1.msra.mxu0 %v59
  %115 = vmatprep.subr.mxu0 0.0
  %116 = vmatpush1.msra.mxu0 %v60
  %117 = vmatprep.subr.mxu0 0.0
  %118 = vmatpush1.msra.mxu0 %v61
  %119 = vmatprep.subr.mxu0 0.0
  %120 = vmatpush1.msra.mxu0 %v62
  %121 = vmatprep.subr.mxu0 0.0
  %122 = vmatpush1.msra.mxu0 %v63
  %123 = vmatprep.subr.mxu0 0.0
  %124 = vmatpush1.msra.mxu0 %v64
  %125 = vmatprep.subr.mxu0 0.0
  %126 = vmatpush1.msra.mxu0 %v65
  %127 = vmatprep.subr.mxu0 0.0
  %128 = vmatpush1.msra.mxu0 %v66
  %129 = vmatprep.subr.mxu0 0.0
  %130 = vmatpush1.msra.mxu0 %v67
  %131 = vmatprep.subr.mxu0 0.0
  %132 = vmatpush1.msra.mxu0 %v68
  %133 = vmatprep.mubr.f32.mxu0 %v30
  %134 = vmatmul.mubr.f32.gmra.mrb[0].mxu0 %v29
  %v135 = vpop.f32.mrb[0].mxu0
  %v136 = vadd.f32 0.0, %v135
  %v137 = vpop.f32.mrb[0].mxu0
  %138 = vmatprep.mubr.f32.mxu0 %v32
  %139 = vmatmul.mubr.f32.gmra.mrb[0].mxu0 %v31
  %v140 = vpop.f32.mrb[0].mxu0
  %v141 = vadd.f32 0.0, %v140
  %v142 = vpop.f32.mrb[0].mxu0
  %143 = vmatprep.mubr.f32.mxu0 %v34
  %144 = vmatmul.mubr.f32.gmra.mrb[0].mxu0 %v33
  %v145 = vpop.f32.mrb[0].mxu0
  %v146 = vadd.f32 0.0, %v145
  %v147 = vpop.f32.mrb[0].mxu0
  %148 = vmatprep.mubr.f32.mxu0 %v36
  %149 = vmatmul.mubr.f32.gmra.mrb[0].mxu0 %v35
  %v150 = vpop.f32.mrb[0].mxu0
  %v151 = vadd.f32 0.0, %v150
  %v152 = vpop.f32.mrb[0].mxu0
  %153 = vdwg.mxu0
  %v154 = vadd.f32 %v25, %v136
  %v155 = vadd.f32 %v26, %v141
  %v156 = vadd.f32 %v27, %v146
  %v157 = vadd.f32 %v28, %v151
  %158 = vst [vmem:[#allocation2] sm:$0xff] %v154
  %159 = vst [vmem:[#allocation2 + $0x8] sm:$0xff] %v155
  %160 = vst [vmem:[#allocation2 + $0x10] sm:$0xff] %v156
  %161 = vst [vmem:[#allocation2 + $0x18] sm:$0xff] %v157
  // Predicated region
  $region22: #{global_generator_forward.12} parent=0 // pred_check
    %p162 = pneg %p17
  $region23: #{global_generator_forward.12} parent=0 // pred_check_branch
    %164 = sbr.rel (%p162) target = $region25
  $region24: #{global_generator_forward.12} parent=0 // pred_region
    %v165 = vld [vmem:[#allocation2] sm:$0xff]
    %v166 = vld [vmem:[#allocation2 + $0x8] sm:$0xff]
    %v167 = vld [vmem:[#allocation2 + $0x10] sm:$0xff]
    %v168 = vld [vmem:[#allocation2 + $0x18] sm:$0xff]
    %v169 = vld [vmem:[%s2] sm:$0x1]
    %v171 = vlaneseq
    %v172 = vshrl.u32 %v171, 7
    %v173 = vsub.s32 0, %v172
    %v174 = vrot.slane %v169, %v173
    %v176 = vmul.f32 %v165, %v174
    %v177 = vmul.f32 %v166, %v174
    %v178 = vmul.f32 %v167, %v174
    %v179 = vmul.f32 %v168, %v174
    %v180 = vld [vmem:[%s3] sm:$0x1]
    %v182 = vlaneseq
    %v183 = vshrl.u32 %v182, 7
    %v184 = vsub.s32 0, %v183
    %v185 = vrot.slane %v180, %v184
    %v187 = vadd.f32 %v176, %v185
    %v188 = vadd.f32 %v177, %v185
    %v189 = vadd.f32 %v178, %v185
    %v190 = vadd.f32 %v179, %v185
    %v191 = vmax.f32 %v187, 0.0
    %v192 = vmax.f32 %v188, 0.0
    %v193 = vmax.f32 %v189, 0.0
    %v194 = vmax.f32 %v190, 0.0
    %195 = vst [vmem:[%s4] sm:$0xff] %v191
    %196 = vst [vmem:[%s4 + $0x8] sm:$0xff] %v192
    %197 = vst [vmem:[%s4 + $0x10] sm:$0xff] %v193
    %198 = vst [vmem:[%s4 + $0x18] sm:$0xff] %v194
  $region25: #{global_generator_forward.12} parent=0 // pred_fallthru
    _
  // Predicated region
  $region26: #{global_generator_forward.12} parent=0 // pred_check
    _
  $region27: #{global_generator_forward.12} parent=0 // pred_check_branch
    %200 = sbr.rel (0) target = $region29
  $region28: #{global_generator_forward.12} parent=0 // pred_region
    _
  $region29: #{global_generator_forward.12} parent=0 // pred_fallthru
    _
  // Predicated region
  $region30: #{global_generator_forward.12} parent=0 // pred_check
    _
  $region31: #{global_generator_forward.12} parent=0 // pred_check_branch
    %202 = sbr.rel (0) target = $region33
  $region32: #{global_generator_forward.12} parent=0 // pred_region
    _
  $region33: #{global_generator_forward.12} parent=0 // pred_fallthru
    _

// kernel: global_generator_forward.13
$region0: #{global_generator_forward.13}
  #allocation0 [shape = 'u32[]', space=smem, size = 0x4, offset = 0x4, fixed_abs, tag = 'smem constant byte address 0x4 - core index']
  #allocation1 [shape = 'u32[144,128]{1,0:T(1,128)}', space=vmem, size = 0x12000, scoped, tag = 'internal scratch']
  #allocation2 [shape = 'f32[32,128]{1,0:T(8,128)}', space=vmem, size = 0x4000, scoped, tag = 'scratch operand']
  %s0 = inlined_call_operand.vmem [shape: f32[32,384], index: 0, kind: input, shape index: {}]
  %s1 = inlined_call_operand.vmem [shape: f32[384,128], index: 1, kind: input, shape index: {}]
  %s2 = inlined_call_operand.vmem [shape: f32[1,128], index: 2, kind: input, shape index: {}]
  %s3 = inlined_call_operand.vmem [shape: f32[1,128], index: 3, kind: input, shape index: {}]
  %s4 = inlined_call_operand.vmem [shape: f32[32,128], index: 4, kind: output, shape index: {}]
  %s5 = sld [smem:[#allocation0]]
  $region34: #{global_generator_forward.13} parent=0
    _
  %s7 = ssub.s32 1, %s5
  %s8 = scalar_select 0, %s7, %s5
  // Predicated region
  $region2: #{global_generator_forward.13} parent=0 // pred_check
    _
  $region3: #{global_generator_forward.13} parent=0 // pred_check_branch
    %10 = sbr.rel (0) target = $region5
  $region4: #{global_generator_forward.13} parent=0 // pred_region
    _
  $region5: #{global_generator_forward.13} parent=0 // pred_fallthru
    _
  // Predicated region
  $region6: #{global_generator_forward.13} parent=0 // pred_check
    _
  $region7: #{global_generator_forward.13} parent=0 // pred_check_branch
    %12 = sbr.rel (0) target = $region9
  $region8: #{global_generator_forward.13} parent=0 // pred_region
    _
  $region9: #{global_generator_forward.13} parent=0 // pred_fallthru
    _
  // Predicated region
  $region10: #{global_generator_forward.13} parent=0 // pred_check
    _
  $region11: #{global_generator_forward.13} parent=0 // pred_check_branch
    %14 = sbr.rel (0) target = $region13
  $region12: #{global_generator_forward.13} parent=0 // pred_region
    _
  $region13: #{global_generator_forward.13} parent=0 // pred_fallthru
    _
  // Predicated region
  $region14: #{global_generator_forward.13} parent=0 // pred_check
    _
  $region15: #{global_generator_forward.13} parent=0 // pred_check_branch
    %16 = sbr.rel (0) target = $region17
  $region16: #{global_generator_forward.13} parent=0 // pred_region
    _
  $region17: #{global_generator_forward.13} parent=0 // pred_fallthru
    _
  %p17 = scmp.eq.s32.totalorder 0, 0
  // Predicated region
  $region18: #{global_generator_forward.13} parent=0 // pred_check
    %p18 = pneg %p17
  $region19: #{global_generator_forward.13} parent=0 // pred_check_branch
    %20 = sbr.rel (%p18) target = $region21
  $region20: #{global_generator_forward.13} parent=0 // pred_region
    %21 = vst [vmem:[#allocation2] sm:$0xff] 0.0
    %22 = vst [vmem:[#allocation2 + $0x8] sm:$0xff] 0.0
    %23 = vst [vmem:[#allocation2 + $0x10] sm:$0xff] 0.0
    %24 = vst [vmem:[#allocation2 + $0x18] sm:$0xff] 0.0
  $region21: #{global_generator_forward.13} parent=0 // pred_fallthru
    _
  %v25 = vld [vmem:[#allocation2] sm:$0xff]
  %v26 = vld [vmem:[#allocation2 + $0x8] sm:$0xff]
  %v27 = vld [vmem:[#allocation2 + $0x10] sm:$0xff]
  %v28 = vld [vmem:[#allocation2 + $0x18] sm:$0xff]
  %v29 = vld [vmem:[%s0] sm:$0xff]
  %v30 = vld [vmem:[%s0 + $0x8] sm:$0xff]
  %v31 = vld [vmem:[%s0 + $0x10] sm:$0xff]
  %v32 = vld [vmem:[%s0 + $0x18] sm:$0xff]
  %v33 = vld [vmem:[%s0 + $0x20] sm:$0xff]
  %v34 = vld [vmem:[%s0 + $0x28] sm:$0xff]
  %v35 = vld [vmem:[%s0 + $0x30] sm:$0xff]
  %v36 = vld [vmem:[%s0 + $0x38] sm:$0xff]
  %v37 = vld [vmem:[%s0 + $0x40] sm:$0xff]
  %v38 = vld [vmem:[%s0 + $0x48] sm:$0xff]
  %v39 = vld [vmem:[%s0 + $0x50] sm:$0xff]
  %v40 = vld [vmem:[%s0 + $0x58] sm:$0xff]
  %v41 = vld [vmem:[%s1] sm:$0xff]
  %v42 = vld [vmem:[%s1 + $0x8] sm:$0xff]
  %v43 = vld [vmem:[%s1 + $0x10] sm:$0xff]
  %v44 = vld [vmem:[%s1 + $0x18] sm:$0xff]
  %v45 = vld [vmem:[%s1 + $0x20] sm:$0xff]
  %v46 = vld [vmem:[%s1 + $0x28] sm:$0xff]
  %v47 = vld [vmem:[%s1 + $0x30] sm:$0xff]
  %v48 = vld [vmem:[%s1 + $0x38] sm:$0xff]
  %v49 = vld [vmem:[%s1 + $0x40] sm:$0xff]
  %v50 = vld [vmem:[%s1 + $0x48] sm:$0xff]
  %v51 = vld [vmem:[%s1 + $0x50] sm:$0xff]
  %v52 = vld [vmem:[%s1 + $0x58] sm:$0xff]
  %v53 = vld [vmem:[%s1 + $0x60] sm:$0xff]
  %v54 = vld [vmem:[%s1 + $0x68] sm:$0xff]
  %v55 = vld [vmem:[%s1 + $0x70] sm:$0xff]
  %v56 = vld [vmem:[%s1 + $0x78] sm:$0xff]
  %v57 = vld [vmem:[%s1 + $0x80] sm:$0xff]
  %v58 = vld [vmem:[%s1 + $0x88] sm:$0xff]
  %v59 = vld [vmem:[%s1 + $0x90] sm:$0xff]
  %v60 = vld [vmem:[%s1 + $0x98] sm:$0xff]
  %v61 = vld [vmem:[%s1 + $0xa0] sm:$0xff]
  %v62 = vld [vmem:[%s1 + $0xa8] sm:$0xff]
  %v63 = vld [vmem:[%s1 + $0xb0] sm:$0xff]
  %v64 = vld [vmem:[%s1 + $0xb8] sm:$0xff]
  %v65 = vld [vmem:[%s1 + $0xc0] sm:$0xff]
  %v66 = vld [vmem:[%s1 + $0xc8] sm:$0xff]
  %v67 = vld [vmem:[%s1 + $0xd0] sm:$0xff]
  %v68 = vld [vmem:[%s1 + $0xd8] sm:$0xff]
  %v69 = vld [vmem:[%s1 + $0xe0] sm:$0xff]
  %v70 = vld [vmem:[%s1 + $0xe8] sm:$0xff]
  %v71 = vld [vmem:[%s1 + $0xf0] sm:$0xff]
  %v72 = vld [vmem:[%s1 + $0xf8] sm:$0xff]
  %v73 = vld [vmem:[%s1 + $0x100] sm:$0xff]
  %v74 = vld [vmem:[%s1 + $0x108] sm:$0xff]
  %v75 = vld [vmem:[%s1 + $0x110] sm:$0xff]
  %v76 = vld [vmem:[%s1 + $0x118] sm:$0xff]
  %v77 = vld [vmem:[%s1 + $0x120] sm:$0xff]
  %v78 = vld [vmem:[%s1 + $0x128] sm:$0xff]
  %v79 = vld [vmem:[%s1 + $0x130] sm:$0xff]
  %v80 = vld [vmem:[%s1 + $0x138] sm:$0xff]
  %v81 = vld [vmem:[%s1 + $0x140] sm:$0xff]
  %v82 = vld [vmem:[%s1 + $0x148] sm:$0xff]
  %v83 = vld [vmem:[%s1 + $0x150] sm:$0xff]
  %v84 = vld [vmem:[%s1 + $0x158] sm:$0xff]
  %v85 = vld [vmem:[%s1 + $0x160] sm:$0xff]
  %v86 = vld [vmem:[%s1 + $0x168] sm:$0xff]
  %v87 = vld [vmem:[%s1 + $0x170] sm:$0xff]
  %v88 = vld [vmem:[%s1 + $0x178] sm:$0xff]
  %89 = vmatprep.subr.mxu0 0.0
  %90 = vmatpush1.msra.mxu0 %v41
  %91 = vmatprep.subr.mxu0 0.0
  %92 = vmatpush1.msra.mxu0 %v42
  %93 = vmatprep.subr.mxu0 0.0
  %94 = vmatpush1.msra.mxu0 %v43
  %95 = vmatprep.subr.mxu0 0.0
  %96 = vmatpush1.msra.mxu0 %v44
  %97 = vmatprep.subr.mxu0 0.0
  %98 = vmatpush1.msra.mxu0 %v45
  %99 = vmatprep.subr.mxu0 0.0
  %100 = vmatpush1.msra.mxu0 %v46
  %101 = vmatprep.subr.mxu0 0.0
  %102 = vmatpush1.msra.mxu0 %v47
  %103 = vmatprep.subr.mxu0 0.0
  %104 = vmatpush1.msra.mxu0 %v48
  %105 = vmatprep.subr.mxu0 0.0
  %106 = vmatpush1.msra.mxu0 %v49
  %107 = vmatprep.subr.mxu0 0.0
  %108 = vmatpush1.msra.mxu0 %v50
  %109 = vmatprep.subr.mxu0 0.0
  %110 = vmatpush1.msra.mxu0 %v51
  %111 = vmatprep.subr.mxu0 0.0
  %112 = vmatpush1.msra.mxu0 %v52
  %113 = vmatprep.subr.mxu0 0.0
  %114 = vmatpush1.msra.mxu0 %v53
  %115 = vmatprep.subr.mxu0 0.0
  %116 = vmatpush1.msra.mxu0 %v54
  %117 = vmatprep.subr.mxu0 0.0
  %118 = vmatpush1.msra.mxu0 %v55
  %119 = vmatprep.subr.mxu0 0.0
  %120 = vmatpush1.msra.mxu0 %v56
  %121 = vmatprep.subr.mxu0 0.0
  %122 = vmatpush1.msra.mxu0 %v57
  %123 = vmatprep.subr.mxu0 0.0
  %124 = vmatpush1.msra.mxu0 %v58
  %125 = vmatprep.subr.mxu0 0.0
  %126 = vmatpush1.msra.mxu0 %v59
  %127 = vmatprep.subr.mxu0 0.0
  %128 = vmatpush1.msra.mxu0 %v60
  %129 = vmatprep.subr.mxu0 0.0
  %130 = vmatpush1.msra.mxu0 %v61
  %131 = vmatprep.subr.mxu0 0.0
  %132 = vmatpush1.msra.mxu0 %v62
  %133 = vmatprep.subr.mxu0 0.0
  %134 = vmatpush1.msra.mxu0 %v63
  %135 = vmatprep.subr.mxu0 0.0
  %136 = vmatpush1.msra.mxu0 %v64
  %137 = vmatprep.subr.mxu0 0.0
  %138 = vmatpush1.msra.mxu0 %v65
  %139 = vmatprep.subr.mxu0 0.0
  %140 = vmatpush1.msra.mxu0 %v66
  %141 = vmatprep.subr.mxu0 0.0
  %142 = vmatpush1.msra.mxu0 %v67
  %143 = vmatprep.subr.mxu0 0.0
  %144 = vmatpush1.msra.mxu0 %v68
  %145 = vmatprep.subr.mxu0 0.0
  %146 = vmatpush1.msra.mxu0 %v69
  %147 = vmatprep.subr.mxu0 0.0
  %148 = vmatpush1.msra.mxu0 %v70
  %149 = vmatprep.subr.mxu0 0.0
  %150 = vmatpush1.msra.mxu0 %v71
  %151 = vmatprep.subr.mxu0 0.0
  %152 = vmatpush1.msra.mxu0 %v72
  %153 = vmatprep.mubr.f32.mxu0 %v30
  %154 = vmatmul.mubr.f32.gmra.mrb[0].mxu0 %v29
  %v155 = vpop.f32.mrb[0].mxu0
  %v156 = vadd.f32 0.0, %v155
  %v157 = vpop.f32.mrb[0].mxu0
  %158 = vmatprep.mubr.f32.mxu0 %v33
  %159 = vmatmul.mubr.f32.gmra.mrb[0].mxu0 %v32
  %v160 = vpop.f32.mrb[0].mxu0
  %v161 = vadd.f32 0.0, %v160
  %v162 = vpop.f32.mrb[0].mxu0
  %163 = vmatprep.mubr.f32.mxu0 %v36
  %164 = vmatmul.mubr.f32.gmra.mrb[0].mxu0 %v35
  %v165 = vpop.f32.mrb[0].mxu0
  %v166 = vadd.f32 0.0, %v165
  %v167 = vpop.f32.mrb[0].mxu0
  %168 = vmatprep.mubr.f32.mxu0 %v39
  %169 = vmatmul.mubr.f32.gmra.mrb[0].mxu0 %v38
  %v170 = vpop.f32.mrb[0].mxu0
  %v171 = vadd.f32 0.0, %v170
  %v172 = vpop.f32.mrb[0].mxu0
  %173 = vdwg.mxu0
  %174 = vmatprep.subr.mxu0 0.0
  %175 = vmatpush1.msra.mxu0 %v73
  %176 = vmatprep.subr.mxu0 0.0
  %177 = vmatpush1.msra.mxu0 %v74
  %178 = vmatprep.subr.mxu0 0.0
  %179 = vmatpush1.msra.mxu0 %v75
  %180 = vmatprep.subr.mxu0 0.0
  %181 = vmatpush1.msra.mxu0 %v76
  %182 = vmatprep.subr.mxu0 0.0
  %183 = vmatpush1.msra.mxu0 %v77
  %184 = vmatprep.subr.mxu0 0.0
  %185 = vmatpush1.msra.mxu0 %v78
  %186 = vmatprep.subr.mxu0 0.0
  %187 = vmatpush1.msra.mxu0 %v79
  %188 = vmatprep.subr.mxu0 0.0
  %189 = vmatpush1.msra.mxu0 %v80
  %190 = vmatprep.subr.mxu0 0.0
  %191 = vmatpush1.msra.mxu0 %v81
  %192 = vmatprep.subr.mxu0 0.0
  %193 = vmatpush1.msra.mxu0 %v82
  %194 = vmatprep.subr.mxu0 0.0
  %195 = vmatpush1.msra.mxu0 %v83
  %196 = vmatprep.subr.mxu0 0.0
  %197 = vmatpush1.msra.mxu0 %v84
  %198 = vmatprep.subr.mxu0 0.0
  %199 = vmatpush1.msra.mxu0 %v85
  %200 = vmatprep.subr.mxu0 0.0
  %201 = vmatpush1.msra.mxu0 %v86
  %202 = vmatprep.subr.mxu0 0.0
  %203 = vmatpush1.msra.mxu0 %v87
  %204 = vmatprep.subr.mxu0 0.0
  %205 = vmatpush1.msra.mxu0 %v88
  %206 = vmatprep.subr.mxu0 0.0
  %207 = vmatpush1.msra.mxu0 0.0
  %208 = vmatprep.subr.mxu0 0.0
  %209 = vmatpush1.msra.mxu0 0.0
  %210 = vmatprep.subr.mxu0 0.0
  %211 = vmatpush1.msra.mxu0 0.0
  %212 = vmatprep.subr.mxu0 0.0
  %213 = vmatpush1.msra.mxu0 0.0
  %214 = vmatprep.subr.mxu0 0.0
  %215 = vmatpush1.msra.mxu0 0.0
  %216 = vmatprep.subr.mxu0 0.0
  %217 = vmatpush1.msra.mxu0 0.0
  %218 = vmatprep.subr.mxu0 0.0
  %219 = vmatpush1.msra.mxu0 0.0
  %220 = vmatprep.subr.mxu0 0.0
  %221 = vmatpush1.msra.mxu0 0.0
  %222 = vmatprep.subr.mxu0 0.0
  %223 = vmatpush1.msra.mxu0 0.0
  %224 = vmatprep.subr.mxu0 0.0
  %225 = vmatpush1.msra.mxu0 0.0
  %226 = vmatprep.subr.mxu0 0.0
  %227 = vmatpush1.msra.mxu0 0.0
  %228 = vmatprep.subr.mxu0 0.0
  %229 = vmatpush1.msra.mxu0 0.0
  %230 = vmatprep.subr.mxu0 0.0
  %231 = vmatpush1.msra.mxu0 0.0
  %232 = vmatprep.subr.mxu0 0.0
  %233 = vmatpush1.msra.mxu0 0.0
  %234 = vmatprep.subr.mxu0 0.0
  %235 = vmatpush1.msra.mxu0 0.0
  %236 = vmatprep.subr.mxu0 0.0
  %237 = vmatpush1.msra.mxu0 0.0
  %238 = vmatprep.mubr.f32.mxu0 0.0
  %239 = vmatmul.mubr.f32.gmra.mrb[0].mxu0 %v31
  %v240 = vpop.f32.mrb[0].mxu0
  %v241 = vadd.f32 %v156, %v240
  %v242 = vpop.f32.mrb[0].mxu0
  %243 = vmatprep.mubr.f32.mxu0 0.0
  %244 = vmatmul.mubr.f32.gmra.mrb[0].mxu0 %v34
  %v245 = vpop.f32.mrb[0].mxu0
  %v246 = vadd.f32 %v161, %v245
  %v247 = vpop.f32.mrb[0].mxu0
  %248 = vmatprep.mubr.f32.mxu0 0.0
  %249 = vmatmul.mubr.f32.gmra.mrb[0].mxu0 %v37
  %v250 = vpop.f32.mrb[0].mxu0
  %v251 = vadd.f32 %v166, %v250
  %v252 = vpop.f32.mrb[0].mxu0
  %253 = vmatprep.mubr.f32.mxu0 0.0
  %254 = vmatmul.mubr.f32.gmra.mrb[0].mxu0 %v40
  %v255 = vpop.f32.mrb[0].mxu0
  %v256 = vadd.f32 %v171, %v255
  %v257 = vpop.f32.mrb[0].mxu0
  %258 = vdwg.mxu0
  %v259 = vadd.f32 %v25, %v241
  %v260 = vadd.f32 %v26, %v246
  %v261 = vadd.f32 %v27, %v251
  %v262 = vadd.f32 %v28, %v256
  %263 = vst [vmem:[#allocation2] sm:$0xff] %v259
  %264 = vst [vmem:[#allocation2 + $0x8] sm:$0xff] %v260
  %265 = vst [vmem:[#allocation2 + $0x10] sm:$0xff] %v261
  %266 = vst [vmem:[#allocation2 + $0x18] sm:$0xff] %v262
  // Predicated region
  $region22: #{global_generator_forward.13} parent=0 // pred_check
    %p267 = pneg %p17
  $region23: #{global_generator_forward.13} parent=0 // pred_check_branch
    %269 = sbr.rel (%p267) target = $region25
  $region24: #{global_generator_forward.13} parent=0 // pred_region
    %v270 = vld [vmem:[#allocation2] sm:$0xff]
    %v271 = vld [vmem:[#allocation2 + $0x8] sm:$0xff]
    %v272 = vld [vmem:[#allocation2 + $0x10] sm:$0xff]
    %v273 = vld [vmem:[#allocation2 + $0x18] sm:$0xff]
    %v274 = vld [vmem:[%s2] sm:$0x1]
    %v276 = vlaneseq
    %v277 = vshrl.u32 %v276, 7
    %v278 = vsub.s32 0, %v277
    %v279 = vrot.slane %v274, %v278
    %v281 = vmul.f32 %v270, %v279
    %v282 = vmul.f32 %v271, %v279
    %v283 = vmul.f32 %v272, %v279
    %v284 = vmul.f32 %v273, %v279
    %v285 = vld [vmem:[%s3] sm:$0x1]
    %v287 = vlaneseq
    %v288 = vshrl.u32 %v287, 7
    %v289 = vsub.s32 0, %v288
    %v290 = vrot.slane %v285, %v289
    %v292 = vadd.f32 %v281, %v290
    %v293 = vadd.f32 %v282, %v290
    %v294 = vadd.f32 %v283, %v290
    %v295 = vadd.f32 %v284, %v290
    %v296 = vmax.f32 %v292, 0.0
    %v297 = vmax.f32 %v293, 0.0
    %v298 = vmax.f32 %v294, 0.0
    %v299 = vmax.f32 %v295, 0.0
    %300 = vst [vmem:[%s4] sm:$0xff] %v296
    %301 = vst [vmem:[%s4 + $0x8] sm:$0xff] %v297
    %302 = vst [vmem:[%s4 + $0x10] sm:$0xff] %v298
    %303 = vst [vmem:[%s4 + $0x18] sm:$0xff] %v299
  $region25: #{global_generator_forward.13} parent=0 // pred_fallthru
    _
  // Predicated region
  $region26: #{global_generator_forward.13} parent=0 // pred_check
    _
  $region27: #{global_generator_forward.13} parent=0 // pred_check_branch
    %305 = sbr.rel (0) target = $region29
  $region28: #{global_generator_forward.13} parent=0 // pred_region
    _
  $region29: #{global_generator_forward.13} parent=0 // pred_fallthru
    _
  // Predicated region
  $region30: #{global_generator_forward.13} parent=0 // pred_check
    _
  $region31: #{global_generator_forward.13} parent=0 // pred_check_branch
    %307 = sbr.rel (0) target = $region33
  $region32: #{global_generator_forward.13} parent=0 // pred_region
    _
  $region33: #{global_generator_forward.13} parent=0 // pred_fallthru
    _

// kernel: global_generator_forward.14
$region0: #{global_generator_forward.14}
  #allocation0 [shape = 'u32[]', space=smem, size = 0x4, offset = 0x4, fixed_abs, tag = 'smem constant byte address 0x4 - core index']
  #allocation1 [shape = 'u32[144,128]{1,0:T(1,128)}', space=vmem, size = 0x12000, scoped, tag = 'internal scratch']
  #allocation2 [shape = 'f32[32,128]{1,0:T(8,128)}', space=vmem, size = 0x4000, scoped, tag = 'scratch operand']
  %s0 = inlined_call_operand.vmem [shape: f32[32,384], index: 0, kind: input, shape index: {}]
  %s1 = inlined_call_operand.vmem [shape: f32[384,128], index: 1, kind: input, shape index: {}]
  %s2 = inlined_call_operand.vmem [shape: f32[1,128], index: 2, kind: input, shape index: {}]
  %s3 = inlined_call_operand.vmem [shape: f32[1,128], index: 3, kind: input, shape index: {}]
  %s4 = inlined_call_operand.vmem [shape: f32[32,128], index: 4, kind: input, shape index: {}]
  %s5 = inlined_call_operand.vmem [shape: f32[32,128], index: 5, kind: output, shape index: {}]
  %s6 = sld [smem:[#allocation0]]
  $region38: #{global_generator_forward.14} parent=0
    _
  %s8 = ssub.s32 1, %s6
  %s9 = scalar_select 0, %s8, %s6
  // Predicated region
  $region2: #{global_generator_forward.14} parent=0 // pred_check
    _
  $region3: #{global_generator_forward.14} parent=0 // pred_check_branch
    %11 = sbr.rel (0) target = $region5
  $region4: #{global_generator_forward.14} parent=0 // pred_region
    _
  $region5: #{global_generator_forward.14} parent=0 // pred_fallthru
    _
  // Predicated region
  $region6: #{global_generator_forward.14} parent=0 // pred_check
    _
  $region7: #{global_generator_forward.14} parent=0 // pred_check_branch
    %13 = sbr.rel (0) target = $region9
  $region8: #{global_generator_forward.14} parent=0 // pred_region
    _
  $region9: #{global_generator_forward.14} parent=0 // pred_fallthru
    _
  // Predicated region
  $region10: #{global_generator_forward.14} parent=0 // pred_check
    _
  $region11: #{global_generator_forward.14} parent=0 // pred_check_branch
    %15 = sbr.rel (0) target = $region13
  $region12: #{global_generator_forward.14} parent=0 // pred_region
    _
  $region13: #{global_generator_forward.14} parent=0 // pred_fallthru
    _
  // Predicated region
  $region14: #{global_generator_forward.14} parent=0 // pred_check
    _
  $region15: #{global_generator_forward.14} parent=0 // pred_check_branch
    %17 = sbr.rel (0) target = $region17
  $region16: #{global_generator_forward.14} parent=0 // pred_region
    _
  $region17: #{global_generator_forward.14} parent=0 // pred_fallthru
    _
  // Predicated region
  $region18: #{global_generator_forward.14} parent=0 // pred_check
    _
  $region19: #{global_generator_forward.14} parent=0 // pred_check_branch
    %19 = sbr.rel (0) target = $region21
  $region20: #{global_generator_forward.14} parent=0 // pred_region
    _
  $region21: #{global_generator_forward.14} parent=0 // pred_fallthru
    _
  %p20 = scmp.eq.s32.totalorder 0, 0
  // Predicated region
  $region22: #{global_generator_forward.14} parent=0 // pred_check
    %p21 = pneg %p20
  $region23: #{global_generator_forward.14} parent=0 // pred_check_branch
    %23 = sbr.rel (%p21) target = $region25
  $region24: #{global_generator_forward.14} parent=0 // pred_region
    %24 = vst [vmem:[#allocation2] sm:$0xff] 0.0
    %25 = vst [vmem:[#allocation2 + $0x8] sm:$0xff] 0.0
    %26 = vst [vmem:[#allocation2 + $0x10] sm:$0xff] 0.0
    %27 = vst [vmem:[#allocation2 + $0x18] sm:$0xff] 0.0
  $region25: #{global_generator_forward.14} parent=0 // pred_fallthru
    _
  %v28 = vld [vmem:[#allocation2] sm:$0xff]
  %v29 = vld [vmem:[#allocation2 + $0x8] sm:$0xff]
  %v30 = vld [vmem:[#allocation2 + $0x10] sm:$0xff]
  %v31 = vld [vmem:[#allocation2 + $0x18] sm:$0xff]
  %v32 = vld [vmem:[%s0] sm:$0xff]
  %v33 = vld [vmem:[%s0 + $0x8] sm:$0xff]
  %v34 = vld [vmem:[%s0 + $0x10] sm:$0xff]
  %v35 = vld [vmem:[%s0 + $0x18] sm:$0xff]
  %v36 = vld [vmem:[%s0 + $0x20] sm:$0xff]
  %v37 = vld [vmem:[%s0 + $0x28] sm:$0xff]
  %v38 = vld [vmem:[%s0 + $0x30] sm:$0xff]
  %v39 = vld [vmem:[%s0 + $0x38] sm:$0xff]
  %v40 = vld [vmem:[%s0 + $0x40] sm:$0xff]
  %v41 = vld [vmem:[%s0 + $0x48] sm:$0xff]
  %v42 = vld [vmem:[%s0 + $0x50] sm:$0xff]
  %v43 = vld [vmem:[%s0 + $0x58] sm:$0xff]
  %v44 = vld [vmem:[%s1] sm:$0xff]
  %v45 = vld [vmem:[%s1 + $0x8] sm:$0xff]
  %v46 = vld [vmem:[%s1 + $0x10] sm:$0xff]
  %v47 = vld [vmem:[%s1 + $0x18] sm:$0xff]
  %v48 = vld [vmem:[%s1 + $0x20] sm:$0xff]
  %v49 = vld [vmem:[%s1 + $0x28] sm:$0xff]
  %v50 = vld [vmem:[%s1 + $0x30] sm:$0xff]
  %v51 = vld [vmem:[%s1 + $0x38] sm:$0xff]
  %v52 = vld [vmem:[%s1 + $0x40] sm:$0xff]
  %v53 = vld [vmem:[%s1 + $0x48] sm:$0xff]
  %v54 = vld [vmem:[%s1 + $0x50] sm:$0xff]
  %v55 = vld [vmem:[%s1 + $0x58] sm:$0xff]
  %v56 = vld [vmem:[%s1 + $0x60] sm:$0xff]
  %v57 = vld [vmem:[%s1 + $0x68] sm:$0xff]
  %v58 = vld [vmem:[%s1 + $0x70] sm:$0xff]
  %v59 = vld [vmem:[%s1 + $0x78] sm:$0xff]
  %v60 = vld [vmem:[%s1 + $0x80] sm:$0xff]
  %v61 = vld [vmem:[%s1 + $0x88] sm:$0xff]
  %v62 = vld [vmem:[%s1 + $0x90] sm:$0xff]
  %v63 = vld [vmem:[%s1 + $0x98] sm:$0xff]
  %v64 = vld [vmem:[%s1 + $0xa0] sm:$0xff]
  %v65 = vld [vmem:[%s1 + $0xa8] sm:$0xff]
  %v66 = vld [vmem:[%s1 + $0xb0] sm:$0xff]
  %v67 = vld [vmem:[%s1 + $0xb8] sm:$0xff]
  %v68 = vld [vmem:[%s1 + $0xc0] sm:$0xff]
  %v69 = vld [vmem:[%s1 + $0xc8] sm:$0xff]
  %v70 = vld [vmem:[%s1 + $0xd0] sm:$0xff]
  %v71 = vld [vmem:[%s1 + $0xd8] sm:$0xff]
  %v72 = vld [vmem:[%s1 + $0xe0] sm:$0xff]
  %v73 = vld [vmem:[%s1 + $0xe8] sm:$0xff]
  %v74 = vld [vmem:[%s1 + $0xf0] sm:$0xff]
  %v75 = vld [vmem:[%s1 + $0xf8] sm:$0xff]
  %v76 = vld [vmem:[%s1 + $0x100] sm:$0xff]
  %v77 = vld [vmem:[%s1 + $0x108] sm:$0xff]
  %v78 = vld [vmem:[%s1 + $0x110] sm:$0xff]
  %v79 = vld [vmem:[%s1 + $0x118] sm:$0xff]
  %v80 = vld [vmem:[%s1 + $0x120] sm:$0xff]
  %v81 = vld [vmem:[%s1 + $0x128] sm:$0xff]
  %v82 = vld [vmem:[%s1 + $0x130] sm:$0xff]
  %v83 = vld [vmem:[%s1 + $0x138] sm:$0xff]
  %v84 = vld [vmem:[%s1 + $0x140] sm:$0xff]
  %v85 = vld [vmem:[%s1 + $0x148] sm:$0xff]
  %v86 = vld [vmem:[%s1 + $0x150] sm:$0xff]
  %v87 = vld [vmem:[%s1 + $0x158] sm:$0xff]
  %v88 = vld [vmem:[%s1 + $0x160] sm:$0xff]
  %v89 = vld [vmem:[%s1 + $0x168] sm:$0xff]
  %v90 = vld [vmem:[%s1 + $0x170] sm:$0xff]
  %v91 = vld [vmem:[%s1 + $0x178] sm:$0xff]
  %92 = vmatprep.subr.mxu0 0.0
  %93 = vmatpush1.msra.mxu0 %v44
  %94 = vmatprep.subr.mxu0 0.0
  %95 = vmatpush1.msra.mxu0 %v45
  %96 = vmatprep.subr.mxu0 0.0
  %97 = vmatpush1.msra.mxu0 %v46
  %98 = vmatprep.subr.mxu0 0.0
  %99 = vmatpush1.msra.mxu0 %v47
  %100 = vmatprep.subr.mxu0 0.0
  %101 = vmatpush1.msra.mxu0 %v48
  %102 = vmatprep.subr.mxu0 0.0
  %103 = vmatpush1.msra.mxu0 %v49
  %104 = vmatprep.subr.mxu0 0.0
  %105 = vmatpush1.msra.mxu0 %v50
  %106 = vmatprep.subr.mxu0 0.0
  %107 = vmatpush1.msra.mxu0 %v51
  %108 = vmatprep.subr.mxu0 0.0
  %109 = vmatpush1.msra.mxu0 %v52
  %110 = vmatprep.subr.mxu0 0.0
  %111 = vmatpush1.msra.mxu0 %v53
  %112 = vmatprep.subr.mxu0 0.0
  %113 = vmatpush1.msra.mxu0 %v54
  %114 = vmatprep.subr.mxu0 0.0
  %115 = vmatpush1.msra.mxu0 %v55
  %116 = vmatprep.subr.mxu0 0.0
  %117 = vmatpush1.msra.mxu0 %v56
  %118 = vmatprep.subr.mxu0 0.0
  %119 = vmatpush1.msra.mxu0 %v57
  %120 = vmatprep.subr.mxu0 0.0
  %121 = vmatpush1.msra.mxu0 %v58
  %122 = vmatprep.subr.mxu0 0.0
  %123 = vmatpush1.msra.mxu0 %v59
  %124 = vmatprep.subr.mxu0 0.0
  %125 = vmatpush1.msra.mxu0 %v60
  %126 = vmatprep.subr.mxu0 0.0
  %127 = vmatpush1.msra.mxu0 %v61
  %128 = vmatprep.subr.mxu0 0.0
  %129 = vmatpush1.msra.mxu0 %v62
  %130 = vmatprep.subr.mxu0 0.0
  %131 = vmatpush1.msra.mxu0 %v63
  %132 = vmatprep.subr.mxu0 0.0
  %133 = vmatpush1.msra.mxu0 %v64
  %134 = vmatprep.subr.mxu0 0.0
  %135 = vmatpush1.msra.mxu0 %v65
  %136 = vmatprep.subr.mxu0 0.0
  %137 = vmatpush1.msra.mxu0 %v66
  %138 = vmatprep.subr.mxu0 0.0
  %139 = vmatpush1.msra.mxu0 %v67
  %140 = vmatprep.subr.mxu0 0.0
  %141 = vmatpush1.msra.mxu0 %v68
  %142 = vmatprep.subr.mxu0 0.0
  %143 = vmatpush1.msra.mxu0 %v69
  %144 = vmatprep.subr.mxu0 0.0
  %145 = vmatpush1.msra.mxu0 %v70
  %146 = vmatprep.subr.mxu0 0.0
  %147 = vmatpush1.msra.mxu0 %v71
  %148 = vmatprep.subr.mxu0 0.0
  %149 = vmatpush1.msra.mxu0 %v72
  %150 = vmatprep.subr.mxu0 0.0
  %151 = vmatpush1.msra.mxu0 %v73
  %152 = vmatprep.subr.mxu0 0.0
  %153 = vmatpush1.msra.mxu0 %v74
  %154 = vmatprep.subr.mxu0 0.0
  %155 = vmatpush1.msra.mxu0 %v75
  %156 = vmatprep.mubr.f32.mxu0 %v33
  %157 = vmatmul.mubr.f32.gmra.mrb[0].mxu0 %v32
  %v158 = vpop.f32.mrb[0].mxu0
  %v159 = vadd.f32 0.0, %v158
  %v160 = vpop.f32.mrb[0].mxu0
  %161 = vmatprep.mubr.f32.mxu0 %v36
  %162 = vmatmul.mubr.f32.gmra.mrb[0].mxu0 %v35
  %v163 = vpop.f32.mrb[0].mxu0
  %v164 = vadd.f32 0.0, %v163
  %v165 = vpop.f32.mrb[0].mxu0
  %166 = vmatprep.mubr.f32.mxu0 %v39
  %167 = vmatmul.mubr.f32.gmra.mrb[0].mxu0 %v38
  %v168 = vpop.f32.mrb[0].mxu0
  %v169 = vadd.f32 0.0, %v168
  %v170 = vpop.f32.mrb[0].mxu0
  %171 = vmatprep.mubr.f32.mxu0 %v42
  %172 = vmatmul.mubr.f32.gmra.mrb[0].mxu0 %v41
  %v173 = vpop.f32.mrb[0].mxu0
  %v174 = vadd.f32 0.0, %v173
  %v175 = vpop.f32.mrb[0].mxu0
  %176 = vdwg.mxu0
  %177 = vmatprep.subr.mxu0 0.0
  %178 = vmatpush1.msra.mxu0 %v76
  %179 = vmatprep.subr.mxu0 0.0
  %180 = vmatpush1.msra.mxu0 %v77
  %181 = vmatprep.subr.mxu0 0.0
  %182 = vmatpush1.msra.mxu0 %v78
  %183 = vmatprep.subr.mxu0 0.0
  %184 = vmatpush1.msra.mxu0 %v79
  %185 = vmatprep.subr.mxu0 0.0
  %186 = vmatpush1.msra.mxu0 %v80
  %187 = vmatprep.subr.mxu0 0.0
  %188 = vmatpush1.msra.mxu0 %v81
  %189 = vmatprep.subr.mxu0 0.0
  %190 = vmatpush1.msra.mxu0 %v82
  %191 = vmatprep.subr.mxu0 0.0
  %192 = vmatpush1.msra.mxu0 %v83
  %193 = vmatprep.subr.mxu0 0.0
  %194 = vmatpush1.msra.mxu0 %v84
  %195 = vmatprep.subr.mxu0 0.0
  %196 = vmatpush1.msra.mxu0 %v85
  %197 = vmatprep.subr.mxu0 0.0
  %198 = vmatpush1.msra.mxu0 %v86
  %199 = vmatprep.subr.mxu0 0.0
  %200 = vmatpush1.msra.mxu0 %v87
  %201 = vmatprep.subr.mxu0 0.0
  %202 = vmatpush1.msra.mxu0 %v88
  %203 = vmatprep.subr.mxu0 0.0
  %204 = vmatpush1.msra.mxu0 %v89
  %205 = vmatprep.subr.mxu0 0.0
  %206 = vmatpush1.msra.mxu0 %v90
  %207 = vmatprep.subr.mxu0 0.0
  %208 = vmatpush1.msra.mxu0 %v91
  %209 = vmatprep.subr.mxu0 0.0
  %210 = vmatpush1.msra.mxu0 0.0
  %211 = vmatprep.subr.mxu0 0.0
  %212 = vmatpush1.msra.mxu0 0.0
  %213 = vmatprep.subr.mxu0 0.0
  %214 = vmatpush1.msra.mxu0 0.0
  %215 = vmatprep.subr.mxu0 0.0
  %216 = vmatpush1.msra.mxu0 0.0
  %217 = vmatprep.subr.mxu0 0.0
  %218 = vmatpush1.msra.mxu0 0.0
  %219 = vmatprep.subr.mxu0 0.0
  %220 = vmatpush1.msra.mxu0 0.0
  %221 = vmatprep.subr.mxu0 0.0
  %222 = vmatpush1.msra.mxu0 0.0
  %223 = vmatprep.subr.mxu0 0.0
  %224 = vmatpush1.msra.mxu0 0.0
  %225 = vmatprep.subr.mxu0 0.0
  %226 = vmatpush1.msra.mxu0 0.0
  %227 = vmatprep.subr.mxu0 0.0
  %228 = vmatpush1.msra.mxu0 0.0
  %229 = vmatprep.subr.mxu0 0.0
  %230 = vmatpush1.msra.mxu0 0.0
  %231 = vmatprep.subr.mxu0 0.0
  %232 = vmatpush1.msra.mxu0 0.0
  %233 = vmatprep.subr.mxu0 0.0
  %234 = vmatpush1.msra.mxu0 0.0
  %235 = vmatprep.subr.mxu0 0.0
  %236 = vmatpush1.msra.mxu0 0.0
  %237 = vmatprep.subr.mxu0 0.0
  %238 = vmatpush1.msra.mxu0 0.0
  %239 = vmatprep.subr.mxu0 0.0
  %240 = vmatpush1.msra.mxu0 0.0
  %241 = vmatprep.mubr.f32.mxu0 0.0
  %242 = vmatmul.mubr.f32.gmra.mrb[0].mxu0 %v34
  %v243 = vpop.f32.mrb[0].mxu0
  %v244 = vadd.f32 %v159, %v243
  %v245 = vpop.f32.mrb[0].mxu0
  %246 = vmatprep.mubr.f32.mxu0 0.0
  %247 = vmatmul.mubr.f32.gmra.mrb[0].mxu0 %v37
  %v248 = vpop.f32.mrb[0].mxu0
  %v249 = vadd.f32 %v164, %v248
  %v250 = vpop.f32.mrb[0].mxu0
  %251 = vmatprep.mubr.f32.mxu0 0.0
  %252 = vmatmul.mubr.f32.gmra.mrb[0].mxu0 %v40
  %v253 = vpop.f32.mrb[0].mxu0
  %v254 = vadd.f32 %v169, %v253
  %v255 = vpop.f32.mrb[0].mxu0
  %256 = vmatprep.mubr.f32.mxu0 0.0
  %257 = vmatmul.mubr.f32.gmra.mrb[0].mxu0 %v43
  %v258 = vpop.f32.mrb[0].mxu0
  %v259 = vadd.f32 %v174, %v258
  %v260 = vpop.f32.mrb[0].mxu0
  %261 = vdwg.mxu0
  %v262 = vadd.f32 %v28, %v244
  %v263 = vadd.f32 %v29, %v249
  %v264 = vadd.f32 %v30, %v254
  %v265 = vadd.f32 %v31, %v259
  %266 = vst [vmem:[#allocation2] sm:$0xff] %v262
  %267 = vst [vmem:[#allocation2 + $0x8] sm:$0xff] %v263
  %268 = vst [vmem:[#allocation2 + $0x10] sm:$0xff] %v264
  %269 = vst [vmem:[#allocation2 + $0x18] sm:$0xff] %v265
  // Predicated region
  $region26: #{global_generator_forward.14} parent=0 // pred_check
    %p270 = pneg %p20
  $region27: #{global_generator_forward.14} parent=0 // pred_check_branch
    %272 = sbr.rel (%p270) target = $region29
  $region28: #{global_generator_forward.14} parent=0 // pred_region
    %v273 = vld [vmem:[#allocation2] sm:$0xff]
    %v274 = vld [vmem:[#allocation2 + $0x8] sm:$0xff]
    %v275 = vld [vmem:[#allocation2 + $0x10] sm:$0xff]
    %v276 = vld [vmem:[#allocation2 + $0x18] sm:$0xff]
    %v277 = vld [vmem:[%s2] sm:$0x1]
    %v279 = vlaneseq
    %v280 = vshrl.u32 %v279, 7
    %v281 = vsub.s32 0, %v280
    %v282 = vrot.slane %v277, %v281
    %v284 = vmul.f32 %v273, %v282
    %v285 = vmul.f32 %v274, %v282
    %v286 = vmul.f32 %v275, %v282
    %v287 = vmul.f32 %v276, %v282
    %v288 = vld [vmem:[%s3] sm:$0x1]
    %v290 = vlaneseq
    %v291 = vshrl.u32 %v290, 7
    %v292 = vsub.s32 0, %v291
    %v293 = vrot.slane %v288, %v292
    %v295 = vadd.f32 %v284, %v293
    %v296 = vadd.f32 %v285, %v293
    %v297 = vadd.f32 %v286, %v293
    %v298 = vadd.f32 %v287, %v293
    %v299 = vld [vmem:[%s4] sm:$0xff]
    %v300 = vld [vmem:[%s4 + $0x8] sm:$0xff]
    %v301 = vld [vmem:[%s4 + $0x10] sm:$0xff]
    %v302 = vld [vmem:[%s4 + $0x18] sm:$0xff]
    %v303 = vadd.f32 %v295, %v299
    %v304 = vadd.f32 %v296, %v300
    %v305 = vadd.f32 %v297, %v301
    %v306 = vadd.f32 %v298, %v302
    %307 = vst [vmem:[%s5] sm:$0xff] %v303
    %308 = vst [vmem:[%s5 + $0x8] sm:$0xff] %v304
    %309 = vst [vmem:[%s5 + $0x10] sm:$0xff] %v305
    %310 = vst [vmem:[%s5 + $0x18] sm:$0xff] %v306
  $region29: #{global_generator_forward.14} parent=0 // pred_fallthru
    _
  // Predicated region
  $region30: #{global_generator_forward.14} parent=0 // pred_check
    _
  $region31: #{global_generator_forward.14} parent=0 // pred_check_branch
    %312 = sbr.rel (0) target = $region33
  $region32: #{global_generator_forward.14} parent=0 // pred_region
    _
  $region33: #{global_generator_forward.14} parent=0 // pred_fallthru
    _
  // Predicated region
  $region34: #{global_generator_forward.14} parent=0 // pred_check
    _
  $region35: #{global_generator_forward.14} parent=0 // pred_check_branch
    %314 = sbr.rel (0) target = $region37
  $region36: #{global_generator_forward.14} parent=0 // pred_region
    _
  $region37: #{global_generator_forward.14} parent=0 // pred_fallthru
    _

// kernel: global_generator_forward.17
$region0: #{global_generator_forward.17}
  #allocation0 [shape = 'u32[]', space=smem, size = 0x4, offset = 0x4, fixed_abs, tag = 'smem constant byte address 0x4 - core index']
  #allocation1 [shape = 'u32[144,128]{1,0:T(1,128)}', space=vmem, size = 0x12000, scoped, tag = 'internal scratch']
  #allocation2 [shape = 'f32[128,128]{1,0:T(8,128)}', space=vmem, size = 0x10000, scoped, tag = 'scratch operand']
  %s0 = inlined_call_operand.vmem [shape: f32[128,384], index: 0, kind: input, shape index: {}]
  %s1 = inlined_call_operand.vmem [shape: f32[384,128], index: 1, kind: input, shape index: {}]
  %s2 = inlined_call_operand.vmem [shape: f32[1,128], index: 2, kind: input, shape index: {}]
  %s3 = inlined_call_operand.vmem [shape: f32[1,128], index: 3, kind: input, shape index: {}]
  %s4 = inlined_call_operand.vmem [shape: f32[128,128], index: 4, kind: output, shape index: {}]
  %s5 = sld [smem:[#allocation0]]
  $region34: #{global_generator_forward.17} parent=0
    _
  %s7 = ssub.s32 1, %s5
  %s8 = scalar_select 0, %s7, %s5
  // Predicated region
  $region2: #{global_generator_forward.17} parent=0 // pred_check
    _
  $region3: #{global_generator_forward.17} parent=0 // pred_check_branch
    %10 = sbr.rel (0) target = $region5
  $region4: #{global_generator_forward.17} parent=0 // pred_region
    _
  $region5: #{global_generator_forward.17} parent=0 // pred_fallthru
    _
  // Predicated region
  $region6: #{global_generator_forward.17} parent=0 // pred_check
    _
  $region7: #{global_generator_forward.17} parent=0 // pred_check_branch
    %12 = sbr.rel (0) target = $region9
  $region8: #{global_generator_forward.17} parent=0 // pred_region
    _
  $region9: #{global_generator_forward.17} parent=0 // pred_fallthru
    _
  // Predicated region
  $region10: #{global_generator_forward.17} parent=0 // pred_check
    _
  $region11: #{global_generator_forward.17} parent=0 // pred_check_branch
    %14 = sbr.rel (0) target = $region13
  $region12: #{global_generator_forward.17} parent=0 // pred_region
    _
  $region13: #{global_generator_forward.17} parent=0 // pred_fallthru
    _
  // Predicated region
  $region14: #{global_generator_forward.17} parent=0 // pred_check
    _
  $region15: #{global_generator_forward.17} parent=0 // pred_check_branch
    %16 = sbr.rel (0) target = $region17
  $region16: #{global_generator_forward.17} parent=0 // pred_region
    _
  $region17: #{global_generator_forward.17} parent=0 // pred_fallthru
    _
  %p17 = scmp.eq.s32.totalorder 0, 0
  // Predicated region
  $region18: #{global_generator_forward.17} parent=0 // pred_check
    %p18 = pneg %p17
  $region19: #{global_generator_forward.17} parent=0 // pred_check_branch
    %20 = sbr.rel (%p18) target = $region21
  $region20: #{global_generator_forward.17} parent=0 // pred_region
    %21 = vst [vmem:[#allocation2] sm:$0xff] 0.0
    %22 = vst [vmem:[#allocation2 + $0x8] sm:$0xff] 0.0
    %23 = vst [vmem:[#allocation2 + $0x10] sm:$0xff] 0.0
    %24 = vst [vmem:[#allocation2 + $0x18] sm:$0xff] 0.0
    %25 = vst [vmem:[#allocation2 + $0x20] sm:$0xff] 0.0
    %26 = vst [vmem:[#allocation2 + $0x28] sm:$0xff] 0.0
    %27 = vst [vmem:[#allocation2 + $0x30] sm:$0xff] 0.0
    %28 = vst [vmem:[#allocation2 + $0x38] sm:$0xff] 0.0
    %29 = vst [vmem:[#allocation2 + $0x40] sm:$0xff] 0.0
    %30 = vst [vmem:[#allocation2 + $0x48] sm:$0xff] 0.0
    %31 = vst [vmem:[#allocation2 + $0x50] sm:$0xff] 0.0
    %32 = vst [vmem:[#allocation2 + $0x58] sm:$0xff] 0.0
    %33 = vst [vmem:[#allocation2 + $0x60] sm:$0xff] 0.0
    %34 = vst [vmem:[#allocation2 + $0x68] sm:$0xff] 0.0
    %35 = vst [vmem:[#allocation2 + $0x70] sm:$0xff] 0.0
    %36 = vst [vmem:[#allocation2 + $0x78] sm:$0xff] 0.0
  $region21: #{global_generator_forward.17} parent=0 // pred_fallthru
    _
  %v37 = vld [vmem:[#allocation2] sm:$0xff]
  %v38 = vld [vmem:[#allocation2 + $0x8] sm:$0xff]
  %v39 = vld [vmem:[#allocation2 + $0x10] sm:$0xff]
  %v40 = vld [vmem:[#allocation2 + $0x18] sm:$0xff]
  %v41 = vld [vmem:[#allocation2 + $0x20] sm:$0xff]
  %v42 = vld [vmem:[#allocation2 + $0x28] sm:$0xff]
  %v43 = vld [vmem:[#allocation2 + $0x30] sm:$0xff]
  %v44 = vld [vmem:[#allocation2 + $0x38] sm:$0xff]
  %v45 = vld [vmem:[#allocation2 + $0x40] sm:$0xff]
  %v46 = vld [vmem:[#allocation2 + $0x48] sm:$0xff]
  %v47 = vld [vmem:[#allocation2 + $0x50] sm:$0xff]
  %v48 = vld [vmem:[#allocation2 + $0x58] sm:$0xff]
  %v49 = vld [vmem:[#allocation2 + $0x60] sm:$0xff]
  %v50 = vld [vmem:[#allocation2 + $0x68] sm:$0xff]
  %v51 = vld [vmem:[#allocation2 + $0x70] sm:$0xff]
  %v52 = vld [vmem:[#allocation2 + $0x78] sm:$0xff]
  %v53 = vld [vmem:[%s0] sm:$0xff]
  %v54 = vld [vmem:[%s0 + $0x8] sm:$0xff]
  %v55 = vld [vmem:[%s0 + $0x10] sm:$0xff]
  %v56 = vld [vmem:[%s0 + $0x18] sm:$0xff]
  %v57 = vld [vmem:[%s0 + $0x20] sm:$0xff]
  %v58 = vld [vmem:[%s0 + $0x28] sm:$0xff]
  %v59 = vld [vmem:[%s0 + $0x30] sm:$0xff]
  %v60 = vld [vmem:[%s0 + $0x38] sm:$0xff]
  %v61 = vld [vmem:[%s0 + $0x40] sm:$0xff]
  %v62 = vld [vmem:[%s0 + $0x48] sm:$0xff]
  %v63 = vld [vmem:[%s0 + $0x50] sm:$0xff]
  %v64 = vld [vmem:[%s0 + $0x58] sm:$0xff]
  %v65 = vld [vmem:[%s0 + $0x60] sm:$0xff]
  %v66 = vld [vmem:[%s0 + $0x68] sm:$0xff]
  %v67 = vld [vmem:[%s0 + $0x70] sm:$0xff]
  %v68 = vld [vmem:[%s0 + $0x78] sm:$0xff]
  %v69 = vld [vmem:[%s0 + $0x80] sm:$0xff]
  %v70 = vld [vmem:[%s0 + $0x88] sm:$0xff]
  %v71 = vld [vmem:[%s0 + $0x90] sm:$0xff]
  %v72 = vld [vmem:[%s0 + $0x98] sm:$0xff]
  %v73 = vld [vmem:[%s0 + $0xa0] sm:$0xff]
  %v74 = vld [vmem:[%s0 + $0xa8] sm:$0xff]
  %v75 = vld [vmem:[%s0 + $0xb0] sm:$0xff]
  %v76 = vld [vmem:[%s0 + $0xb8] sm:$0xff]
  %v77 = vld [vmem:[%s0 + $0xc0] sm:$0xff]
  %v78 = vld [vmem:[%s0 + $0xc8] sm:$0xff]
  %v79 = vld [vmem:[%s0 + $0xd0] sm:$0xff]
  %v80 = vld [vmem:[%s0 + $0xd8] sm:$0xff]
  %v81 = vld [vmem:[%s0 + $0xe0] sm:$0xff]
  %v82 = vld [vmem:[%s0 + $0xe8] sm:$0xff]
  %v83 = vld [vmem:[%s0 + $0xf0] sm:$0xff]
  %v84 = vld [vmem:[%s0 + $0xf8] sm:$0xff]
  %v85 = vld [vmem:[%s0 + $0x100] sm:$0xff]
  %v86 = vld [vmem:[%s0 + $0x108] sm:$0xff]
  %v87 = vld [vmem:[%s0 + $0x110] sm:$0xff]
  %v88 = vld [vmem:[%s0 + $0x118] sm:$0xff]
  %v89 = vld [vmem:[%s0 + $0x120] sm:$0xff]
  %v90 = vld [vmem:[%s0 + $0x128] sm:$0xff]
  %v91 = vld [vmem:[%s0 + $0x130] sm:$0xff]
  %v92 = vld [vmem:[%s0 + $0x138] sm:$0xff]
  %v93 = vld [vmem:[%s0 + $0x140] sm:$0xff]
  %v94 = vld [vmem:[%s0 + $0x148] sm:$0xff]
  %v95 = vld [vmem:[%s0 + $0x150] sm:$0xff]
  %v96 = vld [vmem:[%s0 + $0x158] sm:$0xff]
  %v97 = vld [vmem:[%s0 + $0x160] sm:$0xff]
  %v98 = vld [vmem:[%s0 + $0x168] sm:$0xff]
  %v99 = vld [vmem:[%s0 + $0x170] sm:$0xff]
  %v100 = vld [vmem:[%s0 + $0x178] sm:$0xff]
  %v101 = vld [vmem:[%s1] sm:$0xff]
  %v102 = vld [vmem:[%s1 + $0x8] sm:$0xff]
  %v103 = vld [vmem:[%s1 + $0x10] sm:$0xff]
  %v104 = vld [vmem:[%s1 + $0x18] sm:$0xff]
  %v105 = vld [vmem:[%s1 + $0x20] sm:$0xff]
  %v106 = vld [vmem:[%s1 + $0x28] sm:$0xff]
  %v107 = vld [vmem:[%s1 + $0x30] sm:$0xff]
  %v108 = vld [vmem:[%s1 + $0x38] sm:$0xff]
  %v109 = vld [vmem:[%s1 + $0x40] sm:$0xff]
  %v110 = vld [vmem:[%s1 + $0x48] sm:$0xff]
  %v111 = vld [vmem:[%s1 + $0x50] sm:$0xff]
  %v112 = vld [vmem:[%s1 + $0x58] sm:$0xff]
  %v113 = vld [vmem:[%s1 + $0x60] sm:$0xff]
  %v114 = vld [vmem:[%s1 + $0x68] sm:$0xff]
  %v115 = vld [vmem:[%s1 + $0x70] sm:$0xff]
  %v116 = vld [vmem:[%s1 + $0x78] sm:$0xff]
  %v117 = vld [vmem:[%s1 + $0x80] sm:$0xff]
  %v118 = vld [vmem:[%s1 + $0x88] sm:$0xff]
  %v119 = vld [vmem:[%s1 + $0x90] sm:$0xff]
  %v120 = vld [vmem:[%s1 + $0x98] sm:$0xff]
  %v121 = vld [vmem:[%s1 + $0xa0] sm:$0xff]
  %v122 = vld [vmem:[%s1 + $0xa8] sm:$0xff]
  %v123 = vld [vmem:[%s1 + $0xb0] sm:$0xff]
  %v124 = vld [vmem:[%s1 + $0xb8] sm:$0xff]
  %v125 = vld [vmem:[%s1 + $0xc0] sm:$0xff]
  %v126 = vld [vmem:[%s1 + $0xc8] sm:$0xff]
  %v127 = vld [vmem:[%s1 + $0xd0] sm:$0xff]
  %v128 = vld [vmem:[%s1 + $0xd8] sm:$0xff]
  %v129 = vld [vmem:[%s1 + $0xe0] sm:$0xff]
  %v130 = vld [vmem:[%s1 + $0xe8] sm:$0xff]
  %v131 = vld [vmem:[%s1 + $0xf0] sm:$0xff]
  %v132 = vld [vmem:[%s1 + $0xf8] sm:$0xff]
  %v133 = vld [vmem:[%s1 + $0x100] sm:$0xff]
  %v134 = vld [vmem:[%s1 + $0x108] sm:$0xff]
  %v135 = vld [vmem:[%s1 + $0x110] sm:$0xff]
  %v136 = vld [vmem:[%s1 + $0x118] sm:$0xff]
  %v137 = vld [vmem:[%s1 + $0x120] sm:$0xff]
  %v138 = vld [vmem:[%s1 + $0x128] sm:$0xff]
  %v139 = vld [vmem:[%s1 + $0x130] sm:$0xff]
  %v140 = vld [vmem:[%s1 + $0x138] sm:$0xff]
  %v141 = vld [vmem:[%s1 + $0x140] sm:$0xff]
  %v142 = vld [vmem:[%s1 + $0x148] sm:$0xff]
  %v143 = vld [vmem:[%s1 + $0x150] sm:$0xff]
  %v144 = vld [vmem:[%s1 + $0x158] sm:$0xff]
  %v145 = vld [vmem:[%s1 + $0x160] sm:$0xff]
  %v146 = vld [vmem:[%s1 + $0x168] sm:$0xff]
  %v147 = vld [vmem:[%s1 + $0x170] sm:$0xff]
  %v148 = vld [vmem:[%s1 + $0x178] sm:$0xff]
  %149 = vmatprep.subr.mxu0 0.0
  %150 = vmatpush1.msra.mxu0 %v101
  %151 = vmatprep.subr.mxu0 0.0
  %152 = vmatpush1.msra.mxu0 %v102
  %153 = vmatprep.subr.mxu0 0.0
  %154 = vmatpush1.msra.mxu0 %v103
  %155 = vmatprep.subr.mxu0 0.0
  %156 = vmatpush1.msra.mxu0 %v104
  %157 = vmatprep.subr.mxu0 0.0
  %158 = vmatpush1.msra.mxu0 %v105
  %159 = vmatprep.subr.mxu0 0.0
  %160 = vmatpush1.msra.mxu0 %v106
  %161 = vmatprep.subr.mxu0 0.0
  %162 = vmatpush1.msra.mxu0 %v107
  %163 = vmatprep.subr.mxu0 0.0
  %164 = vmatpush1.msra.mxu0 %v108
  %165 = vmatprep.subr.mxu0 0.0
  %166 = vmatpush1.msra.mxu0 %v109
  %167 = vmatprep.subr.mxu0 0.0
  %168 = vmatpush1.msra.mxu0 %v110
  %169 = vmatprep.subr.mxu0 0.0
  %170 = vmatpush1.msra.mxu0 %v111
  %171 = vmatprep.subr.mxu0 0.0
  %172 = vmatpush1.msra.mxu0 %v112
  %173 = vmatprep.subr.mxu0 0.0
  %174 = vmatpush1.msra.mxu0 %v113
  %175 = vmatprep.subr.mxu0 0.0
  %176 = vmatpush1.msra.mxu0 %v114
  %177 = vmatprep.subr.mxu0 0.0
  %178 = vmatpush1.msra.mxu0 %v115
  %179 = vmatprep.subr.mxu0 0.0
  %180 = vmatpush1.msra.mxu0 %v116
  %181 = vmatprep.subr.mxu0 0.0
  %182 = vmatpush1.msra.mxu0 %v117
  %183 = vmatprep.subr.mxu0 0.0
  %184 = vmatpush1.msra.mxu0 %v118
  %185 = vmatprep.subr.mxu0 0.0
  %186 = vmatpush1.msra.mxu0 %v119
  %187 = vmatprep.subr.mxu0 0.0
  %188 = vmatpush1.msra.mxu0 %v120
  %189 = vmatprep.subr.mxu0 0.0
  %190 = vmatpush1.msra.mxu0 %v121
  %191 = vmatprep.subr.mxu0 0.0
  %192 = vmatpush1.msra.mxu0 %v122
  %193 = vmatprep.subr.mxu0 0.0
  %194 = vmatpush1.msra.mxu0 %v123
  %195 = vmatprep.subr.mxu0 0.0
  %196 = vmatpush1.msra.mxu0 %v124
  %197 = vmatprep.subr.mxu0 0.0
  %198 = vmatpush1.msra.mxu0 %v125
  %199 = vmatprep.subr.mxu0 0.0
  %200 = vmatpush1.msra.mxu0 %v126
  %201 = vmatprep.subr.mxu0 0.0
  %202 = vmatpush1.msra.mxu0 %v127
  %203 = vmatprep.subr.mxu0 0.0
  %204 = vmatpush1.msra.mxu0 %v128
  %205 = vmatprep.subr.mxu0 0.0
  %206 = vmatpush1.msra.mxu0 %v129
  %207 = vmatprep.subr.mxu0 0.0
  %208 = vmatpush1.msra.mxu0 %v130
  %209 = vmatprep.subr.mxu0 0.0
  %210 = vmatpush1.msra.mxu0 %v131
  %211 = vmatprep.subr.mxu0 0.0
  %212 = vmatpush1.msra.mxu0 %v132
  %213 = vmatprep.mubr.f32.mxu0 %v54
  %214 = vmatmul.mubr.f32.gmra.mrb[0].mxu0 %v53
  %v215 = vpop.f32.mrb[0].mxu0
  %v216 = vadd.f32 0.0, %v215
  %v217 = vpop.f32.mrb[0].mxu0
  %218 = vmatprep.mubr.f32.mxu0 %v57
  %219 = vmatmul.mubr.f32.gmra.mrb[0].mxu0 %v56
  %v220 = vpop.f32.mrb[0].mxu0
  %v221 = vadd.f32 0.0, %v220
  %v222 = vpop.f32.mrb[0].mxu0
  %223 = vmatprep.mubr.f32.mxu0 %v60
  %224 = vmatmul.mubr.f32.gmra.mrb[0].mxu0 %v59
  %v225 = vpop.f32.mrb[0].mxu0
  %v226 = vadd.f32 0.0, %v225
  %v227 = vpop.f32.mrb[0].mxu0
  %228 = vmatprep.mubr.f32.mxu0 %v63
  %229 = vmatmul.mubr.f32.gmra.mrb[0].mxu0 %v62
  %v230 = vpop.f32.mrb[0].mxu0
  %v231 = vadd.f32 0.0, %v230
  %v232 = vpop.f32.mrb[0].mxu0
  %233 = vmatprep.mubr.f32.mxu0 %v66
  %234 = vmatmul.mubr.f32.gmra.mrb[0].mxu0 %v65
  %v235 = vpop.f32.mrb[0].mxu0
  %v236 = vadd.f32 0.0, %v235
  %v237 = vpop.f32.mrb[0].mxu0
  %238 = vmatprep.mubr.f32.mxu0 %v69
  %239 = vmatmul.mubr.f32.gmra.mrb[0].mxu0 %v68
  %v240 = vpop.f32.mrb[0].mxu0
  %v241 = vadd.f32 0.0, %v240
  %v242 = vpop.f32.mrb[0].mxu0
  %243 = vmatprep.mubr.f32.mxu0 %v72
  %244 = vmatmul.mubr.f32.gmra.mrb[0].mxu0 %v71
  %v245 = vpop.f32.mrb[0].mxu0
  %v246 = vadd.f32 0.0, %v245
  %v247 = vpop.f32.mrb[0].mxu0
  %248 = vmatprep.mubr.f32.mxu0 %v75
  %249 = vmatmul.mubr.f32.gmra.mrb[0].mxu0 %v74
  %v250 = vpop.f32.mrb[0].mxu0
  %v251 = vadd.f32 0.0, %v250
  %v252 = vpop.f32.mrb[0].mxu0
  %253 = vmatprep.mubr.f32.mxu0 %v78
  %254 = vmatmul.mubr.f32.gmra.mrb[0].mxu0 %v77
  %v255 = vpop.f32.mrb[0].mxu0
  %v256 = vadd.f32 0.0, %v255
  %v257 = vpop.f32.mrb[0].mxu0
  %258 = vmatprep.mubr.f32.mxu0 %v81
  %259 = vmatmul.mubr.f32.gmra.mrb[0].mxu0 %v80
  %v260 = vpop.f32.mrb[0].mxu0
  %v261 = vadd.f32 0.0, %v260
  %v262 = vpop.f32.mrb[0].mxu0
  %263 = vmatprep.mubr.f32.mxu0 %v84
  %264 = vmatmul.mubr.f32.gmra.mrb[0].mxu0 %v83
  %v265 = vpop.f32.mrb[0].mxu0
  %v266 = vadd.f32 0.0, %v265
  %v267 = vpop.f32.mrb[0].mxu0
  %268 = vmatprep.mubr.f32.mxu0 %v87
  %269 = vmatmul.mubr.f32.gmra.mrb[0].mxu0 %v86
  %v270 = vpop.f32.mrb[0].mxu0
  %v271 = vadd.f32 0.0, %v270
  %v272 = vpop.f32.mrb[0].mxu0
  %273 = vmatprep.mubr.f32.mxu0 %v90
  %274 = vmatmul.mubr.f32.gmra.mrb[0].mxu0 %v89
  %v275 = vpop.f32.mrb[0].mxu0
  %v276 = vadd.f32 0.0, %v275
  %v277 = vpop.f32.mrb[0].mxu0
  %278 = vmatprep.mubr.f32.mxu0 %v93
  %279 = vmatmul.mubr.f32.gmra.mrb[0].mxu0 %v92
  %v280 = vpop.f32.mrb[0].mxu0
  %v281 = vadd.f32 0.0, %v280
  %v282 = vpop.f32.mrb[0].mxu0
  %283 = vmatprep.mubr.f32.mxu0 %v96
  %284 = vmatmul.mubr.f32.gmra.mrb[0].mxu0 %v95
  %v285 = vpop.f32.mrb[0].mxu0
  %v286 = vadd.f32 0.0, %v285
  %v287 = vpop.f32.mrb[0].mxu0
  %288 = vmatprep.mubr.f32.mxu0 %v99
  %289 = vmatmul.mubr.f32.gmra.mrb[0].mxu0 %v98
  %v290 = vpop.f32.mrb[0].mxu0
  %v291 = vadd.f32 0.0, %v290
  %v292 = vpop.f32.mrb[0].mxu0
  %293 = vdwg.mxu0
  %294 = vmatprep.subr.mxu0 0.0
  %295 = vmatpush1.msra.mxu0 %v133
  %296 = vmatprep.subr.mxu0 0.0
  %297 = vmatpush1.msra.mxu0 %v134
  %298 = vmatprep.subr.mxu0 0.0
  %299 = vmatpush1.msra.mxu0 %v135
  %300 = vmatprep.subr.mxu0 0.0
  %301 = vmatpush1.msra.mxu0 %v136
  %302 = vmatprep.subr.mxu0 0.0
  %303 = vmatpush1.msra.mxu0 %v137
  %304 = vmatprep.subr.mxu0 0.0
  %305 = vmatpush1.msra.mxu0 %v138
  %306 = vmatprep.subr.mxu0 0.0
  %307 = vmatpush1.msra.mxu0 %v139
  %308 = vmatprep.subr.mxu0 0.0
  %309 = vmatpush1.msra.mxu0 %v140
  %310 = vmatprep.subr.mxu0 0.0
  %311 = vmatpush1.msra.mxu0 %v141
  %312 = vmatprep.subr.mxu0 0.0
  %313 = vmatpush1.msra.mxu0 %v142
  %314 = vmatprep.subr.mxu0 0.0
  %315 = vmatpush1.msra.mxu0 %v143
  %316 = vmatprep.subr.mxu0 0.0
  %317 = vmatpush1.msra.mxu0 %v144
  %318 = vmatprep.subr.mxu0 0.0
  %319 = vmatpush1.msra.mxu0 %v145
  %320 = vmatprep.subr.mxu0 0.0
  %321 = vmatpush1.msra.mxu0 %v146
  %322 = vmatprep.subr.mxu0 0.0
  %323 = vmatpush1.msra.mxu0 %v147
  %324 = vmatprep.subr.mxu0 0.0
  %325 = vmatpush1.msra.mxu0 %v148
  %326 = vmatprep.subr.mxu0 0.0
  %327 = vmatpush1.msra.mxu0 0.0
  %328 = vmatprep.subr.mxu0 0.0
  %329 = vmatpush1.msra.mxu0 0.0
  %330 = vmatprep.subr.mxu0 0.0
  %331 = vmatpush1.msra.mxu0 0.0
  %332 = vmatprep.subr.mxu0 0.0
  %333 = vmatpush1.msra.mxu0 0.0
  %334 = vmatprep.subr.mxu0 0.0
  %335 = vmatpush1.msra.mxu0 0.0
  %336 = vmatprep.subr.mxu0 0.0
  %337 = vmatpush1.msra.mxu0 0.0
  %338 = vmatprep.subr.mxu0 0.0
  %339 = vmatpush1.msra.mxu0 0.0
  %340 = vmatprep.subr.mxu0 0.0
  %341 = vmatpush1.msra.mxu0 0.0
  %342 = vmatprep.subr.mxu0 0.0
  %343 = vmatpush1.msra.mxu0 0.0
  %344 = vmatprep.subr.mxu0 0.0
  %345 = vmatpush1.msra.mxu0 0.0
  %346 = vmatprep.subr.mxu0 0.0
  %347 = vmatpush1.msra.mxu0 0.0
  %348 = vmatprep.subr.mxu0 0.0
  %349 = vmatpush1.msra.mxu0 0.0
  %350 = vmatprep.subr.mxu0 0.0
  %351 = vmatpush1.msra.mxu0 0.0
  %352 = vmatprep.subr.mxu0 0.0
  %353 = vmatpush1.msra.mxu0 0.0
  %354 = vmatprep.subr.mxu0 0.0
  %355 = vmatpush1.msra.mxu0 0.0
  %356 = vmatprep.subr.mxu0 0.0
  %357 = vmatpush1.msra.mxu0 0.0
  %358 = vmatprep.mubr.f32.mxu0 0.0
  %359 = vmatmul.mubr.f32.gmra.mrb[0].mxu0 %v55
  %v360 = vpop.f32.mrb[0].mxu0
  %v361 = vadd.f32 %v216, %v360
  %v362 = vpop.f32.mrb[0].mxu0
  %363 = vmatprep.mubr.f32.mxu0 0.0
  %364 = vmatmul.mubr.f32.gmra.mrb[0].mxu0 %v58
  %v365 = vpop.f32.mrb[0].mxu0
  %v366 = vadd.f32 %v221, %v365
  %v367 = vpop.f32.mrb[0].mxu0
  %368 = vmatprep.mubr.f32.mxu0 0.0
  %369 = vmatmul.mubr.f32.gmra.mrb[0].mxu0 %v61
  %v370 = vpop.f32.mrb[0].mxu0
  %v371 = vadd.f32 %v226, %v370
  %v372 = vpop.f32.mrb[0].mxu0
  %373 = vmatprep.mubr.f32.mxu0 0.0
  %374 = vmatmul.mubr.f32.gmra.mrb[0].mxu0 %v64
  %v375 = vpop.f32.mrb[0].mxu0
  %v376 = vadd.f32 %v231, %v375
  %v377 = vpop.f32.mrb[0].mxu0
  %378 = vmatprep.mubr.f32.mxu0 0.0
  %379 = vmatmul.mubr.f32.gmra.mrb[0].mxu0 %v67
  %v380 = vpop.f32.mrb[0].mxu0
  %v381 = vadd.f32 %v236, %v380
  %v382 = vpop.f32.mrb[0].mxu0
  %383 = vmatprep.mubr.f32.mxu0 0.0
  %384 = vmatmul.mubr.f32.gmra.mrb[0].mxu0 %v70
  %v385 = vpop.f32.mrb[0].mxu0
  %v386 = vadd.f32 %v241, %v385
  %v387 = vpop.f32.mrb[0].mxu0
  %388 = vmatprep.mubr.f32.mxu0 0.0
  %389 = vmatmul.mubr.f32.gmra.mrb[0].mxu0 %v73
  %v390 = vpop.f32.mrb[0].mxu0
  %v391 = vadd.f32 %v246, %v390
  %v392 = vpop.f32.mrb[0].mxu0
  %393 = vmatprep.mubr.f32.mxu0 0.0
  %394 = vmatmul.mubr.f32.gmra.mrb[0].mxu0 %v76
  %v395 = vpop.f32.mrb[0].mxu0
  %v396 = vadd.f32 %v251, %v395
  %v397 = vpop.f32.mrb[0].mxu0
  %398 = vmatprep.mubr.f32.mxu0 0.0
  %399 = vmatmul.mubr.f32.gmra.mrb[0].mxu0 %v79
  %v400 = vpop.f32.mrb[0].mxu0
  %v401 = vadd.f32 %v256, %v400
  %v402 = vpop.f32.mrb[0].mxu0
  %403 = vmatprep.mubr.f32.mxu0 0.0
  %404 = vmatmul.mubr.f32.gmra.mrb[0].mxu0 %v82
  %v405 = vpop.f32.mrb[0].mxu0
  %v406 = vadd.f32 %v261, %v405
  %v407 = vpop.f32.mrb[0].mxu0
  %408 = vmatprep.mubr.f32.mxu0 0.0
  %409 = vmatmul.mubr.f32.gmra.mrb[0].mxu0 %v85
  %v410 = vpop.f32.mrb[0].mxu0
  %v411 = vadd.f32 %v266, %v410
  %v412 = vpop.f32.mrb[0].mxu0
  %413 = vmatprep.mubr.f32.mxu0 0.0
  %414 = vmatmul.mubr.f32.gmra.mrb[0].mxu0 %v88
  %v415 = vpop.f32.mrb[0].mxu0
  %v416 = vadd.f32 %v271, %v415
  %v417 = vpop.f32.mrb[0].mxu0
  %418 = vmatprep.mubr.f32.mxu0 0.0
  %419 = vmatmul.mubr.f32.gmra.mrb[0].mxu0 %v91
  %v420 = vpop.f32.mrb[0].mxu0
  %v421 = vadd.f32 %v276, %v420
  %v422 = vpop.f32.mrb[0].mxu0
  %423 = vmatprep.mubr.f32.mxu0 0.0
  %424 = vmatmul.mubr.f32.gmra.mrb[0].mxu0 %v94
  %v425 = vpop.f32.mrb[0].mxu0
  %v426 = vadd.f32 %v281, %v425
  %v427 = vpop.f32.mrb[0].mxu0
  %428 = vmatprep.mubr.f32.mxu0 0.0
  %429 = vmatmul.mubr.f32.gmra.mrb[0].mxu0 %v97
  %v430 = vpop.f32.mrb[0].mxu0
  %v431 = vadd.f32 %v286, %v430
  %v432 = vpop.f32.mrb[0].mxu0
  %433 = vmatprep.mubr.f32.mxu0 0.0
  %434 = vmatmul.mubr.f32.gmra.mrb[0].mxu0 %v100
  %v435 = vpop.f32.mrb[0].mxu0
  %v436 = vadd.f32 %v291, %v435
  %v437 = vpop.f32.mrb[0].mxu0
  %438 = vdwg.mxu0
  %v439 = vadd.f32 %v37, %v361
  %v440 = vadd.f32 %v38, %v366
  %v441 = vadd.f32 %v39, %v371
  %v442 = vadd.f32 %v40, %v376
  %v443 = vadd.f32 %v41, %v381
  %v444 = vadd.f32 %v42, %v386
  %v445 = vadd.f32 %v43, %v391
  %v446 = vadd.f32 %v44, %v396
  %v447 = vadd.f32 %v45, %v401
  %v448 = vadd.f32 %v46, %v406
  %v449 = vadd.f32 %v47, %v411
  %v450 = vadd.f32 %v48, %v416
  %v451 = vadd.f32 %v49, %v421
  %v452 = vadd.f32 %v50, %v426
  %v453 = vadd.f32 %v51, %v431
  %v454 = vadd.f32 %v52, %v436
  %455 = vst [vmem:[#allocation2] sm:$0xff] %v439
  %456 = vst [vmem:[#allocation2 + $0x8] sm:$0xff] %v440
  %457 = vst [vmem:[#allocation2 + $0x10] sm:$0xff] %v441
  %458 = vst [vmem:[#allocation2 + $0x18] sm:$0xff] %v442
  %459 = vst [vmem:[#allocation2 + $0x20] sm:$0xff] %v443
  %460 = vst [vmem:[#allocation2 + $0x28] sm:$0xff] %v444
  %461 = vst [vmem:[#allocation2 + $0x30] sm:$0xff] %v445
  %462 = vst [vmem:[#allocation2 + $0x38] sm:$0xff] %v446
  %463 = vst [vmem:[#allocation2 + $0x40] sm:$0xff] %v447
  %464 = vst [vmem:[#allocation2 + $0x48] sm:$0xff] %v448
  %465 = vst [vmem:[#allocation2 + $0x50] sm:$0xff] %v449
  %466 = vst [vmem:[#allocation2 + $0x58] sm:$0xff] %v450
  %467 = vst [vmem:[#allocation2 + $0x60] sm:$0xff] %v451
  %468 = vst [vmem:[#allocation2 + $0x68] sm:$0xff] %v452
  %469 = vst [vmem:[#allocation2 + $0x70] sm:$0xff] %v453
  %470 = vst [vmem:[#allocation2 + $0x78] sm:$0xff] %v454
  // Predicated region
  $region22: #{global_generator_forward.17} parent=0 // pred_check
    %p471 = pneg %p17
  $region23: #{global_generator_forward.17} parent=0 // pred_check_branch
    %473 = sbr.rel (%p471) target = $region25
  $region24: #{global_generator_forward.17} parent=0 // pred_region
    %v474 = vld [vmem:[#allocation2] sm:$0xff]
    %v475 = vld [vmem:[#allocation2 + $0x8] sm:$0xff]
    %v476 = vld [vmem:[#allocation2 + $0x10] sm:$0xff]
    %v477 = vld [vmem:[#allocation2 + $0x18] sm:$0xff]
    %v478 = vld [vmem:[#allocation2 + $0x20] sm:$0xff]
    %v479 = vld [vmem:[#allocation2 + $0x28] sm:$0xff]
    %v480 = vld [vmem:[#allocation2 + $0x30] sm:$0xff]
    %v481 = vld [vmem:[#allocation2 + $0x38] sm:$0xff]
    %v482 = vld [vmem:[#allocation2 + $0x40] sm:$0xff]
    %v483 = vld [vmem:[#allocation2 + $0x48] sm:$0xff]
    %v484 = vld [vmem:[#allocation2 + $0x50] sm:$0xff]
    %v485 = vld [vmem:[#allocation2 + $0x58] sm:$0xff]
    %v486 = vld [vmem:[#allocation2 + $0x60] sm:$0xff]
    %v487 = vld [vmem:[#allocation2 + $0x68] sm:$0xff]
    %v488 = vld [vmem:[#allocation2 + $0x70] sm:$0xff]
    %v489 = vld [vmem:[#allocation2 + $0x78] sm:$0xff]
    %v490 = vld [vmem:[%s2] sm:$0x1]
    %v492 = vlaneseq
    %v493 = vshrl.u32 %v492, 7
    %v494 = vsub.s32 0, %v493
    %v495 = vrot.slane %v490, %v494
    %v497 = vmul.f32 %v474, %v495
    %v498 = vmul.f32 %v475, %v495
    %v499 = vmul.f32 %v476, %v495
    %v500 = vmul.f32 %v477, %v495
    %v501 = vmul.f32 %v478, %v495
    %v502 = vmul.f32 %v479, %v495
    %v503 = vmul.f32 %v480, %v495
    %v504 = vmul.f32 %v481, %v495
    %v505 = vmul.f32 %v482, %v495
    %v506 = vmul.f32 %v483, %v495
    %v507 = vmul.f32 %v484, %v495
    %v508 = vmul.f32 %v485, %v495
    %v509 = vmul.f32 %v486, %v495
    %v510 = vmul.f32 %v487, %v495
    %v511 = vmul.f32 %v488, %v495
    %v512 = vmul.f32 %v489, %v495
    %v513 = vld [vmem:[%s3] sm:$0x1]
    %v515 = vlaneseq
    %v516 = vshrl.u32 %v515, 7
    %v517 = vsub.s32 0, %v516
    %v518 = vrot.slane %v513, %v517
    %v520 = vadd.f32 %v497, %v518
    %v521 = vadd.f32 %v498, %v518
    %v522 = vadd.f32 %v499, %v518
    %v523 = vadd.f32 %v500, %v518
    %v524 = vadd.f32 %v501, %v518
    %v525 = vadd.f32 %v502, %v518
    %v526 = vadd.f32 %v503, %v518
    %v527 = vadd.f32 %v504, %v518
    %v528 = vadd.f32 %v505, %v518
    %v529 = vadd.f32 %v506, %v518
    %v530 = vadd.f32 %v507, %v518
    %v531 = vadd.f32 %v508, %v518
    %v532 = vadd.f32 %v509, %v518
    %v533 = vadd.f32 %v510, %v518
    %v534 = vadd.f32 %v511, %v518
    %v535 = vadd.f32 %v512, %v518
    %v536 = vmax.f32 %v520, 0.0
    %v537 = vmax.f32 %v521, 0.0
    %v538 = vmax.f32 %v522, 0.0
    %v539 = vmax.f32 %v523, 0.0
    %v540 = vmax.f32 %v524, 0.0
    %v541 = vmax.f32 %v525, 0.0
    %v542 = vmax.f32 %v526, 0.0
    %v543 = vmax.f32 %v527, 0.0
    %v544 = vmax.f32 %v528, 0.0
    %v545 = vmax.f32 %v529, 0.0
    %v546 = vmax.f32 %v530, 0.0
    %v547 = vmax.f32 %v531, 0.0
    %v548 = vmax.f32 %v532, 0.0
    %v549 = vmax.f32 %v533, 0.0
    %v550 = vmax.f32 %v534, 0.0
    %v551 = vmax.f32 %v535, 0.0
    %552 = vst [vmem:[%s4] sm:$0xff] %v536
    %553 = vst [vmem:[%s4 + $0x8] sm:$0xff] %v537
    %554 = vst [vmem:[%s4 + $0x10] sm:$0xff] %v538
    %555 = vst [vmem:[%s4 + $0x18] sm:$0xff] %v539
    %556 = vst [vmem:[%s4 + $0x20] sm:$0xff] %v540
    %557 = vst [vmem:[%s4 + $0x28] sm:$0xff] %v541
    %558 = vst [vmem:[%s4 + $0x30] sm:$0xff] %v542
    %559 = vst [vmem:[%s4 + $0x38] sm:$0xff] %v543
    %560 = vst [vmem:[%s4 + $0x40] sm:$0xff] %v544
    %561 = vst [vmem:[%s4 + $0x48] sm:$0xff] %v545
    %562 = vst [vmem:[%s4 + $0x50] sm:$0xff] %v546
    %563 = vst [vmem:[%s4 + $0x58] sm:$0xff] %v547
    %564 = vst [vmem:[%s4 + $0x60] sm:$0xff] %v548
    %565 = vst [vmem:[%s4 + $0x68] sm:$0xff] %v549
    %566 = vst [vmem:[%s4 + $0x70] sm:$0xff] %v550
    %567 = vst [vmem:[%s4 + $0x78] sm:$0xff] %v551
  $region25: #{global_generator_forward.17} parent=0 // pred_fallthru
    _
  // Predicated region
  $region26: #{global_generator_forward.17} parent=0 // pred_check
    _
  $region27: #{global_generator_forward.17} parent=0 // pred_check_branch
    %569 = sbr.rel (0) target = $region29
  $region28: #{global_generator_forward.17} parent=0 // pred_region
    _
  $region29: #{global_generator_forward.17} parent=0 // pred_fallthru
    _
  // Predicated region
  $region30: #{global_generator_forward.17} parent=0 // pred_check
    _
  $region31: #{global_generator_forward.17} parent=0 // pred_check_branch
    %571 = sbr.rel (0) target = $region33
  $region32: #{global_generator_forward.17} parent=0 // pred_region
    _
  $region33: #{global_generator_forward.17} parent=0 // pred_fallthru
    _

// kernel: global_generator_forward.19
$region0: #{global_generator_forward.19}
  #allocation0 [shape = 'u32[]', space=smem, size = 0x4, offset = 0x4, fixed_abs, tag = 'smem constant byte address 0x4 - core index']
  #allocation1 [shape = 'u32[144,128]{1,0:T(1,128)}', space=vmem, size = 0x12000, scoped, tag = 'internal scratch']
  #allocation2 [shape = 'f32[128,128]{1,0:T(8,128)}', space=vmem, size = 0x10000, scoped, tag = 'scratch operand']
  %s0 = inlined_call_operand.vmem [shape: f32[512,512], index: 0, kind: input, shape index: {}]
  %s1 = inlined_call_operand.vmem [shape: f32[512,128], index: 1, kind: input, shape index: {}]
  %s2 = inlined_call_operand.vmem [shape: f32[1,128], index: 2, kind: input, shape index: {}]
  %s3 = inlined_call_operand.vmem [shape: f32[1,128], index: 3, kind: input, shape index: {}]
  %s4 = inlined_call_operand.vmem [shape: f32[512,128], index: 4, kind: output, shape index: {}]
  %s5 = sld [smem:[#allocation0]]
  $region57: #{global_generator_forward.19} parent=0
    _
  %s7 = ssub.s32 1, %s5
  %s8 = scalar_select 0, %s7, %s5
  loop: start=0, step=1, limit=6
  $region2: #{global_generator_forward.19} parent=0 // loop_pre_header
    _
  $region3: #{global_generator_forward.19} parent=0 // loop_header
    %s10 = sphi 0, %s14
    %p11 = scmp.ge.s32.totalorder %s10, 6
    %s17 = sphi 0, %s36
    %s18 = sphi 0, %s32
    %s19 = sphi 0, %s28
    %s20 = sphi 0, %s17
    %s21 = sphi 0, %s18
    %s22 = sphi 0, %s19
    %s23 = sphi 0, %s20
    %s24 = sphi 0, %s21
    %s25 = sphi 0, %s22
    %s41 = sphi 0, %s43
    %s44 = sphi 0, %s41
    %s45 = sphi 0, %s44
    %s61 = sphi 0, %s45
    %s69 = sphi 0, %s71
    %s72 = sphi 0, %s69
    %s73 = sphi 0, %s72
    %s89 = sphi 0, %s73
    %s95 = sphi 0, %s97
    %s98 = sphi 0, %s95
    %s99 = sphi 0, %s98
    %s115 = sphi 0, %s99
    %s121 = sphi 0, %s123
    %s124 = sphi 0, %s121
    %s125 = sphi 0, %s124
    %s141 = sphi 0, %s125
    %s149 = sphi 0, %s151
    %s152 = sphi 0, %s149
    %s153 = sphi 0, %s152
    %s169 = sphi 0, %s153
  $region4: #{global_generator_forward.19} parent=0 // loop_header_branch
    %13 = sbr.rel (%p11) target = $region8
  $region5: #{global_generator_forward.19} parent=0 // loop_body
    %s15 = ssub.s32 %s10, 1
    %s16 = ssub.s32 %s10, 2
    %s26 = sadd.s32 1, %s19
    %p27 = scmp.ge.s32.totalorder %s26, 1
    %s28 = scalar_select %p27, 0, %s26
    %s29 = sadd.s32 1, %s18
    %s30 = scalar_select %p27, %s29, %s18
    %p31 = scmp.ge.s32.totalorder %s30, 1
    %s32 = scalar_select %p31, 0, %s30
    %s33 = sadd.s32 1, %s17
    %s34 = scalar_select %p31, %s33, %s17
    %p35 = scmp.ge.s32.totalorder %s34, 4
    %s36 = scalar_select %p35, 0, %s34
    %s37 = ssub.s32 %s17, %s36
    %s38 = ssub.s32 %s19, %s28
    %s39 = sor.u32 %s37, %s38
    %p40 = scmp.eq.s32.totalorder %s39, 0
    %s42 = sadd.s32 %s41, 1
    %s43 = scalar_select %p40, %s41, %s42
    %p46 = pneg %p40
    %p47 = scmp.eq.s32.totalorder %s10, 3
    %p48 = por %p46, %p47
    %p49 = scmp.ne.s32.totalorder %s41, %s44
    %p50 = scmp.eq.s32.totalorder %s10, 0
    %p51 = por %p49, %p50
    %p52 = scmp.ne.s32.totalorder %s41, %s44
    %p53 = scmp.eq.s32.totalorder %s15, 3
    %p54 = por %p52, %p53
    %p55 = scmp.ne.s32.totalorder %s44, %s45
    %p56 = scmp.eq.s32.totalorder %s15, 0
    %p57 = por %p55, %p56
    %p58 = scmp.ne.s32.totalorder %s44, %s45
    %p59 = scmp.eq.s32.totalorder %s16, 3
    %p60 = por %p58, %p59
    %p62 = scmp.ne.s32.totalorder %s45, %s61
    %p63 = scmp.eq.s32.totalorder %s16, 0
    %p64 = por %p62, %p63
    %s65 = ssub.s32 %s19, %s28
    %s66 = ssub.s32 %s18, %s32
    %s67 = sor.u32 %s65, %s66
    %p68 = scmp.eq.s32.totalorder %s67, 0
    %s70 = sadd.s32 %s69, 1
    %s71 = scalar_select %p68, %s69, %s70
    %p74 = pneg %p68
    %p75 = scmp.eq.s32.totalorder %s10, 3
    %p76 = por %p74, %p75
    %p77 = scmp.ne.s32.totalorder %s69, %s72
    %p78 = scmp.eq.s32.totalorder %s10, 0
    %p79 = por %p77, %p78
    %p80 = scmp.ne.s32.totalorder %s69, %s72
    %p81 = scmp.eq.s32.totalorder %s15, 3
    %p82 = por %p80, %p81
    %p83 = scmp.ne.s32.totalorder %s72, %s73
    %p84 = scmp.eq.s32.totalorder %s15, 0
    %p85 = por %p83, %p84
    %p86 = scmp.ne.s32.totalorder %s72, %s73
    %p87 = scmp.eq.s32.totalorder %s16, 3
    %p88 = por %p86, %p87
    %p90 = scmp.ne.s32.totalorder %s73, %s89
    %p91 = scmp.eq.s32.totalorder %s16, 0
    %p92 = por %p90, %p91
    %s93 = ssub.s32 %s18, %s32
    %p94 = scmp.eq.s32.totalorder %s93, 0
    %s96 = sadd.s32 %s95, 1
    %s97 = scalar_select %p94, %s95, %s96
    %p100 = pneg %p94
    %p101 = scmp.eq.s32.totalorder %s10, 3
    %p102 = por %p100, %p101
    %p103 = scmp.ne.s32.totalorder %s95, %s98
    %p104 = scmp.eq.s32.totalorder %s10, 0
    %p105 = por %p103, %p104
    %p106 = scmp.ne.s32.totalorder %s95, %s98
    %p107 = scmp.eq.s32.totalorder %s15, 3
    %p108 = por %p106, %p107
    %p109 = scmp.ne.s32.totalorder %s98, %s99
    %p110 = scmp.eq.s32.totalorder %s15, 0
    %p111 = por %p109, %p110
    %p112 = scmp.ne.s32.totalorder %s98, %s99
    %p113 = scmp.eq.s32.totalorder %s16, 3
    %p114 = por %p112, %p113
    %p116 = scmp.ne.s32.totalorder %s99, %s115
    %p117 = scmp.eq.s32.totalorder %s16, 0
    %p118 = por %p116, %p117
    %s119 = ssub.s32 %s18, %s32
    %p120 = scmp.eq.s32.totalorder %s119, 0
    %s122 = sadd.s32 %s121, 1
    %s123 = scalar_select %p120, %s121, %s122
    %p126 = pneg %p120
    %p127 = scmp.eq.s32.totalorder %s10, 3
    %p128 = por %p126, %p127
    %p129 = scmp.ne.s32.totalorder %s121, %s124
    %p130 = scmp.eq.s32.totalorder %s10, 0
    %p131 = por %p129, %p130
    %p132 = scmp.ne.s32.totalorder %s121, %s124
    %p133 = scmp.eq.s32.totalorder %s15, 3
    %p134 = por %p132, %p133
    %p135 = scmp.ne.s32.totalorder %s124, %s125
    %p136 = scmp.eq.s32.totalorder %s15, 0
    %p137 = por %p135, %p136
    %p138 = scmp.ne.s32.totalorder %s124, %s125
    %p139 = scmp.eq.s32.totalorder %s16, 3
    %p140 = por %p138, %p139
    %p142 = scmp.ne.s32.totalorder %s125, %s141
    %p143 = scmp.eq.s32.totalorder %s16, 0
    %p144 = por %p142, %p143
    %s145 = ssub.s32 %s17, %s36
    %s146 = ssub.s32 %s18, %s32
    %s147 = sor.u32 %s145, %s146
    %p148 = scmp.eq.s32.totalorder %s147, 0
    %s150 = sadd.s32 %s149, 1
    %s151 = scalar_select %p148, %s149, %s150
    %p154 = pneg %p148
    %p155 = scmp.eq.s32.totalorder %s10, 3
    %p156 = por %p154, %p155
    %p157 = scmp.ne.s32.totalorder %s149, %s152
    %p158 = scmp.eq.s32.totalorder %s10, 0
    %p159 = por %p157, %p158
    %p160 = scmp.ne.s32.totalorder %s149, %s152
    %p161 = scmp.eq.s32.totalorder %s15, 3
    %p162 = por %p160, %p161
    %p163 = scmp.ne.s32.totalorder %s152, %s153
    %p164 = scmp.eq.s32.totalorder %s15, 0
    %p165 = por %p163, %p164
    %p166 = scmp.ne.s32.totalorder %s152, %s153
    %p167 = scmp.eq.s32.totalorder %s16, 3
    %p168 = por %p166, %p167
    %p170 = scmp.ne.s32.totalorder %s153, %s169
    %p171 = scmp.eq.s32.totalorder %s16, 0
    %p172 = por %p170, %p171
    %p173 = scmp.le.s32.totalorder 1, %s10
    %p174 = scmp.lt.s32.totalorder %s10, 5
    %p175 = pnand %p173, %p174
    %p176 = pneg %p175
    // Predicated region
    $region9: #{global_generator_forward.19} parent=5 // pred_check
      _
    $region10: #{global_generator_forward.19} parent=5 // pred_check_branch
      %178 = sbr.rel (%p175) target = $region12
    $region11: #{global_generator_forward.19} parent=5 // pred_region
      %s179 = ssub.s32 %s10, 1
      // Predicated region
      $region13: #{global_generator_forward.19} parent=11 // pred_check
        %p180 = pneg %p85
      $region14: #{global_generator_forward.19} parent=11 // pred_check_branch
        %182 = sbr.rel (%p180) target = $region16
      $region15: #{global_generator_forward.19} parent=11 // pred_region
        %s183 = smul.u32 64, %s22
        %p184 = scmp.lt.s32.totalorder %s183, 63
        %s185 = scalar_select %p184, %s183, 63
        %p186 = scmp.lt.s32.totalorder %s21, 0
        %s187 = scalar_select %p186, %s21, 0
        %s188 = sadd.s32 %s187, %s185
        %s189 = smul.addr %s188, 8
        %s190 = scalar_lea.vmem %s1, %s189
        %s191 = smul.u32 64, %s22
      $region16: #{global_generator_forward.19} parent=11 // pred_fallthru
        _
      // Predicated region
      $region17: #{global_generator_forward.19} parent=11 // pred_check
        %p192 = pneg %p111
      $region18: #{global_generator_forward.19} parent=11 // pred_check_branch
        %194 = sbr.rel (%p192) target = $region20
      $region19: #{global_generator_forward.19} parent=11 // pred_region
        %p195 = scmp.lt.s32.totalorder %s21, 0
        %s196 = scalar_select %p195, %s21, 0
        %s197 = scalar_lea.vmem %s2, %s196
      $region20: #{global_generator_forward.19} parent=11 // pred_fallthru
        _
      // Predicated region
      $region21: #{global_generator_forward.19} parent=11 // pred_check
        %p198 = pneg %p137
      $region22: #{global_generator_forward.19} parent=11 // pred_check_branch
        %200 = sbr.rel (%p198) target = $region24
      $region23: #{global_generator_forward.19} parent=11 // pred_region
        %p201 = scmp.lt.s32.totalorder %s21, 0
        %s202 = scalar_select %p201, %s21, 0
        %s203 = scalar_lea.vmem %s3, %s202
      $region24: #{global_generator_forward.19} parent=11 // pred_fallthru
        _
    $region12: #{global_generator_forward.19} parent=5 // pred_fallthru
      _
    %p204 = scmp.lt.s32.totalorder %s10, 4
    // Predicated region
    $region25: #{global_generator_forward.19} parent=5 // pred_check
      %p205 = pneg %p204
    $region26: #{global_generator_forward.19} parent=5 // pred_check_branch
      %207 = sbr.rel (%p205) target = $region28
    $region27: #{global_generator_forward.19} parent=5 // pred_region
      // Predicated region
      $region29: #{global_generator_forward.19} parent=27 // pred_check
        %p208 = pneg %p51
      $region30: #{global_generator_forward.19} parent=27 // pred_check_branch
        %210 = sbr.rel (%p208) target = $region32
      $region31: #{global_generator_forward.19} parent=27 // pred_region
        %s211 = smul.u32 16, %s17
        %s212 = smul.u32 4, %s19
        %p213 = scmp.lt.s32.totalorder %s211, 63
        %s214 = scalar_select %p213, %s211, 63
        %p215 = scmp.lt.s32.totalorder %s212, 3
        %s216 = scalar_select %p215, %s212, 3
        %s217 = smul.addr %s214, 4
        %s218 = sadd.s32 %s216, %s217
        %s219 = smul.addr %s218, 8
        %s220 = scalar_lea.vmem %s0, %s219
        %s221 = smul.u32 16, %s17
        %s222 = smul.u32 4, %s19
      $region32: #{global_generator_forward.19} parent=27 // pred_fallthru
        _
    $region28: #{global_generator_forward.19} parent=5 // pred_fallthru
      _
    %p223 = scmp.le.s32.totalorder 1, %s10
    %p224 = scmp.lt.s32.totalorder %s10, 5
    %p225 = pnand %p223, %p224
    %p226 = pneg %p225
    // Predicated region
    $region33: #{global_generator_forward.19} parent=5 // pred_check
      _
    $region34: #{global_generator_forward.19} parent=5 // pred_check_branch
      %228 = sbr.rel (%p225) target = $region36
    $region35: #{global_generator_forward.19} parent=5 // pred_region
      %s229 = ssub.s32 %s10, 1
      %s230 = smul.u32 16, %s20
      %s231 = smul.u32 4, %s22
      %p232 = scmp.lt.s32.totalorder %s230, 63
      %s233 = scalar_select %p232, %s230, 63
      %p234 = scmp.lt.s32.totalorder %s231, 3
      %s235 = scalar_select %p234, %s231, 3
      %s236 = smul.addr %s233, 4
      %s237 = sadd.s32 %s235, %s236
      %s238 = smul.addr %s237, 8
      %s239 = scalar_lea.vmem %s0, %s238
      %p240 = pneg %p57
      %p241 = pneg %p54
      %s242 = smul.u32 64, %s22
      %p243 = scmp.lt.s32.totalorder %s242, 63
      %s244 = scalar_select %p243, %s242, 63
      %p245 = scmp.lt.s32.totalorder %s21, 0
      %s246 = scalar_select %p245, %s21, 0
      %s247 = sadd.s32 %s246, %s244
      %s248 = smul.addr %s247, 8
      %s249 = scalar_lea.vmem %s1, %s248
      %p250 = pneg %p85
      %p251 = pneg %p82
      %p252 = scmp.lt.s32.totalorder %s21, 0
      %s253 = scalar_select %p252, %s21, 0
      %s254 = scalar_lea.vmem %s2, %s253
      %p255 = pneg %p111
      %p256 = pneg %p108
      %p257 = scmp.lt.s32.totalorder %s21, 0
      %s258 = scalar_select %p257, %s21, 0
      %s259 = scalar_lea.vmem %s3, %s258
      %p260 = pneg %p137
      %p261 = pneg %p134
      %p262 = pneg %p165
      %p263 = pneg %p162
      %s264 = smul.u32 16, %s20
      %p265 = scmp.lt.s32.totalorder %s264, 63
      %s266 = scalar_select %p265, %s264, 63
      %p267 = scmp.lt.s32.totalorder %s21, 0
      %s268 = scalar_select %p267, %s21, 0
      %s269 = sadd.s32 %s268, %s266
      %s270 = smul.addr %s269, 8
      %s271 = scalar_lea.vmem %s4, %s270
      %s272 = smul.u32 16, %s20
      %s273 = smul.u32 4, %s22
      %p274 = scmp.lt.s32.totalorder %s272, 63
      %s275 = scalar_select %p274, %s272, 63
      %p276 = scmp.lt.s32.totalorder %s273, 3
      %s277 = scalar_select %p276, %s273, 3
      %s278 = smul.addr %s275, 4
      %s279 = sadd.s32 %s277, %s278
      %s280 = smul.addr %s279, 8
      %s281 = scalar_lea.vmem %s0, %s280
      %s282 = smul.u32 16, %s20
      %s283 = smul.u32 4, %s22
      %s284 = smul.u32 64, %s22
      %p285 = scmp.lt.s32.totalorder %s284, 63
      %s286 = scalar_select %p285, %s284, 63
      %p287 = scmp.lt.s32.totalorder %s21, 0
      %s288 = scalar_select %p287, %s21, 0
      %s289 = sadd.s32 %s288, %s286
      %s290 = smul.addr %s289, 8
      %s291 = scalar_lea.vmem %s1, %s290
      %s292 = smul.u32 64, %s22
      %p293 = scmp.lt.s32.totalorder %s21, 0
      %s294 = scalar_select %p293, %s21, 0
      %s295 = scalar_lea.vmem %s2, %s294
      %p296 = scmp.lt.s32.totalorder %s21, 0
      %s297 = scalar_select %p296, %s21, 0
      %s298 = scalar_lea.vmem %s3, %s297
      %s299 = smul.u32 16, %s20
      %p300 = scmp.lt.s32.totalorder %s299, 63
      %s301 = scalar_select %p300, %s299, 63
      %p302 = scmp.lt.s32.totalorder %s21, 0
      %s303 = scalar_select %p302, %s21, 0
      %s304 = sadd.s32 %s303, %s301
      %s305 = smul.addr %s304, 8
      %s306 = scalar_lea.vmem %s4, %s305
      %s307 = smul.u32 16, %s20
      %p308 = scmp.eq.s32.totalorder %s22, 0
      // Predicated region
      $region37: #{global_generator_forward.19} parent=35 // pred_check
        %p309 = pneg %p308
      $region38: #{global_generator_forward.19} parent=35 // pred_check_branch
        %311 = sbr.rel (%p309) target = $region40
      $region39: #{global_generator_forward.19} parent=35 // pred_region
        %312 = vst [vmem:[#allocation2] sm:$0xff] 0.0
        %313 = vst [vmem:[#allocation2 + $0x8] sm:$0xff] 0.0
        %314 = vst [vmem:[#allocation2 + $0x10] sm:$0xff] 0.0
        %315 = vst [vmem:[#allocation2 + $0x18] sm:$0xff] 0.0
        %316 = vst [vmem:[#allocation2 + $0x20] sm:$0xff] 0.0
        %317 = vst [vmem:[#allocation2 + $0x28] sm:$0xff] 0.0
        %318 = vst [vmem:[#allocation2 + $0x30] sm:$0xff] 0.0
        %319 = vst [vmem:[#allocation2 + $0x38] sm:$0xff] 0.0
        %320 = vst [vmem:[#allocation2 + $0x40] sm:$0xff] 0.0
        %321 = vst [vmem:[#allocation2 + $0x48] sm:$0xff] 0.0
        %322 = vst [vmem:[#allocation2 + $0x50] sm:$0xff] 0.0
        %323 = vst [vmem:[#allocation2 + $0x58] sm:$0xff] 0.0
        %324 = vst [vmem:[#allocation2 + $0x60] sm:$0xff] 0.0
        %325 = vst [vmem:[#allocation2 + $0x68] sm:$0xff] 0.0
        %326 = vst [vmem:[#allocation2 + $0x70] sm:$0xff] 0.0
        %327 = vst [vmem:[#allocation2 + $0x78] sm:$0xff] 0.0
      $region40: #{global_generator_forward.19} parent=35 // pred_fallthru
        _
      %v328 = vld [vmem:[#allocation2] sm:$0xff]
      %v329 = vld [vmem:[#allocation2 + $0x8] sm:$0xff]
      %v330 = vld [vmem:[#allocation2 + $0x10] sm:$0xff]
      %v331 = vld [vmem:[#allocation2 + $0x18] sm:$0xff]
      %v332 = vld [vmem:[#allocation2 + $0x20] sm:$0xff]
      %v333 = vld [vmem:[#allocation2 + $0x28] sm:$0xff]
      %v334 = vld [vmem:[#allocation2 + $0x30] sm:$0xff]
      %v335 = vld [vmem:[#allocation2 + $0x38] sm:$0xff]
      %v336 = vld [vmem:[#allocation2 + $0x40] sm:$0xff]
      %v337 = vld [vmem:[#allocation2 + $0x48] sm:$0xff]
      %v338 = vld [vmem:[#allocation2 + $0x50] sm:$0xff]
      %v339 = vld [vmem:[#allocation2 + $0x58] sm:$0xff]
      %v340 = vld [vmem:[#allocation2 + $0x60] sm:$0xff]
      %v341 = vld [vmem:[#allocation2 + $0x68] sm:$0xff]
      %v342 = vld [vmem:[#allocation2 + $0x70] sm:$0xff]
      %v343 = vld [vmem:[#allocation2 + $0x78] sm:$0xff]
      %v344 = vld [vmem:[%s281] sm:$0xff]
      %v345 = vld [vmem:[%s281 + $0x8] sm:$0xff]
      %v346 = vld [vmem:[%s281 + $0x10] sm:$0xff]
      %v347 = vld [vmem:[%s281 + $0x18] sm:$0xff]
      %v348 = vld [vmem:[%s281 + $0x20] sm:$0xff]
      %v349 = vld [vmem:[%s281 + $0x28] sm:$0xff]
      %v350 = vld [vmem:[%s281 + $0x30] sm:$0xff]
      %v351 = vld [vmem:[%s281 + $0x38] sm:$0xff]
      %v352 = vld [vmem:[%s281 + $0x40] sm:$0xff]
      %v353 = vld [vmem:[%s281 + $0x48] sm:$0xff]
      %v354 = vld [vmem:[%s281 + $0x50] sm:$0xff]
      %v355 = vld [vmem:[%s281 + $0x58] sm:$0xff]
      %v356 = vld [vmem:[%s281 + $0x60] sm:$0xff]
      %v357 = vld [vmem:[%s281 + $0x68] sm:$0xff]
      %v358 = vld [vmem:[%s281 + $0x70] sm:$0xff]
      %v359 = vld [vmem:[%s281 + $0x78] sm:$0xff]
      %v360 = vld [vmem:[%s281 + $0x80] sm:$0xff]
      %v361 = vld [vmem:[%s281 + $0x88] sm:$0xff]
      %v362 = vld [vmem:[%s281 + $0x90] sm:$0xff]
      %v363 = vld [vmem:[%s281 + $0x98] sm:$0xff]
      %v364 = vld [vmem:[%s281 + $0xa0] sm:$0xff]
      %v365 = vld [vmem:[%s281 + $0xa8] sm:$0xff]
      %v366 = vld [vmem:[%s281 + $0xb0] sm:$0xff]
      %v367 = vld [vmem:[%s281 + $0xb8] sm:$0xff]
      %v368 = vld [vmem:[%s281 + $0xc0] sm:$0xff]
      %v369 = vld [vmem:[%s281 + $0xc8] sm:$0xff]
      %v370 = vld [vmem:[%s281 + $0xd0] sm:$0xff]
      %v371 = vld [vmem:[%s281 + $0xd8] sm:$0xff]
      %v372 = vld [vmem:[%s281 + $0xe0] sm:$0xff]
      %v373 = vld [vmem:[%s281 + $0xe8] sm:$0xff]
      %v374 = vld [vmem:[%s281 + $0xf0] sm:$0xff]
      %v375 = vld [vmem:[%s281 + $0xf8] sm:$0xff]
      %v376 = vld [vmem:[%s281 + $0x100] sm:$0xff]
      %v377 = vld [vmem:[%s281 + $0x108] sm:$0xff]
      %v378 = vld [vmem:[%s281 + $0x110] sm:$0xff]
      %v379 = vld [vmem:[%s281 + $0x118] sm:$0xff]
      %v380 = vld [vmem:[%s281 + $0x120] sm:$0xff]
      %v381 = vld [vmem:[%s281 + $0x128] sm:$0xff]
      %v382 = vld [vmem:[%s281 + $0x130] sm:$0xff]
      %v383 = vld [vmem:[%s281 + $0x138] sm:$0xff]
      %v384 = vld [vmem:[%s281 + $0x140] sm:$0xff]
      %v385 = vld [vmem:[%s281 + $0x148] sm:$0xff]
      %v386 = vld [vmem:[%s281 + $0x150] sm:$0xff]
      %v387 = vld [vmem:[%s281 + $0x158] sm:$0xff]
      %v388 = vld [vmem:[%s281 + $0x160] sm:$0xff]
      %v389 = vld [vmem:[%s281 + $0x168] sm:$0xff]
      %v390 = vld [vmem:[%s281 + $0x170] sm:$0xff]
      %v391 = vld [vmem:[%s281 + $0x178] sm:$0xff]
      %v392 = vld [vmem:[%s281 + $0x180] sm:$0xff]
      %v393 = vld [vmem:[%s281 + $0x188] sm:$0xff]
      %v394 = vld [vmem:[%s281 + $0x190] sm:$0xff]
      %v395 = vld [vmem:[%s281 + $0x198] sm:$0xff]
      %v396 = vld [vmem:[%s281 + $0x1a0] sm:$0xff]
      %v397 = vld [vmem:[%s281 + $0x1a8] sm:$0xff]
      %v398 = vld [vmem:[%s281 + $0x1b0] sm:$0xff]
      %v399 = vld [vmem:[%s281 + $0x1b8] sm:$0xff]
      %v400 = vld [vmem:[%s281 + $0x1c0] sm:$0xff]
      %v401 = vld [vmem:[%s281 + $0x1c8] sm:$0xff]
      %v402 = vld [vmem:[%s281 + $0x1d0] sm:$0xff]
      %v403 = vld [vmem:[%s281 + $0x1d8] sm:$0xff]
      %v404 = vld [vmem:[%s281 + $0x1e0] sm:$0xff]
      %v405 = vld [vmem:[%s281 + $0x1e8] sm:$0xff]
      %v406 = vld [vmem:[%s281 + $0x1f0] sm:$0xff]
      %v407 = vld [vmem:[%s281 + $0x1f8] sm:$0xff]
      %v408 = vld [vmem:[%s291] sm:$0xff]
      %v409 = vld [vmem:[%s291 + $0x8] sm:$0xff]
      %v410 = vld [vmem:[%s291 + $0x10] sm:$0xff]
      %v411 = vld [vmem:[%s291 + $0x18] sm:$0xff]
      %v412 = vld [vmem:[%s291 + $0x20] sm:$0xff]
      %v413 = vld [vmem:[%s291 + $0x28] sm:$0xff]
      %v414 = vld [vmem:[%s291 + $0x30] sm:$0xff]
      %v415 = vld [vmem:[%s291 + $0x38] sm:$0xff]
      %v416 = vld [vmem:[%s291 + $0x40] sm:$0xff]
      %v417 = vld [vmem:[%s291 + $0x48] sm:$0xff]
      %v418 = vld [vmem:[%s291 + $0x50] sm:$0xff]
      %v419 = vld [vmem:[%s291 + $0x58] sm:$0xff]
      %v420 = vld [vmem:[%s291 + $0x60] sm:$0xff]
      %v421 = vld [vmem:[%s291 + $0x68] sm:$0xff]
      %v422 = vld [vmem:[%s291 + $0x70] sm:$0xff]
      %v423 = vld [vmem:[%s291 + $0x78] sm:$0xff]
      %v424 = vld [vmem:[%s291 + $0x80] sm:$0xff]
      %v425 = vld [vmem:[%s291 + $0x88] sm:$0xff]
      %v426 = vld [vmem:[%s291 + $0x90] sm:$0xff]
      %v427 = vld [vmem:[%s291 + $0x98] sm:$0xff]
      %v428 = vld [vmem:[%s291 + $0xa0] sm:$0xff]
      %v429 = vld [vmem:[%s291 + $0xa8] sm:$0xff]
      %v430 = vld [vmem:[%s291 + $0xb0] sm:$0xff]
      %v431 = vld [vmem:[%s291 + $0xb8] sm:$0xff]
      %v432 = vld [vmem:[%s291 + $0xc0] sm:$0xff]
      %v433 = vld [vmem:[%s291 + $0xc8] sm:$0xff]
      %v434 = vld [vmem:[%s291 + $0xd0] sm:$0xff]
      %v435 = vld [vmem:[%s291 + $0xd8] sm:$0xff]
      %v436 = vld [vmem:[%s291 + $0xe0] sm:$0xff]
      %v437 = vld [vmem:[%s291 + $0xe8] sm:$0xff]
      %v438 = vld [vmem:[%s291 + $0xf0] sm:$0xff]
      %v439 = vld [vmem:[%s291 + $0xf8] sm:$0xff]
      %v440 = vld [vmem:[%s291 + $0x100] sm:$0xff]
      %v441 = vld [vmem:[%s291 + $0x108] sm:$0xff]
      %v442 = vld [vmem:[%s291 + $0x110] sm:$0xff]
      %v443 = vld [vmem:[%s291 + $0x118] sm:$0xff]
      %v444 = vld [vmem:[%s291 + $0x120] sm:$0xff]
      %v445 = vld [vmem:[%s291 + $0x128] sm:$0xff]
      %v446 = vld [vmem:[%s291 + $0x130] sm:$0xff]
      %v447 = vld [vmem:[%s291 + $0x138] sm:$0xff]
      %v448 = vld [vmem:[%s291 + $0x140] sm:$0xff]
      %v449 = vld [vmem:[%s291 + $0x148] sm:$0xff]
      %v450 = vld [vmem:[%s291 + $0x150] sm:$0xff]
      %v451 = vld [vmem:[%s291 + $0x158] sm:$0xff]
      %v452 = vld [vmem:[%s291 + $0x160] sm:$0xff]
      %v453 = vld [vmem:[%s291 + $0x168] sm:$0xff]
      %v454 = vld [vmem:[%s291 + $0x170] sm:$0xff]
      %v455 = vld [vmem:[%s291 + $0x178] sm:$0xff]
      %v456 = vld [vmem:[%s291 + $0x180] sm:$0xff]
      %v457 = vld [vmem:[%s291 + $0x188] sm:$0xff]
      %v458 = vld [vmem:[%s291 + $0x190] sm:$0xff]
      %v459 = vld [vmem:[%s291 + $0x198] sm:$0xff]
      %v460 = vld [vmem:[%s291 + $0x1a0] sm:$0xff]
      %v461 = vld [vmem:[%s291 + $0x1a8] sm:$0xff]
      %v462 = vld [vmem:[%s291 + $0x1b0] sm:$0xff]
      %v463 = vld [vmem:[%s291 + $0x1b8] sm:$0xff]
      %v464 = vld [vmem:[%s291 + $0x1c0] sm:$0xff]
      %v465 = vld [vmem:[%s291 + $0x1c8] sm:$0xff]
      %v466 = vld [vmem:[%s291 + $0x1d0] sm:$0xff]
      %v467 = vld [vmem:[%s291 + $0x1d8] sm:$0xff]
      %v468 = vld [vmem:[%s291 + $0x1e0] sm:$0xff]
      %v469 = vld [vmem:[%s291 + $0x1e8] sm:$0xff]
      %v470 = vld [vmem:[%s291 + $0x1f0] sm:$0xff]
      %v471 = vld [vmem:[%s291 + $0x1f8] sm:$0xff]
      %472 = vmatprep.subr.mxu0 0.0
      %473 = vmatpush1.msra.mxu0 %v408
      %474 = vmatprep.subr.mxu0 0.0
      %475 = vmatpush1.msra.mxu0 %v409
      %476 = vmatprep.subr.mxu0 0.0
      %477 = vmatpush1.msra.mxu0 %v410
      %478 = vmatprep.subr.mxu0 0.0
      %479 = vmatpush1.msra.mxu0 %v411
      %480 = vmatprep.subr.mxu0 0.0
      %481 = vmatpush1.msra.mxu0 %v412
      %482 = vmatprep.subr.mxu0 0.0
      %483 = vmatpush1.msra.mxu0 %v413
      %484 = vmatprep.subr.mxu0 0.0
      %485 = vmatpush1.msra.mxu0 %v414
      %486 = vmatprep.subr.mxu0 0.0
      %487 = vmatpush1.msra.mxu0 %v415
      %488 = vmatprep.subr.mxu0 0.0
      %489 = vmatpush1.msra.mxu0 %v416
      %490 = vmatprep.subr.mxu0 0.0
      %491 = vmatpush1.msra.mxu0 %v417
      %492 = vmatprep.subr.mxu0 0.0
      %493 = vmatpush1.msra.mxu0 %v418
      %494 = vmatprep.subr.mxu0 0.0
      %495 = vmatpush1.msra.mxu0 %v419
      %496 = vmatprep.subr.mxu0 0.0
      %497 = vmatpush1.msra.mxu0 %v420
      %498 = vmatprep.subr.mxu0 0.0
      %499 = vmatpush1.msra.mxu0 %v421
      %500 = vmatprep.subr.mxu0 0.0
      %501 = vmatpush1.msra.mxu0 %v422
      %502 = vmatprep.subr.mxu0 0.0
      %503 = vmatpush1.msra.mxu0 %v423
      %504 = vmatprep.subr.mxu0 0.0
      %505 = vmatpush1.msra.mxu0 %v424
      %506 = vmatprep.subr.mxu0 0.0
      %507 = vmatpush1.msra.mxu0 %v425
      %508 = vmatprep.subr.mxu0 0.0
      %509 = vmatpush1.msra.mxu0 %v426
      %510 = vmatprep.subr.mxu0 0.0
      %511 = vmatpush1.msra.mxu0 %v427
      %512 = vmatprep.subr.mxu0 0.0
      %513 = vmatpush1.msra.mxu0 %v428
      %514 = vmatprep.subr.mxu0 0.0
      %515 = vmatpush1.msra.mxu0 %v429
      %516 = vmatprep.subr.mxu0 0.0
      %517 = vmatpush1.msra.mxu0 %v430
      %518 = vmatprep.subr.mxu0 0.0
      %519 = vmatpush1.msra.mxu0 %v431
      %520 = vmatprep.subr.mxu0 0.0
      %521 = vmatpush1.msra.mxu0 %v432
      %522 = vmatprep.subr.mxu0 0.0
      %523 = vmatpush1.msra.mxu0 %v433
      %524 = vmatprep.subr.mxu0 0.0
      %525 = vmatpush1.msra.mxu0 %v434
      %526 = vmatprep.subr.mxu0 0.0
      %527 = vmatpush1.msra.mxu0 %v435
      %528 = vmatprep.subr.mxu0 0.0
      %529 = vmatpush1.msra.mxu0 %v436
      %530 = vmatprep.subr.mxu0 0.0
      %531 = vmatpush1.msra.mxu0 %v437
      %532 = vmatprep.subr.mxu0 0.0
      %533 = vmatpush1.msra.mxu0 %v438
      %534 = vmatprep.subr.mxu0 0.0
      %535 = vmatpush1.msra.mxu0 %v439
      %536 = vmatprep.mubr.f32.mxu0 %v345
      %537 = vmatmul.mubr.f32.gmra.mrb[0].mxu0 %v344
      %v538 = vpop.f32.mrb[0].mxu0
      %v539 = vadd.f32 0.0, %v538
      %v540 = vpop.f32.mrb[0].mxu0
      %541 = vmatprep.mubr.f32.mxu0 %v349
      %542 = vmatmul.mubr.f32.gmra.mrb[0].mxu0 %v348
      %v543 = vpop.f32.mrb[0].mxu0
      %v544 = vadd.f32 0.0, %v543
      %v545 = vpop.f32.mrb[0].mxu0
      %546 = vmatprep.mubr.f32.mxu0 %v353
      %547 = vmatmul.mubr.f32.gmra.mrb[0].mxu0 %v352
      %v548 = vpop.f32.mrb[0].mxu0
      %v549 = vadd.f32 0.0, %v548
      %v550 = vpop.f32.mrb[0].mxu0
      %551 = vmatprep.mubr.f32.mxu0 %v357
      %552 = vmatmul.mubr.f32.gmra.mrb[0].mxu0 %v356
      %v553 = vpop.f32.mrb[0].mxu0
      %v554 = vadd.f32 0.0, %v553
      %v555 = vpop.f32.mrb[0].mxu0
      %556 = vmatprep.mubr.f32.mxu0 %v361
      %557 = vmatmul.mubr.f32.gmra.mrb[0].mxu0 %v360
      %v558 = vpop.f32.mrb[0].mxu0
      %v559 = vadd.f32 0.0, %v558
      %v560 = vpop.f32.mrb[0].mxu0
      %561 = vmatprep.mubr.f32.mxu0 %v365
      %562 = vmatmul.mubr.f32.gmra.mrb[0].mxu0 %v364
      %v563 = vpop.f32.mrb[0].mxu0
      %v564 = vadd.f32 0.0, %v563
      %v565 = vpop.f32.mrb[0].mxu0
      %566 = vmatprep.mubr.f32.mxu0 %v369
      %567 = vmatmul.mubr.f32.gmra.mrb[0].mxu0 %v368
      %v568 = vpop.f32.mrb[0].mxu0
      %v569 = vadd.f32 0.0, %v568
      %v570 = vpop.f32.mrb[0].mxu0
      %571 = vmatprep.mubr.f32.mxu0 %v373
      %572 = vmatmul.mubr.f32.gmra.mrb[0].mxu0 %v372
      %v573 = vpop.f32.mrb[0].mxu0
      %v574 = vadd.f32 0.0, %v573
      %v575 = vpop.f32.mrb[0].mxu0
      %576 = vmatprep.mubr.f32.mxu0 %v377
      %577 = vmatmul.mubr.f32.gmra.mrb[0].mxu0 %v376
      %v578 = vpop.f32.mrb[0].mxu0
      %v579 = vadd.f32 0.0, %v578
      %v580 = vpop.f32.mrb[0].mxu0
      %581 = vmatprep.mubr.f32.mxu0 %v381
      %582 = vmatmul.mubr.f32.gmra.mrb[0].mxu0 %v380
      %v583 = vpop.f32.mrb[0].mxu0
      %v584 = vadd.f32 0.0, %v583
      %v585 = vpop.f32.mrb[0].mxu0
      %586 = vmatprep.mubr.f32.mxu0 %v385
      %587 = vmatmul.mubr.f32.gmra.mrb[0].mxu0 %v384
      %v588 = vpop.f32.mrb[0].mxu0
      %v589 = vadd.f32 0.0, %v588
      %v590 = vpop.f32.mrb[0].mxu0
      %591 = vmatprep.mubr.f32.mxu0 %v389
      %592 = vmatmul.mubr.f32.gmra.mrb[0].mxu0 %v388
      %v593 = vpop.f32.mrb[0].mxu0
      %v594 = vadd.f32 0.0, %v593
      %v595 = vpop.f32.mrb[0].mxu0
      %596 = vmatprep.mubr.f32.mxu0 %v393
      %597 = vmatmul.mubr.f32.gmra.mrb[0].mxu0 %v392
      %v598 = vpop.f32.mrb[0].mxu0
      %v599 = vadd.f32 0.0, %v598
      %v600 = vpop.f32.mrb[0].mxu0
      %601 = vmatprep.mubr.f32.mxu0 %v397
      %602 = vmatmul.mubr.f32.gmra.mrb[0].mxu0 %v396
      %v603 = vpop.f32.mrb[0].mxu0
      %v604 = vadd.f32 0.0, %v603
      %v605 = vpop.f32.mrb[0].mxu0
      %606 = vmatprep.mubr.f32.mxu0 %v401
      %607 = vmatmul.mubr.f32.gmra.mrb[0].mxu0 %v400
      %v608 = vpop.f32.mrb[0].mxu0
      %v609 = vadd.f32 0.0, %v608
      %v610 = vpop.f32.mrb[0].mxu0
      %611 = vmatprep.mubr.f32.mxu0 %v405
      %612 = vmatmul.mubr.f32.gmra.mrb[0].mxu0 %v404
      %v613 = vpop.f32.mrb[0].mxu0
      %v614 = vadd.f32 0.0, %v613
      %v615 = vpop.f32.mrb[0].mxu0
      %616 = vdwg.mxu0
      %617 = vmatprep.subr.mxu0 0.0
      %618 = vmatpush1.msra.mxu0 %v440
      %619 = vmatprep.subr.mxu0 0.0
      %620 = vmatpush1.msra.mxu0 %v441
      %621 = vmatprep.subr.mxu0 0.0
      %622 = vmatpush1.msra.mxu0 %v442
      %623 = vmatprep.subr.mxu0 0.0
      %624 = vmatpush1.msra.mxu0 %v443
      %625 = vmatprep.subr.mxu0 0.0
      %626 = vmatpush1.msra.mxu0 %v444
      %627 = vmatprep.subr.mxu0 0.0
      %628 = vmatpush1.msra.mxu0 %v445
      %629 = vmatprep.subr.mxu0 0.0
      %630 = vmatpush1.msra.mxu0 %v446
      %631 = vmatprep.subr.mxu0 0.0
      %632 = vmatpush1.msra.mxu0 %v447
      %633 = vmatprep.subr.mxu0 0.0
      %634 = vmatpush1.msra.mxu0 %v448
      %635 = vmatprep.subr.mxu0 0.0
      %636 = vmatpush1.msra.mxu0 %v449
      %637 = vmatprep.subr.mxu0 0.0
      %638 = vmatpush1.msra.mxu0 %v450
      %639 = vmatprep.subr.mxu0 0.0
      %640 = vmatpush1.msra.mxu0 %v451
      %641 = vmatprep.subr.mxu0 0.0
      %642 = vmatpush1.msra.mxu0 %v452
      %643 = vmatprep.subr.mxu0 0.0
      %644 = vmatpush1.msra.mxu0 %v453
      %645 = vmatprep.subr.mxu0 0.0
      %646 = vmatpush1.msra.mxu0 %v454
      %647 = vmatprep.subr.mxu0 0.0
      %648 = vmatpush1.msra.mxu0 %v455
      %649 = vmatprep.subr.mxu0 0.0
      %650 = vmatpush1.msra.mxu0 %v456
      %651 = vmatprep.subr.mxu0 0.0
      %652 = vmatpush1.msra.mxu0 %v457
      %653 = vmatprep.subr.mxu0 0.0
      %654 = vmatpush1.msra.mxu0 %v458
      %655 = vmatprep.subr.mxu0 0.0
      %656 = vmatpush1.msra.mxu0 %v459
      %657 = vmatprep.subr.mxu0 0.0
      %658 = vmatpush1.msra.mxu0 %v460
      %659 = vmatprep.subr.mxu0 0.0
      %660 = vmatpush1.msra.mxu0 %v461
      %661 = vmatprep.subr.mxu0 0.0
      %662 = vmatpush1.msra.mxu0 %v462
      %663 = vmatprep.subr.mxu0 0.0
      %664 = vmatpush1.msra.mxu0 %v463
      %665 = vmatprep.subr.mxu0 0.0
      %666 = vmatpush1.msra.mxu0 %v464
      %667 = vmatprep.subr.mxu0 0.0
      %668 = vmatpush1.msra.mxu0 %v465
      %669 = vmatprep.subr.mxu0 0.0
      %670 = vmatpush1.msra.mxu0 %v466
      %671 = vmatprep.subr.mxu0 0.0
      %672 = vmatpush1.msra.mxu0 %v467
      %673 = vmatprep.subr.mxu0 0.0
      %674 = vmatpush1.msra.mxu0 %v468
      %675 = vmatprep.subr.mxu0 0.0
      %676 = vmatpush1.msra.mxu0 %v469
      %677 = vmatprep.subr.mxu0 0.0
      %678 = vmatpush1.msra.mxu0 %v470
      %679 = vmatprep.subr.mxu0 0.0
      %680 = vmatpush1.msra.mxu0 %v471
      %681 = vmatprep.mubr.f32.mxu0 %v347
      %682 = vmatmul.mubr.f32.gmra.mrb[0].mxu0 %v346
      %v683 = vpop.f32.mrb[0].mxu0
      %v684 = vadd.f32 %v539, %v683
      %v685 = vpop.f32.mrb[0].mxu0
      %686 = vmatprep.mubr.f32.mxu0 %v351
      %687 = vmatmul.mubr.f32.gmra.mrb[0].mxu0 %v350
      %v688 = vpop.f32.mrb[0].mxu0
      %v689 = vadd.f32 %v544, %v688
      %v690 = vpop.f32.mrb[0].mxu0
      %691 = vmatprep.mubr.f32.mxu0 %v355
      %692 = vmatmul.mubr.f32.gmra.mrb[0].mxu0 %v354
      %v693 = vpop.f32.mrb[0].mxu0
      %v694 = vadd.f32 %v549, %v693
      %v695 = vpop.f32.mrb[0].mxu0
      %696 = vmatprep.mubr.f32.mxu0 %v359
      %697 = vmatmul.mubr.f32.gmra.mrb[0].mxu0 %v358
      %v698 = vpop.f32.mrb[0].mxu0
      %v699 = vadd.f32 %v554, %v698
      %v700 = vpop.f32.mrb[0].mxu0
      %701 = vmatprep.mubr.f32.mxu0 %v363
      %702 = vmatmul.mubr.f32.gmra.mrb[0].mxu0 %v362
      %v703 = vpop.f32.mrb[0].mxu0
      %v704 = vadd.f32 %v559, %v703
      %v705 = vpop.f32.mrb[0].mxu0
      %706 = vmatprep.mubr.f32.mxu0 %v367
      %707 = vmatmul.mubr.f32.gmra.mrb[0].mxu0 %v366
      %v708 = vpop.f32.mrb[0].mxu0
      %v709 = vadd.f32 %v564, %v708
      %v710 = vpop.f32.mrb[0].mxu0
      %711 = vmatprep.mubr.f32.mxu0 %v371
      %712 = vmatmul.mubr.f32.gmra.mrb[0].mxu0 %v370
      %v713 = vpop.f32.mrb[0].mxu0
      %v714 = vadd.f32 %v569, %v713
      %v715 = vpop.f32.mrb[0].mxu0
      %716 = vmatprep.mubr.f32.mxu0 %v375
      %717 = vmatmul.mubr.f32.gmra.mrb[0].mxu0 %v374
      %v718 = vpop.f32.mrb[0].mxu0
      %v719 = vadd.f32 %v574, %v718
      %v720 = vpop.f32.mrb[0].mxu0
      %721 = vmatprep.mubr.f32.mxu0 %v379
      %722 = vmatmul.mubr.f32.gmra.mrb[0].mxu0 %v378
      %v723 = vpop.f32.mrb[0].mxu0
      %v724 = vadd.f32 %v579, %v723
      %v725 = vpop.f32.mrb[0].mxu0
      %726 = vmatprep.mubr.f32.mxu0 %v383
      %727 = vmatmul.mubr.f32.gmra.mrb[0].mxu0 %v382
      %v728 = vpop.f32.mrb[0].mxu0
      %v729 = vadd.f32 %v584, %v728
      %v730 = vpop.f32.mrb[0].mxu0
      %731 = vmatprep.mubr.f32.mxu0 %v387
      %732 = vmatmul.mubr.f32.gmra.mrb[0].mxu0 %v386
      %v733 = vpop.f32.mrb[0].mxu0
      %v734 = vadd.f32 %v589, %v733
      %v735 = vpop.f32.mrb[0].mxu0
      %736 = vmatprep.mubr.f32.mxu0 %v391
      %737 = vmatmul.mubr.f32.gmra.mrb[0].mxu0 %v390
      %v738 = vpop.f32.mrb[0].mxu0
      %v739 = vadd.f32 %v594, %v738
      %v740 = vpop.f32.mrb[0].mxu0
      %741 = vmatprep.mubr.f32.mxu0 %v395
      %742 = vmatmul.mubr.f32.gmra.mrb[0].mxu0 %v394
      %v743 = vpop.f32.mrb[0].mxu0
      %v744 = vadd.f32 %v599, %v743
      %v745 = vpop.f32.mrb[0].mxu0
      %746 = vmatprep.mubr.f32.mxu0 %v399
      %747 = vmatmul.mubr.f32.gmra.mrb[0].mxu0 %v398
      %v748 = vpop.f32.mrb[0].mxu0
      %v749 = vadd.f32 %v604, %v748
      %v750 = vpop.f32.mrb[0].mxu0
      %751 = vmatprep.mubr.f32.mxu0 %v403
      %752 = vmatmul.mubr.f32.gmra.mrb[0].mxu0 %v402
      %v753 = vpop.f32.mrb[0].mxu0
      %v754 = vadd.f32 %v609, %v753
      %v755 = vpop.f32.mrb[0].mxu0
      %756 = vmatprep.mubr.f32.mxu0 %v407
      %757 = vmatmul.mubr.f32.gmra.mrb[0].mxu0 %v406
      %v758 = vpop.f32.mrb[0].mxu0
      %v759 = vadd.f32 %v614, %v758
      %v760 = vpop.f32.mrb[0].mxu0
      %761 = vdwg.mxu0
      %v762 = vadd.f32 %v328, %v684
      %v763 = vadd.f32 %v329, %v689
      %v764 = vadd.f32 %v330, %v694
      %v765 = vadd.f32 %v331, %v699
      %v766 = vadd.f32 %v332, %v704
      %v767 = vadd.f32 %v333, %v709
      %v768 = vadd.f32 %v334, %v714
      %v769 = vadd.f32 %v335, %v719
      %v770 = vadd.f32 %v336, %v724
      %v771 = vadd.f32 %v337, %v729
      %v772 = vadd.f32 %v338, %v734
      %v773 = vadd.f32 %v339, %v739
      %v774 = vadd.f32 %v340, %v744
      %v775 = vadd.f32 %v341, %v749
      %v776 = vadd.f32 %v342, %v754
      %v777 = vadd.f32 %v343, %v759
      %778 = vst [vmem:[#allocation2] sm:$0xff] %v762
      %779 = vst [vmem:[#allocation2 + $0x8] sm:$0xff] %v763
      %780 = vst [vmem:[#allocation2 + $0x10] sm:$0xff] %v764
      %781 = vst [vmem:[#allocation2 + $0x18] sm:$0xff] %v765
      %782 = vst [vmem:[#allocation2 + $0x20] sm:$0xff] %v766
      %783 = vst [vmem:[#allocation2 + $0x28] sm:$0xff] %v767
      %784 = vst [vmem:[#allocation2 + $0x30] sm:$0xff] %v768
      %785 = vst [vmem:[#allocation2 + $0x38] sm:$0xff] %v769
      %786 = vst [vmem:[#allocation2 + $0x40] sm:$0xff] %v770
      %787 = vst [vmem:[#allocation2 + $0x48] sm:$0xff] %v771
      %788 = vst [vmem:[#allocation2 + $0x50] sm:$0xff] %v772
      %789 = vst [vmem:[#allocation2 + $0x58] sm:$0xff] %v773
      %790 = vst [vmem:[#allocation2 + $0x60] sm:$0xff] %v774
      %791 = vst [vmem:[#allocation2 + $0x68] sm:$0xff] %v775
      %792 = vst [vmem:[#allocation2 + $0x70] sm:$0xff] %v776
      %793 = vst [vmem:[#allocation2 + $0x78] sm:$0xff] %v777
      // Predicated region
      $region41: #{global_generator_forward.19} parent=35 // pred_check
        %p794 = pneg %p308
      $region42: #{global_generator_forward.19} parent=35 // pred_check_branch
        %796 = sbr.rel (%p794) target = $region44
      $region43: #{global_generator_forward.19} parent=35 // pred_region
        %v797 = vld [vmem:[#allocation2] sm:$0xff]
        %v798 = vld [vmem:[#allocation2 + $0x8] sm:$0xff]
        %v799 = vld [vmem:[#allocation2 + $0x10] sm:$0xff]
        %v800 = vld [vmem:[#allocation2 + $0x18] sm:$0xff]
        %v801 = vld [vmem:[#allocation2 + $0x20] sm:$0xff]
        %v802 = vld [vmem:[#allocation2 + $0x28] sm:$0xff]
        %v803 = vld [vmem:[#allocation2 + $0x30] sm:$0xff]
        %v804 = vld [vmem:[#allocation2 + $0x38] sm:$0xff]
        %v805 = vld [vmem:[#allocation2 + $0x40] sm:$0xff]
        %v806 = vld [vmem:[#allocation2 + $0x48] sm:$0xff]
        %v807 = vld [vmem:[#allocation2 + $0x50] sm:$0xff]
        %v808 = vld [vmem:[#allocation2 + $0x58] sm:$0xff]
        %v809 = vld [vmem:[#allocation2 + $0x60] sm:$0xff]
        %v810 = vld [vmem:[#allocation2 + $0x68] sm:$0xff]
        %v811 = vld [vmem:[#allocation2 + $0x70] sm:$0xff]
        %v812 = vld [vmem:[#allocation2 + $0x78] sm:$0xff]
        %v813 = vld [vmem:[%s295] sm:$0x1]
        %v815 = vlaneseq
        %v816 = vshrl.u32 %v815, 7
        %v817 = vsub.s32 0, %v816
        %v818 = vrot.slane %v813, %v817
        %v820 = vmul.f32 %v797, %v818
        %v821 = vmul.f32 %v798, %v818
        %v822 = vmul.f32 %v799, %v818
        %v823 = vmul.f32 %v800, %v818
        %v824 = vmul.f32 %v801, %v818
        %v825 = vmul.f32 %v802, %v818
        %v826 = vmul.f32 %v803, %v818
        %v827 = vmul.f32 %v804, %v818
        %v828 = vmul.f32 %v805, %v818
        %v829 = vmul.f32 %v806, %v818
        %v830 = vmul.f32 %v807, %v818
        %v831 = vmul.f32 %v808, %v818
        %v832 = vmul.f32 %v809, %v818
        %v833 = vmul.f32 %v810, %v818
        %v834 = vmul.f32 %v811, %v818
        %v835 = vmul.f32 %v812, %v818
        %v836 = vld [vmem:[%s298] sm:$0x1]
        %v838 = vlaneseq
        %v839 = vshrl.u32 %v838, 7
        %v840 = vsub.s32 0, %v839
        %v841 = vrot.slane %v836, %v840
        %v843 = vadd.f32 %v820, %v841
        %v844 = vadd.f32 %v821, %v841
        %v845 = vadd.f32 %v822, %v841
        %v846 = vadd.f32 %v823, %v841
        %v847 = vadd.f32 %v824, %v841
        %v848 = vadd.f32 %v825, %v841
        %v849 = vadd.f32 %v826, %v841
        %v850 = vadd.f32 %v827, %v841
        %v851 = vadd.f32 %v828, %v841
        %v852 = vadd.f32 %v829, %v841
        %v853 = vadd.f32 %v830, %v841
        %v854 = vadd.f32 %v831, %v841
        %v855 = vadd.f32 %v832, %v841
        %v856 = vadd.f32 %v833, %v841
        %v857 = vadd.f32 %v834, %v841
        %v858 = vadd.f32 %v835, %v841
        %v859 = vtanh.pop %v843
        %v860 = vtanh.pop %v844
        %v861 = vtanh.pop %v845
        %v862 = vtanh.pop %v846
        %v863 = vtanh.pop %v847
        %v864 = vtanh.pop %v848
        %v865 = vtanh.pop %v849
        %v866 = vtanh.pop %v850
        %v867 = vtanh.pop %v851
        %v868 = vtanh.pop %v852
        %v869 = vtanh.pop %v853
        %v870 = vtanh.pop %v854
        %v871 = vtanh.pop %v855
        %v872 = vtanh.pop %v856
        %v873 = vtanh.pop %v857
        %v874 = vtanh.pop %v858
        %875 = vst [vmem:[%s306] sm:$0xff] %v859
        %876 = vst [vmem:[%s306 + $0x8] sm:$0xff] %v860
        %877 = vst [vmem:[%s306 + $0x10] sm:$0xff] %v861
        %878 = vst [vmem:[%s306 + $0x18] sm:$0xff] %v862
        %879 = vst [vmem:[%s306 + $0x20] sm:$0xff] %v863
        %880 = vst [vmem:[%s306 + $0x28] sm:$0xff] %v864
        %881 = vst [vmem:[%s306 + $0x30] sm:$0xff] %v865
        %882 = vst [vmem:[%s306 + $0x38] sm:$0xff] %v866
        %883 = vst [vmem:[%s306 + $0x40] sm:$0xff] %v867
        %884 = vst [vmem:[%s306 + $0x48] sm:$0xff] %v868
        %885 = vst [vmem:[%s306 + $0x50] sm:$0xff] %v869
        %886 = vst [vmem:[%s306 + $0x58] sm:$0xff] %v870
        %887 = vst [vmem:[%s306 + $0x60] sm:$0xff] %v871
        %888 = vst [vmem:[%s306 + $0x68] sm:$0xff] %v872
        %889 = vst [vmem:[%s306 + $0x70] sm:$0xff] %v873
        %890 = vst [vmem:[%s306 + $0x78] sm:$0xff] %v874
      $region44: #{global_generator_forward.19} parent=35 // pred_fallthru
        _
      %s891 = smul.u32 16, %s20
      %p892 = scmp.lt.s32.totalorder %s891, 63
      %s893 = scalar_select %p892, %s891, 63
      %p894 = scmp.lt.s32.totalorder %s21, 0
      %s895 = scalar_select %p894, %s21, 0
      %s896 = sadd.s32 %s895, %s893
      %s897 = smul.addr %s896, 8
      %s898 = scalar_lea.vmem %s4, %s897
      // Predicated region
      $region45: #{global_generator_forward.19} parent=35 // pred_check
        %p899 = pneg %p162
      $region46: #{global_generator_forward.19} parent=35 // pred_check_branch
        %901 = sbr.rel (%p899) target = $region48
      $region47: #{global_generator_forward.19} parent=35 // pred_region
        %s902 = smul.u32 16, %s20
      $region48: #{global_generator_forward.19} parent=35 // pred_fallthru
        _
    $region36: #{global_generator_forward.19} parent=5 // pred_fallthru
      _
    %p903 = scmp.le.s32.totalorder 2, %s10
    // Predicated region
    $region49: #{global_generator_forward.19} parent=5 // pred_check
      %p904 = pneg %p903
    $region50: #{global_generator_forward.19} parent=5 // pred_check_branch
      %906 = sbr.rel (%p904) target = $region52
    $region51: #{global_generator_forward.19} parent=5 // pred_region
      %s907 = ssub.s32 %s10, 2
      // Predicated region
      $region53: #{global_generator_forward.19} parent=51 // pred_check
        %p908 = pneg %p168
      $region54: #{global_generator_forward.19} parent=51 // pred_check_branch
        %910 = sbr.rel (%p908) target = $region56
      $region55: #{global_generator_forward.19} parent=51 // pred_region
        %s911 = smul.u32 16, %s23
        %p912 = scmp.lt.s32.totalorder %s911, 63
        %s913 = scalar_select %p912, %s911, 63
        %p914 = scmp.lt.s32.totalorder %s24, 0
        %s915 = scalar_select %p914, %s24, 0
        %s916 = sadd.s32 %s915, %s913
        %s917 = smul.addr %s916, 8
        %s918 = scalar_lea.vmem %s4, %s917
      $region56: #{global_generator_forward.19} parent=51 // pred_fallthru
        _
    $region52: #{global_generator_forward.19} parent=5 // pred_fallthru
      _
  $region6: #{global_generator_forward.19} parent=0 // loop_footer
    %s14 = sadd.s32 1, %s10
  $region7: #{global_generator_forward.19} parent=0 // loop_footer_branch
    %9 = sbr.rel target = $region3
  $region8: #{global_generator_forward.19} parent=0 // loop_exit
    _

</llo_original>
